<compile_context>
chip_gen: v7x
topology: tpu7x:2x2x1
jax: 0.10.0
libtpu: 0.0.40
codegen_flags: <defaults>
</compile_context>

<pallas_src>
from functools import partial

import jax
import jax.numpy as jnp
from jax.experimental import pallas as pl
from jax.experimental.pallas import tpu as pltpu


# --------------------------------------------------------------------------- #
# Static shape helpers
# --------------------------------------------------------------------------- #
def _stage_dims(in_len, convblock_sizes):
    """Per-stage (L_in, L_pooled, C_in, C_out) for Conv1d(k=3,p=1)+ReLU -> MaxPool(3,2)."""
    meta, l, cin = [], in_len, 1
    for cout in convblock_sizes:
        assert l >= 3, "sequence too short for MaxPool1d(kernel_size=3, stride=2)"
        lp = (l - 3) // 2 + 1
        meta.append((l, lp, cin, cout))
        l, cin = lp, cout
    return meta


def _per_sample_vmem_bytes(meta, l0):
    """Rough per-sample live working set (f32 bytes) of one grid step: double-buffered
    input block + pooling scratch + per-stage activations / temporaries."""
    total = 3 * (l0 + 2) + l0
    for l, lp, cin, cout in meta:
        total += cin * (l + 2) + 2 * cout * l + cout * (lp + 2)
    return 4 * total


# --------------------------------------------------------------------------- #
# Fused kernel body
# --------------------------------------------------------------------------- #
def _build_fused_kernel(stage_meta):
    """stage_meta: static list of (L_in, L_pooled, C_in, C_out) per conv+pool stage."""
    n_stages = len(stage_meta)

    def kernel(x_ref, *refs):
        scratch = refs[-1]                        # (L0, nb) VMEM pooling stage buffer
        o_ref = refs[-2]                          # (1, 1, nb) lane-dense output block
        w_refs = refs[0:2 * n_stages:2]           # flat (Cout*Cin*3,) conv weights, SMEM
        b_refs = refs[1:2 * n_stages:2]           # (Cout,) conv biases, SMEM
        wlin_ref = refs[2 * n_stages]             # (C_last, Lp_last+2, 1) packed, VMEM
        blin_ref = refs[2 * n_stages + 1]         # (1,) linear bias, SMEM

        nb = x_ref.shape[-1]
        zrow = jnp.zeros((1, nb), jnp.float32)

        # Activations: per-channel list of (L+2, nb) slabs, positions along sublanes,
        # samples along lanes; rows 0 and L+1 are the conv's zero padding.
        h = [x_ref[0].astype(jnp.float32)]

        for (l, lp, cin, cout), w_r, b_r in zip(stage_meta, w_refs, b_refs):
            # The three k=3 conv taps per input channel: static sublane slices.
            taps = [(ch[0:l, :], ch[1:l + 1, :], ch[2:l + 2, :]) for ch in h]
            new_h = []
            for o in range(cout):
                # Conv1d(k=3, pad=1) + bias + ReLU as a per-tap scalar-FMA stencil on
                # the VPU (weights are SMEM scalars): with 1-8 channels the MXU would
                # run at <6% lane utilisation, so no matmul / im2col concat at all.
                # TODO(synk): for large channel counts (>=32) switch this stage to a
                #             bf16 im2col MXU matmul instead of the unrolled stencil.
                acc = None
                for c in range(cin):
                    for t in range(3):
                        term = w_r[(o * cin + c) * 3 + t] * taps[c][t]
                        acc = term if acc is None else acc + term
                y = jnp.maximum(acc + b_r[o], 0.0)                     # (l, nb)

                # MaxPool1d(k=3, s=2), linear cost: stage y through the VMEM scratch
                # and read the three pooling phases with stride-2 sublane loads
                # (replaces the old quadratic selection matmul).
                scratch[0:l, :] = y
                t0 = scratch[pl.ds(0, lp, stride=2), :]
                t1 = scratch[pl.ds(1, lp, stride=2), :]
                t2 = scratch[pl.ds(2, lp, stride=2), :]
                pooled = jnp.maximum(jnp.maximum(t0, t1), t2)          # (lp, nb)

                # Re-insert the zero border rows the next conv stage needs.
                new_h.append(jnp.concatenate([zrow, pooled, zrow], axis=0))
            h = new_h

        # Fused Linear(feat, 1): elementwise multiply by the packed (zero-bordered)
        # weight broadcast over the lane/sample axis, then sublane + channel
        # reduction (XLU).  No segment-sum matmul, no iota mask build.
        out = jnp.zeros((1, nb), jnp.float32)
        for c in range(len(h)):
            out = out + jnp.sum(h[c] * wlin_ref[c], axis=0, keepdims=True)
        out = out + blin_ref[0]
        o_ref[...] = out.reshape(o_ref.shape).astype(o_ref.dtype)

    return kernel


# --------------------------------------------------------------------------- #
# Wrapper: single fused pallas_call over batch blocks
# --------------------------------------------------------------------------- #
def distortion_detector_forward(kparams, x_ncl, *, samples_per_block=None):
    """x_ncl: (N, 1, L) exactly as the PyTorch module receives it (NCL)."""
    n, cin0, l0 = x_ncl.shape
    assert cin0 == 1, "first ConvBlock1D has in_channels=1"
    conv_params = kparams["conv"]                  # [(flat W (Cout*Cin*3,), b (Cout,)), ...]
    wlin, blin = kparams["lin"]                    # (C_last, Lp_last+2, 1), (1,)
    meta = _stage_dims(l0, [b.shape[0] for _, b in conv_params])

    # Batch blocking: samples live in the 128-wide LANE dimension, so a block of
    # nb >= 128 samples makes every vreg / VMEM tile fully lane-dense.  nb is sized
    # from a per-step VMEM budget chosen for v7x's 64 MiB (double-buffer headroom),
    # and we keep >=2 blocks so both v7x TensorCores get "parallel" work.
    per_sample = _per_sample_vmem_bytes(meta, l0)
    if samples_per_block is None:
        budget = 16 * 1024 * 1024
        nb = max(1, min(n, 128, budget // per_sample))
        if -(-n // nb) == 1 and nb > 1:
            nb = -(-nb // 2)
    else:
        nb = samples_per_block
    n_blocks = -(-n // nb)
    n_pad = n_blocks * nb

    # Host-side layout plumbing (pure XLA, outside the kernel): (N,1,L) ->
    # (n_blocks, L+2, nb) with positions along sublanes (zero border rows for the
    # k=3 conv) and samples along lanes.  Cin == 1 so NCL -> (N, L) is a pure reshape.
    x2 = x_ncl.reshape(n, l0)
    if n_pad != n:
        x2 = jnp.pad(x2, ((0, n_pad - n), (0, 0)))
    slab = jnp.pad(x2.reshape(n_blocks, nb, l0).transpose(0, 2, 1),
                   ((0, 0), (1, 1), (0, 0)))
    p0 = l0 + 2

    kernel = _build_fused_kernel(meta)

    smem = pl.BlockSpec(memory_space=pltpu.MemorySpace.SMEM)
    inputs, in_specs = [slab], [pl.BlockSpec((1, p0, nb), lambda i: (i, 0, 0))]
    for w_flat, b in conv_params:
        inputs += [w_flat, b]
        in_specs += [smem, smem]
    inputs += [wlin, blin]
    in_specs += [pl.BlockSpec(wlin.shape, lambda i: (0, 0, 0)), smem]

    out = pl.pallas_call(
        kernel,
        out_shape=jax.ShapeDtypeStruct((n_blocks, 1, nb), x_ncl.dtype),
        grid=(n_blocks,),
        in_specs=in_specs,
        out_specs=pl.BlockSpec((1, 1, nb), lambda i: (i, 0, 0)),
        scratch_shapes=[pltpu.VMEM((l0, nb), jnp.float32)],
        compiler_params=pltpu.CompilerParams(
            dimension_semantics=("parallel",),
            # Explicit scoped-VMEM limit (defaults are only 16/32/32 MiB on
            # v5e/v6e/v7x); capped at 48 MiB to stay inside v7x's 64 MiB physical.
            vmem_limit_bytes=int(min(48 * 1024 * 1024,
                                     max(8 * 1024 * 1024, 6 * nb * per_sample))),
        ),
    )(*inputs)
    return out.reshape(n_pad)[:n]                  # == x.squeeze(1)


# --------------------------------------------------------------------------- #
# Parameters (torch layout) + one-time packing into kernel layout
# --------------------------------------------------------------------------- #
def init_params(key, convblock_sizes, in_len, dtype=jnp.float32):
    """PyTorch-layout params: conv W (Cout, Cin, 3), b (Cout,);
       linear W (1, feat) in torch channel-major flatten order, b (1,)."""
    params = {"conv": [], "lin": None}
    cin, l = 1, in_len
    for cout in convblock_sizes:
        key, kw, kb = jax.random.split(key, 3)
        params["conv"].append((jax.random.normal(kw, (cout, cin, 3), dtype) * 0.1,
                               jax.random.normal(kb, (cout,), dtype) * 0.1))
        cin = cout
        l = (l - 3) // 2 + 1
    feat = l * convblock_sizes[-1]
    key, kw, kb = jax.random.split(key, 3)
    params["lin"] = (jax.random.normal(kw, (1, feat), dtype) * 0.05,
                     jax.random.normal(kb, (1,), dtype) * 0.05)
    return params


def pack_params(params, in_len):
    """One-time layout plumbing (torch -> kernel layout).

    conv:   W (Cout, Cin, 3) -> flat (Cout*Cin*3,) scalar table (SMEM), indexed as
            (o*Cin + c)*3 + t;  bias stays (Cout,).
    linear: W (1, C*Lp) in torch channel-major flatten order -> (C, Lp+2, 1)
            position-major with zero border rows matching the padded activation slab
            (passed ONCE and broadcast over the lane/sample axis inside the kernel).
    """
    meta = _stage_dims(in_len, [w.shape[0] for w, _ in params["conv"]])
    kp = {"conv": [], "lin": None}
    for w, b in params["conv"]:
        kp["conv"].append((w.reshape(-1).astype(jnp.float32), b.astype(jnp.float32)))
    _, lp_last, _, c_last = meta[-1]
    lw, lb = params["lin"]
    w_cp = lw.reshape(c_last, lp_last)             # torch nn.Flatten is channel-major
    kp["lin"] = (jnp.pad(w_cp, ((0, 0), (1, 1)))[..., None].astype(jnp.float32),
                 lb.reshape(1).astype(jnp.float32))
    return kp


# --------------------------------------------------------------------------- #
# Pure-JAX reference with PyTorch semantics/layout (for the correctness check)
# --------------------------------------------------------------------------- #
def ref_forward(params, x_ncl):
    h = x_ncl.astype(jnp.float32)                              # (N, C, L)
    for w, b in params["conv"]:                                # w (Cout, Cin, 3)
        hp = jnp.pad(h, ((0, 0), (0, 0), (1, 1)))
        y = (jnp.einsum("ncl,oc->nol", hp[:, :, 0:-2], w[:, :, 0])
             + jnp.einsum("ncl,oc->nol", hp[:, :, 1:-1], w[:, :, 1])
             + jnp.einsum("ncl,oc->nol", hp[:, :, 2:], w[:, :, 2])
             + b[None, :, None])
        y = jnp.maximum(y, 0.0)                                # ConvBlock1D = conv + ReLU
        lp = (h.shape[2] - 3) // 2 + 1
        idx = 2 * jnp.arange(lp)
        h = jnp.maximum(jnp.maximum(y[:, :, idx], y[:, :, idx + 1]), y[:, :, idx + 2])
    flat = h.reshape(h.shape[0], -1)                           # torch nn.Flatten (N, C*Lp)
    lw, lb = params["lin"]
    return (flat @ lw.T + lb)[:, 0]


if __name__ == "__main__":
    convblock_sizes = [4, 8]
    samples_per_batch = 8
    batches_per_iteration = 8
    batch = 2
    seq_len = samples_per_batch * batches_per_iteration        # 64

    key = jax.random.PRNGKey(0)
    kx, kp = jax.random.split(key)
    x = jax.random.normal(kx, (batch, 1, seq_len), jnp.float32)   # PyTorch (N, C=1, L)
    params = init_params(kp, convblock_sizes, seq_len)
    kparams = pack_params(params, seq_len)

    fwd = jax.jit(partial(distortion_detector_forward, kparams))
    out = jax.block_until_ready(fwd(x))

    ref = ref_forward(params, x)
    assert out.shape == (batch,), out.shape
    assert jnp.allclose(out, ref, atol=1e-4, rtol=1e-4), (out, ref)
    print("KERNEL_OK")
</pallas_src>

<mosaic_0001>
module attributes {stable_mosaic.version = 11 : i64} {
  func.func @kernel(%arg0: i32, %arg1: memref<1x66x1xf32, #tpu.memory_space<vmem>>, %arg2: memref<12xf32, #tpu.memory_space<smem>>, %arg3: memref<4xf32, #tpu.memory_space<smem>>, %arg4: memref<96xf32, #tpu.memory_space<smem>>, %arg5: memref<8xf32, #tpu.memory_space<smem>>, %arg6: memref<8x17x1xf32, #tpu.memory_space<vmem>>, %arg7: memref<1xf32, #tpu.memory_space<smem>>, %arg8: memref<1x1x1xf32, #tpu.memory_space<vmem>>, %arg9: memref<64x1xf32, #tpu.memory_space<vmem>>) attributes {dimension_semantics = [#tpu.dimension_semantics<parallel>], iteration_bounds = array<i64: 2>, scalar_prefetch = 0 : i64, scratch_operands = 1 : i64, tpu.core_type = #tpu.core_type<tc>, window_params = [{transform_indices = @transform_0, window_bounds = array<i64: 1, 66, 1>}, {transform_indices = @transform_1, window_bounds = array<i64: 12>}, {transform_indices = @transform_2, window_bounds = array<i64: 4>}, {transform_indices = @transform_3, window_bounds = array<i64: 96>}, {transform_indices = @transform_4, window_bounds = array<i64: 8>}, {pipeline_mode = #tpu.pipeline_mode<synchronous>, transform_indices = @transform_5, window_bounds = array<i64: 8, 17, 1>}, {transform_indices = @transform_6, window_bounds = array<i64: 1>}, {transform_indices = @transform_7, window_bounds = array<i64: 1, 1, 1>}]} {
    %cst = arith.constant 0.000000e+00 : f32
    %0 = vector.broadcast %cst : f32 to vector<1x1xf32>
    %c0 = arith.constant 0 : index
    %c0_0 = arith.constant 0 : index
    %c0_1 = arith.constant 0 : index
    %1 = vector.load %arg1[%c0, %c0_0, %c0_1] : memref<1x66x1xf32, #tpu.memory_space<vmem>>, vector<1x66x1xf32>
    %2 = vector.shape_cast %1 : vector<1x66x1xf32> to vector<66x1xf32>
    %3 = vector.extract_strided_slice %2 {offsets = [0, 0], sizes = [64, 1], strides = [1, 1]} : vector<66x1xf32> to vector<64x1xf32>
    %4 = vector.extract_strided_slice %2 {offsets = [1, 0], sizes = [64, 1], strides = [1, 1]} : vector<66x1xf32> to vector<64x1xf32>
    %5 = vector.extract_strided_slice %2 {offsets = [2, 0], sizes = [64, 1], strides = [1, 1]} : vector<66x1xf32> to vector<64x1xf32>
    %c0_2 = arith.constant 0 : index
    %6 = memref.load %arg2[%c0_2] : memref<12xf32, #tpu.memory_space<smem>>
    %7 = vector.broadcast %6 : f32 to vector<64x1xf32>
    %8 = arith.mulf %7, %3 : vector<64x1xf32>
    %c1 = arith.constant 1 : index
    %9 = memref.load %arg2[%c1] : memref<12xf32, #tpu.memory_space<smem>>
    %10 = vector.broadcast %9 : f32 to vector<64x1xf32>
    %11 = arith.mulf %10, %4 : vector<64x1xf32>
    %12 = arith.addf %8, %11 : vector<64x1xf32>
    %c2 = arith.constant 2 : index
    %13 = memref.load %arg2[%c2] : memref<12xf32, #tpu.memory_space<smem>>
    %14 = vector.broadcast %13 : f32 to vector<64x1xf32>
    %15 = arith.mulf %14, %5 : vector<64x1xf32>
    %16 = arith.addf %12, %15 : vector<64x1xf32>
    %c0_3 = arith.constant 0 : index
    %17 = memref.load %arg3[%c0_3] : memref<4xf32, #tpu.memory_space<smem>>
    %18 = vector.broadcast %17 : f32 to vector<64x1xf32>
    %19 = arith.addf %16, %18 : vector<64x1xf32>
    %cst_4 = arith.constant 0.000000e+00 : f32
    %20 = vector.broadcast %cst_4 : f32 to vector<64x1xf32>
    %21 = arith.maximumf %19, %20 : vector<64x1xf32>
    %c0_5 = arith.constant 0 : index
    %c0_6 = arith.constant 0 : index
    %22 = vector.load %arg9[%c0_5, %c0_6] : memref<64x1xf32, #tpu.memory_space<vmem>>, vector<64x1xf32>
    tpu.vector_store %arg9[%c0_5, %c0_6], %21 {strides = array<i32>} : memref<64x1xf32, #tpu.memory_space<vmem>>, vector<64x1xf32>,
    %c0_7 = arith.constant 0 : index
    %c0_8 = arith.constant 0 : index
    %23 = tpu.strided_load %arg9[%c0_7, %c0_8] {strides = array<i32: 2, 1>} : memref<64x1xf32, #tpu.memory_space<vmem>>, vector<31x1xf32>
    %c1_9 = arith.constant 1 : index
    %c0_10 = arith.constant 0 : index
    %24 = tpu.strided_load %arg9[%c1_9, %c0_10] {strides = array<i32: 2, 1>} : memref<64x1xf32, #tpu.memory_space<vmem>>, vector<31x1xf32>
    %c2_11 = arith.constant 2 : index
    %c0_12 = arith.constant 0 : index
    %25 = tpu.strided_load %arg9[%c2_11, %c0_12] {strides = array<i32: 2, 1>} : memref<64x1xf32, #tpu.memory_space<vmem>>, vector<31x1xf32>
    %26 = arith.maximumf %23, %24 : vector<31x1xf32>
    %27 = arith.maximumf %26, %25 : vector<31x1xf32>
    %28 = tpu.concatenate %0, %27, %0 in 0 : vector<1x1xf32>, vector<31x1xf32>, vector<1x1xf32> -> vector<33x1xf32>
    %c3 = arith.constant 3 : index
    %29 = memref.load %arg2[%c3] : memref<12xf32, #tpu.memory_space<smem>>
    %30 = vector.broadcast %29 : f32 to vector<64x1xf32>
    %31 = arith.mulf %30, %3 : vector<64x1xf32>
    %c4 = arith.constant 4 : index
    %32 = memref.load %arg2[%c4] : memref<12xf32, #tpu.memory_space<smem>>
    %33 = vector.broadcast %32 : f32 to vector<64x1xf32>
    %34 = arith.mulf %33, %4 : vector<64x1xf32>
    %35 = arith.addf %31, %34 : vector<64x1xf32>
    %c5 = arith.constant 5 : index
    %36 = memref.load %arg2[%c5] : memref<12xf32, #tpu.memory_space<smem>>
    %37 = vector.broadcast %36 : f32 to vector<64x1xf32>
    %38 = arith.mulf %37, %5 : vector<64x1xf32>
    %39 = arith.addf %35, %38 : vector<64x1xf32>
    %c1_13 = arith.constant 1 : index
    %40 = memref.load %arg3[%c1_13] : memref<4xf32, #tpu.memory_space<smem>>
    %41 = vector.broadcast %40 : f32 to vector<64x1xf32>
    %42 = arith.addf %39, %41 : vector<64x1xf32>
    %cst_14 = arith.constant 0.000000e+00 : f32
    %43 = vector.broadcast %cst_14 : f32 to vector<64x1xf32>
    %44 = arith.maximumf %42, %43 : vector<64x1xf32>
    %c0_15 = arith.constant 0 : index
    %c0_16 = arith.constant 0 : index
    %45 = vector.load %arg9[%c0_15, %c0_16] : memref<64x1xf32, #tpu.memory_space<vmem>>, vector<64x1xf32>
    tpu.vector_store %arg9[%c0_15, %c0_16], %44 {strides = array<i32>} : memref<64x1xf32, #tpu.memory_space<vmem>>, vector<64x1xf32>,
    %c0_17 = arith.constant 0 : index
    %c0_18 = arith.constant 0 : index
    %46 = tpu.strided_load %arg9[%c0_17, %c0_18] {strides = array<i32: 2, 1>} : memref<64x1xf32, #tpu.memory_space<vmem>>, vector<31x1xf32>
    %c1_19 = arith.constant 1 : index
    %c0_20 = arith.constant 0 : index
    %47 = tpu.strided_load %arg9[%c1_19, %c0_20] {strides = array<i32: 2, 1>} : memref<64x1xf32, #tpu.memory_space<vmem>>, vector<31x1xf32>
    %c2_21 = arith.constant 2 : index
    %c0_22 = arith.constant 0 : index
    %48 = tpu.strided_load %arg9[%c2_21, %c0_22] {strides = array<i32: 2, 1>} : memref<64x1xf32, #tpu.memory_space<vmem>>, vector<31x1xf32>
    %49 = arith.maximumf %46, %47 : vector<31x1xf32>
    %50 = arith.maximumf %49, %48 : vector<31x1xf32>
    %51 = tpu.concatenate %0, %50, %0 in 0 : vector<1x1xf32>, vector<31x1xf32>, vector<1x1xf32> -> vector<33x1xf32>
    %c6 = arith.constant 6 : index
    %52 = memref.load %arg2[%c6] : memref<12xf32, #tpu.memory_space<smem>>
    %53 = vector.broadcast %52 : f32 to vector<64x1xf32>
    %54 = arith.mulf %53, %3 : vector<64x1xf32>
    %c7 = arith.constant 7 : index
    %55 = memref.load %arg2[%c7] : memref<12xf32, #tpu.memory_space<smem>>
    %56 = vector.broadcast %55 : f32 to vector<64x1xf32>
    %57 = arith.mulf %56, %4 : vector<64x1xf32>
    %58 = arith.addf %54, %57 : vector<64x1xf32>
    %c8 = arith.constant 8 : index
    %59 = memref.load %arg2[%c8] : memref<12xf32, #tpu.memory_space<smem>>
    %60 = vector.broadcast %59 : f32 to vector<64x1xf32>
    %61 = arith.mulf %60, %5 : vector<64x1xf32>
    %62 = arith.addf %58, %61 : vector<64x1xf32>
    %c2_23 = arith.constant 2 : index
    %63 = memref.load %arg3[%c2_23] : memref<4xf32, #tpu.memory_space<smem>>
    %64 = vector.broadcast %63 : f32 to vector<64x1xf32>
    %65 = arith.addf %62, %64 : vector<64x1xf32>
    %cst_24 = arith.constant 0.000000e+00 : f32
    %66 = vector.broadcast %cst_24 : f32 to vector<64x1xf32>
    %67 = arith.maximumf %65, %66 : vector<64x1xf32>
    %c0_25 = arith.constant 0 : index
    %c0_26 = arith.constant 0 : index
    %68 = vector.load %arg9[%c0_25, %c0_26] : memref<64x1xf32, #tpu.memory_space<vmem>>, vector<64x1xf32>
    tpu.vector_store %arg9[%c0_25, %c0_26], %67 {strides = array<i32>} : memref<64x1xf32, #tpu.memory_space<vmem>>, vector<64x1xf32>,
    %c0_27 = arith.constant 0 : index
    %c0_28 = arith.constant 0 : index
    %69 = tpu.strided_load %arg9[%c0_27, %c0_28] {strides = array<i32: 2, 1>} : memref<64x1xf32, #tpu.memory_space<vmem>>, vector<31x1xf32>
    %c1_29 = arith.constant 1 : index
    %c0_30 = arith.constant 0 : index
    %70 = tpu.strided_load %arg9[%c1_29, %c0_30] {strides = array<i32: 2, 1>} : memref<64x1xf32, #tpu.memory_space<vmem>>, vector<31x1xf32>
    %c2_31 = arith.constant 2 : index
    %c0_32 = arith.constant 0 : index
    %71 = tpu.strided_load %arg9[%c2_31, %c0_32] {strides = array<i32: 2, 1>} : memref<64x1xf32, #tpu.memory_space<vmem>>, vector<31x1xf32>
    %72 = arith.maximumf %69, %70 : vector<31x1xf32>
    %73 = arith.maximumf %72, %71 : vector<31x1xf32>
    %74 = tpu.concatenate %0, %73, %0 in 0 : vector<1x1xf32>, vector<31x1xf32>, vector<1x1xf32> -> vector<33x1xf32>
    %c9 = arith.constant 9 : index
    %75 = memref.load %arg2[%c9] : memref<12xf32, #tpu.memory_space<smem>>
    %76 = vector.broadcast %75 : f32 to vector<64x1xf32>
    %77 = arith.mulf %76, %3 : vector<64x1xf32>
    %c10 = arith.constant 10 : index
    %78 = memref.load %arg2[%c10] : memref<12xf32, #tpu.memory_space<smem>>
    %79 = vector.broadcast %78 : f32 to vector<64x1xf32>
    %80 = arith.mulf %79, %4 : vector<64x1xf32>
    %81 = arith.addf %77, %80 : vector<64x1xf32>
    %c11 = arith.constant 11 : index
    %82 = memref.load %arg2[%c11] : memref<12xf32, #tpu.memory_space<smem>>
    %83 = vector.broadcast %82 : f32 to vector<64x1xf32>
    %84 = arith.mulf %83, %5 : vector<64x1xf32>
    %85 = arith.addf %81, %84 : vector<64x1xf32>
    %c3_33 = arith.constant 3 : index
    %86 = memref.load %arg3[%c3_33] : memref<4xf32, #tpu.memory_space<smem>>
    %87 = vector.broadcast %86 : f32 to vector<64x1xf32>
    %88 = arith.addf %85, %87 : vector<64x1xf32>
    %cst_34 = arith.constant 0.000000e+00 : f32
    %89 = vector.broadcast %cst_34 : f32 to vector<64x1xf32>
    %90 = arith.maximumf %88, %89 : vector<64x1xf32>
    %c0_35 = arith.constant 0 : index
    %c0_36 = arith.constant 0 : index
    %91 = vector.load %arg9[%c0_35, %c0_36] : memref<64x1xf32, #tpu.memory_space<vmem>>, vector<64x1xf32>
    tpu.vector_store %arg9[%c0_35, %c0_36], %90 {strides = array<i32>} : memref<64x1xf32, #tpu.memory_space<vmem>>, vector<64x1xf32>,
    %c0_37 = arith.constant 0 : index
    %c0_38 = arith.constant 0 : index
    %92 = tpu.strided_load %arg9[%c0_37, %c0_38] {strides = array<i32: 2, 1>} : memref<64x1xf32, #tpu.memory_space<vmem>>, vector<31x1xf32>
    %c1_39 = arith.constant 1 : index
    %c0_40 = arith.constant 0 : index
    %93 = tpu.strided_load %arg9[%c1_39, %c0_40] {strides = array<i32: 2, 1>} : memref<64x1xf32, #tpu.memory_space<vmem>>, vector<31x1xf32>
    %c2_41 = arith.constant 2 : index
    %c0_42 = arith.constant 0 : index
    %94 = tpu.strided_load %arg9[%c2_41, %c0_42] {strides = array<i32: 2, 1>} : memref<64x1xf32, #tpu.memory_space<vmem>>, vector<31x1xf32>
    %95 = arith.maximumf %92, %93 : vector<31x1xf32>
    %96 = arith.maximumf %95, %94 : vector<31x1xf32>
    %97 = tpu.concatenate %0, %96, %0 in 0 : vector<1x1xf32>, vector<31x1xf32>, vector<1x1xf32> -> vector<33x1xf32>
    %98 = vector.extract_strided_slice %28 {offsets = [0, 0], sizes = [31, 1], strides = [1, 1]} : vector<33x1xf32> to vector<31x1xf32>
    %99 = vector.extract_strided_slice %28 {offsets = [1, 0], sizes = [31, 1], strides = [1, 1]} : vector<33x1xf32> to vector<31x1xf32>
    %100 = vector.extract_strided_slice %28 {offsets = [2, 0], sizes = [31, 1], strides = [1, 1]} : vector<33x1xf32> to vector<31x1xf32>
    %101 = vector.extract_strided_slice %51 {offsets = [0, 0], sizes = [31, 1], strides = [1, 1]} : vector<33x1xf32> to vector<31x1xf32>
    %102 = vector.extract_strided_slice %51 {offsets = [1, 0], sizes = [31, 1], strides = [1, 1]} : vector<33x1xf32> to vector<31x1xf32>
    %103 = vector.extract_strided_slice %51 {offsets = [2, 0], sizes = [31, 1], strides = [1, 1]} : vector<33x1xf32> to vector<31x1xf32>
    %104 = vector.extract_strided_slice %74 {offsets = [0, 0], sizes = [31, 1], strides = [1, 1]} : vector<33x1xf32> to vector<31x1xf32>
    %105 = vector.extract_strided_slice %74 {offsets = [1, 0], sizes = [31, 1], strides = [1, 1]} : vector<33x1xf32> to vector<31x1xf32>
    %106 = vector.extract_strided_slice %74 {offsets = [2, 0], sizes = [31, 1], strides = [1, 1]} : vector<33x1xf32> to vector<31x1xf32>
    %107 = vector.extract_strided_slice %97 {offsets = [0, 0], sizes = [31, 1], strides = [1, 1]} : vector<33x1xf32> to vector<31x1xf32>
    %108 = vector.extract_strided_slice %97 {offsets = [1, 0], sizes = [31, 1], strides = [1, 1]} : vector<33x1xf32> to vector<31x1xf32>
    %109 = vector.extract_strided_slice %97 {offsets = [2, 0], sizes = [31, 1], strides = [1, 1]} : vector<33x1xf32> to vector<31x1xf32>
    %c0_43 = arith.constant 0 : index
    %110 = memref.load %arg4[%c0_43] : memref<96xf32, #tpu.memory_space<smem>>
    %111 = vector.broadcast %110 : f32 to vector<31x1xf32>
    %112 = arith.mulf %111, %98 : vector<31x1xf32>
    %c1_44 = arith.constant 1 : index
    %113 = memref.load %arg4[%c1_44] : memref<96xf32, #tpu.memory_space<smem>>
    %114 = vector.broadcast %113 : f32 to vector<31x1xf32>
    %115 = arith.mulf %114, %99 : vector<31x1xf32>
    %116 = arith.addf %112, %115 : vector<31x1xf32>
    %c2_45 = arith.constant 2 : index
    %117 = memref.load %arg4[%c2_45] : memref<96xf32, #tpu.memory_space<smem>>
    %118 = vector.broadcast %117 : f32 to vector<31x1xf32>
    %119 = arith.mulf %118, %100 : vector<31x1xf32>
    %120 = arith.addf %116, %119 : vector<31x1xf32>
    %c3_46 = arith.constant 3 : index
    %121 = memref.load %arg4[%c3_46] : memref<96xf32, #tpu.memory_space<smem>>
    %122 = vector.broadcast %121 : f32 to vector<31x1xf32>
    %123 = arith.mulf %122, %101 : vector<31x1xf32>
    %124 = arith.addf %120, %123 : vector<31x1xf32>
    %c4_47 = arith.constant 4 : index
    %125 = memref.load %arg4[%c4_47] : memref<96xf32, #tpu.memory_space<smem>>
    %126 = vector.broadcast %125 : f32 to vector<31x1xf32>
    %127 = arith.mulf %126, %102 : vector<31x1xf32>
    %128 = arith.addf %124, %127 : vector<31x1xf32>
    %c5_48 = arith.constant 5 : index
    %129 = memref.load %arg4[%c5_48] : memref<96xf32, #tpu.memory_space<smem>>
    %130 = vector.broadcast %129 : f32 to vector<31x1xf32>
    %131 = arith.mulf %130, %103 : vector<31x1xf32>
    %132 = arith.addf %128, %131 : vector<31x1xf32>
    %c6_49 = arith.constant 6 : index
    %133 = memref.load %arg4[%c6_49] : memref<96xf32, #tpu.memory_space<smem>>
    %134 = vector.broadcast %133 : f32 to vector<31x1xf32>
    %135 = arith.mulf %134, %104 : vector<31x1xf32>
    %136 = arith.addf %132, %135 : vector<31x1xf32>
    %c7_50 = arith.constant 7 : index
    %137 = memref.load %arg4[%c7_50] : memref<96xf32, #tpu.memory_space<smem>>
    %138 = vector.broadcast %137 : f32 to vector<31x1xf32>
    %139 = arith.mulf %138, %105 : vector<31x1xf32>
    %140 = arith.addf %136, %139 : vector<31x1xf32>
    %c8_51 = arith.constant 8 : index
    %141 = memref.load %arg4[%c8_51] : memref<96xf32, #tpu.memory_space<smem>>
    %142 = vector.broadcast %141 : f32 to vector<31x1xf32>
    %143 = arith.mulf %142, %106 : vector<31x1xf32>
    %144 = arith.addf %140, %143 : vector<31x1xf32>
    %c9_52 = arith.constant 9 : index
    %145 = memref.load %arg4[%c9_52] : memref<96xf32, #tpu.memory_space<smem>>
    %146 = vector.broadcast %145 : f32 to vector<31x1xf32>
    %147 = arith.mulf %146, %107 : vector<31x1xf32>
    %148 = arith.addf %144, %147 : vector<31x1xf32>
    %c10_53 = arith.constant 10 : index
    %149 = memref.load %arg4[%c10_53] : memref<96xf32, #tpu.memory_space<smem>>
    %150 = vector.broadcast %149 : f32 to vector<31x1xf32>
    %151 = arith.mulf %150, %108 : vector<31x1xf32>
    %152 = arith.addf %148, %151 : vector<31x1xf32>
    %c11_54 = arith.constant 11 : index
    %153 = memref.load %arg4[%c11_54] : memref<96xf32, #tpu.memory_space<smem>>
    %154 = vector.broadcast %153 : f32 to vector<31x1xf32>
    %155 = arith.mulf %154, %109 : vector<31x1xf32>
    %156 = arith.addf %152, %155 : vector<31x1xf32>
    %c0_55 = arith.constant 0 : index
    %157 = memref.load %arg5[%c0_55] : memref<8xf32, #tpu.memory_space<smem>>
    %158 = vector.broadcast %157 : f32 to vector<31x1xf32>
    %159 = arith.addf %156, %158 : vector<31x1xf32>
    %cst_56 = arith.constant 0.000000e+00 : f32
    %160 = vector.broadcast %cst_56 : f32 to vector<31x1xf32>
    %161 = arith.maximumf %159, %160 : vector<31x1xf32>
    %c0_57 = arith.constant 0 : index
    %c0_58 = arith.constant 0 : index
    %162 = vector.load %arg9[%c0_57, %c0_58] : memref<64x1xf32, #tpu.memory_space<vmem>>, vector<31x1xf32>
    tpu.vector_store %arg9[%c0_57, %c0_58], %161 {strides = array<i32>} : memref<64x1xf32, #tpu.memory_space<vmem>>, vector<31x1xf32>,
    %c0_59 = arith.constant 0 : index
    %c0_60 = arith.constant 0 : index
    %163 = tpu.strided_load %arg9[%c0_59, %c0_60] {strides = array<i32: 2, 1>} : memref<64x1xf32, #tpu.memory_space<vmem>>, vector<15x1xf32>
    %c1_61 = arith.constant 1 : index
    %c0_62 = arith.constant 0 : index
    %164 = tpu.strided_load %arg9[%c1_61, %c0_62] {strides = array<i32: 2, 1>} : memref<64x1xf32, #tpu.memory_space<vmem>>, vector<15x1xf32>
    %c2_63 = arith.constant 2 : index
    %c0_64 = arith.constant 0 : index
    %165 = tpu.strided_load %arg9[%c2_63, %c0_64] {strides = array<i32: 2, 1>} : memref<64x1xf32, #tpu.memory_space<vmem>>, vector<15x1xf32>
    %166 = arith.maximumf %163, %164 : vector<15x1xf32>
    %167 = arith.maximumf %166, %165 : vector<15x1xf32>
    %168 = tpu.concatenate %0, %167, %0 in 0 : vector<1x1xf32>, vector<15x1xf32>, vector<1x1xf32> -> vector<17x1xf32>
    %c12 = arith.constant 12 : index
    %169 = memref.load %arg4[%c12] : memref<96xf32, #tpu.memory_space<smem>>
    %170 = vector.broadcast %169 : f32 to vector<31x1xf32>
    %171 = arith.mulf %170, %98 : vector<31x1xf32>
    %c13 = arith.constant 13 : index
    %172 = memref.load %arg4[%c13] : memref<96xf32, #tpu.memory_space<smem>>
    %173 = vector.broadcast %172 : f32 to vector<31x1xf32>
    %174 = arith.mulf %173, %99 : vector<31x1xf32>
    %175 = arith.addf %171, %174 : vector<31x1xf32>
    %c14 = arith.constant 14 : index
    %176 = memref.load %arg4[%c14] : memref<96xf32, #tpu.memory_space<smem>>
    %177 = vector.broadcast %176 : f32 to vector<31x1xf32>
    %178 = arith.mulf %177, %100 : vector<31x1xf32>
    %179 = arith.addf %175, %178 : vector<31x1xf32>
    %c15 = arith.constant 15 : index
    %180 = memref.load %arg4[%c15] : memref<96xf32, #tpu.memory_space<smem>>
    %181 = vector.broadcast %180 : f32 to vector<31x1xf32>
    %182 = arith.mulf %181, %101 : vector<31x1xf32>
    %183 = arith.addf %179, %182 : vector<31x1xf32>
    %c16 = arith.constant 16 : index
    %184 = memref.load %arg4[%c16] : memref<96xf32, #tpu.memory_space<smem>>
    %185 = vector.broadcast %184 : f32 to vector<31x1xf32>
    %186 = arith.mulf %185, %102 : vector<31x1xf32>
    %187 = arith.addf %183, %186 : vector<31x1xf32>
    %c17 = arith.constant 17 : index
    %188 = memref.load %arg4[%c17] : memref<96xf32, #tpu.memory_space<smem>>
    %189 = vector.broadcast %188 : f32 to vector<31x1xf32>
    %190 = arith.mulf %189, %103 : vector<31x1xf32>
    %191 = arith.addf %187, %190 : vector<31x1xf32>
    %c18 = arith.constant 18 : index
    %192 = memref.load %arg4[%c18] : memref<96xf32, #tpu.memory_space<smem>>
    %193 = vector.broadcast %192 : f32 to vector<31x1xf32>
    %194 = arith.mulf %193, %104 : vector<31x1xf32>
    %195 = arith.addf %191, %194 : vector<31x1xf32>
    %c19 = arith.constant 19 : index
    %196 = memref.load %arg4[%c19] : memref<96xf32, #tpu.memory_space<smem>>
    %197 = vector.broadcast %196 : f32 to vector<31x1xf32>
    %198 = arith.mulf %197, %105 : vector<31x1xf32>
    %199 = arith.addf %195, %198 : vector<31x1xf32>
    %c20 = arith.constant 20 : index
    %200 = memref.load %arg4[%c20] : memref<96xf32, #tpu.memory_space<smem>>
    %201 = vector.broadcast %200 : f32 to vector<31x1xf32>
    %202 = arith.mulf %201, %106 : vector<31x1xf32>
    %203 = arith.addf %199, %202 : vector<31x1xf32>
    %c21 = arith.constant 21 : index
    %204 = memref.load %arg4[%c21] : memref<96xf32, #tpu.memory_space<smem>>
    %205 = vector.broadcast %204 : f32 to vector<31x1xf32>
    %206 = arith.mulf %205, %107 : vector<31x1xf32>
    %207 = arith.addf %203, %206 : vector<31x1xf32>
    %c22 = arith.constant 22 : index
    %208 = memref.load %arg4[%c22] : memref<96xf32, #tpu.memory_space<smem>>
    %209 = vector.broadcast %208 : f32 to vector<31x1xf32>
    %210 = arith.mulf %209, %108 : vector<31x1xf32>
    %211 = arith.addf %207, %210 : vector<31x1xf32>
    %c23 = arith.constant 23 : index
    %212 = memref.load %arg4[%c23] : memref<96xf32, #tpu.memory_space<smem>>
    %213 = vector.broadcast %212 : f32 to vector<31x1xf32>
    %214 = arith.mulf %213, %109 : vector<31x1xf32>
    %215 = arith.addf %211, %214 : vector<31x1xf32>
    %c1_65 = arith.constant 1 : index
    %216 = memref.load %arg5[%c1_65] : memref<8xf32, #tpu.memory_space<smem>>
    %217 = vector.broadcast %216 : f32 to vector<31x1xf32>
    %218 = arith.addf %215, %217 : vector<31x1xf32>
    %cst_66 = arith.constant 0.000000e+00 : f32
    %219 = vector.broadcast %cst_66 : f32 to vector<31x1xf32>
    %220 = arith.maximumf %218, %219 : vector<31x1xf32>
    %c0_67 = arith.constant 0 : index
    %c0_68 = arith.constant 0 : index
    %221 = vector.load %arg9[%c0_67, %c0_68] : memref<64x1xf32, #tpu.memory_space<vmem>>, vector<31x1xf32>
    tpu.vector_store %arg9[%c0_67, %c0_68], %220 {strides = array<i32>} : memref<64x1xf32, #tpu.memory_space<vmem>>, vector<31x1xf32>,
    %c0_69 = arith.constant 0 : index
    %c0_70 = arith.constant 0 : index
    %222 = tpu.strided_load %arg9[%c0_69, %c0_70] {strides = array<i32: 2, 1>} : memref<64x1xf32, #tpu.memory_space<vmem>>, vector<15x1xf32>
    %c1_71 = arith.constant 1 : index
    %c0_72 = arith.constant 0 : index
    %223 = tpu.strided_load %arg9[%c1_71, %c0_72] {strides = array<i32: 2, 1>} : memref<64x1xf32, #tpu.memory_space<vmem>>, vector<15x1xf32>
    %c2_73 = arith.constant 2 : index
    %c0_74 = arith.constant 0 : index
    %224 = tpu.strided_load %arg9[%c2_73, %c0_74] {strides = array<i32: 2, 1>} : memref<64x1xf32, #tpu.memory_space<vmem>>, vector<15x1xf32>
    %225 = arith.maximumf %222, %223 : vector<15x1xf32>
    %226 = arith.maximumf %225, %224 : vector<15x1xf32>
    %227 = tpu.concatenate %0, %226, %0 in 0 : vector<1x1xf32>, vector<15x1xf32>, vector<1x1xf32> -> vector<17x1xf32>
    %c24 = arith.constant 24 : index
    %228 = memref.load %arg4[%c24] : memref<96xf32, #tpu.memory_space<smem>>
    %229 = vector.broadcast %228 : f32 to vector<31x1xf32>
    %230 = arith.mulf %229, %98 : vector<31x1xf32>
    %c25 = arith.constant 25 : index
    %231 = memref.load %arg4[%c25] : memref<96xf32, #tpu.memory_space<smem>>
    %232 = vector.broadcast %231 : f32 to vector<31x1xf32>
    %233 = arith.mulf %232, %99 : vector<31x1xf32>
    %234 = arith.addf %230, %233 : vector<31x1xf32>
    %c26 = arith.constant 26 : index
    %235 = memref.load %arg4[%c26] : memref<96xf32, #tpu.memory_space<smem>>
    %236 = vector.broadcast %235 : f32 to vector<31x1xf32>
    %237 = arith.mulf %236, %100 : vector<31x1xf32>
    %238 = arith.addf %234, %237 : vector<31x1xf32>
    %c27 = arith.constant 27 : index
    %239 = memref.load %arg4[%c27] : memref<96xf32, #tpu.memory_space<smem>>
    %240 = vector.broadcast %239 : f32 to vector<31x1xf32>
    %241 = arith.mulf %240, %101 : vector<31x1xf32>
    %242 = arith.addf %238, %241 : vector<31x1xf32>
    %c28 = arith.constant 28 : index
    %243 = memref.load %arg4[%c28] : memref<96xf32, #tpu.memory_space<smem>>
    %244 = vector.broadcast %243 : f32 to vector<31x1xf32>
    %245 = arith.mulf %244, %102 : vector<31x1xf32>
    %246 = arith.addf %242, %245 : vector<31x1xf32>
    %c29 = arith.constant 29 : index
    %247 = memref.load %arg4[%c29] : memref<96xf32, #tpu.memory_space<smem>>
    %248 = vector.broadcast %247 : f32 to vector<31x1xf32>
    %249 = arith.mulf %248, %103 : vector<31x1xf32>
    %250 = arith.addf %246, %249 : vector<31x1xf32>
    %c30 = arith.constant 30 : index
    %251 = memref.load %arg4[%c30] : memref<96xf32, #tpu.memory_space<smem>>
    %252 = vector.broadcast %251 : f32 to vector<31x1xf32>
    %253 = arith.mulf %252, %104 : vector<31x1xf32>
    %254 = arith.addf %250, %253 : vector<31x1xf32>
    %c31 = arith.constant 31 : index
    %255 = memref.load %arg4[%c31] : memref<96xf32, #tpu.memory_space<smem>>
    %256 = vector.broadcast %255 : f32 to vector<31x1xf32>
    %257 = arith.mulf %256, %105 : vector<31x1xf32>
    %258 = arith.addf %254, %257 : vector<31x1xf32>
    %c32 = arith.constant 32 : index
    %259 = memref.load %arg4[%c32] : memref<96xf32, #tpu.memory_space<smem>>
    %260 = vector.broadcast %259 : f32 to vector<31x1xf32>
    %261 = arith.mulf %260, %106 : vector<31x1xf32>
    %262 = arith.addf %258, %261 : vector<31x1xf32>
    %c33 = arith.constant 33 : index
    %263 = memref.load %arg4[%c33] : memref<96xf32, #tpu.memory_space<smem>>
    %264 = vector.broadcast %263 : f32 to vector<31x1xf32>
    %265 = arith.mulf %264, %107 : vector<31x1xf32>
    %266 = arith.addf %262, %265 : vector<31x1xf32>
    %c34 = arith.constant 34 : index
    %267 = memref.load %arg4[%c34] : memref<96xf32, #tpu.memory_space<smem>>
    %268 = vector.broadcast %267 : f32 to vector<31x1xf32>
    %269 = arith.mulf %268, %108 : vector<31x1xf32>
    %270 = arith.addf %266, %269 : vector<31x1xf32>
    %c35 = arith.constant 35 : index
    %271 = memref.load %arg4[%c35] : memref<96xf32, #tpu.memory_space<smem>>
    %272 = vector.broadcast %271 : f32 to vector<31x1xf32>
    %273 = arith.mulf %272, %109 : vector<31x1xf32>
    %274 = arith.addf %270, %273 : vector<31x1xf32>
    %c2_75 = arith.constant 2 : index
    %275 = memref.load %arg5[%c2_75] : memref<8xf32, #tpu.memory_space<smem>>
    %276 = vector.broadcast %275 : f32 to vector<31x1xf32>
    %277 = arith.addf %274, %276 : vector<31x1xf32>
    %cst_76 = arith.constant 0.000000e+00 : f32
    %278 = vector.broadcast %cst_76 : f32 to vector<31x1xf32>
    %279 = arith.maximumf %277, %278 : vector<31x1xf32>
    %c0_77 = arith.constant 0 : index
    %c0_78 = arith.constant 0 : index
    %280 = vector.load %arg9[%c0_77, %c0_78] : memref<64x1xf32, #tpu.memory_space<vmem>>, vector<31x1xf32>
    tpu.vector_store %arg9[%c0_77, %c0_78], %279 {strides = array<i32>} : memref<64x1xf32, #tpu.memory_space<vmem>>, vector<31x1xf32>,
    %c0_79 = arith.constant 0 : index
    %c0_80 = arith.constant 0 : index
    %281 = tpu.strided_load %arg9[%c0_79, %c0_80] {strides = array<i32: 2, 1>} : memref<64x1xf32, #tpu.memory_space<vmem>>, vector<15x1xf32>
    %c1_81 = arith.constant 1 : index
    %c0_82 = arith.constant 0 : index
    %282 = tpu.strided_load %arg9[%c1_81, %c0_82] {strides = array<i32: 2, 1>} : memref<64x1xf32, #tpu.memory_space<vmem>>, vector<15x1xf32>
    %c2_83 = arith.constant 2 : index
    %c0_84 = arith.constant 0 : index
    %283 = tpu.strided_load %arg9[%c2_83, %c0_84] {strides = array<i32: 2, 1>} : memref<64x1xf32, #tpu.memory_space<vmem>>, vector<15x1xf32>
    %284 = arith.maximumf %281, %282 : vector<15x1xf32>
    %285 = arith.maximumf %284, %283 : vector<15x1xf32>
    %286 = tpu.concatenate %0, %285, %0 in 0 : vector<1x1xf32>, vector<15x1xf32>, vector<1x1xf32> -> vector<17x1xf32>
    %c36 = arith.constant 36 : index
    %287 = memref.load %arg4[%c36] : memref<96xf32, #tpu.memory_space<smem>>
    %288 = vector.broadcast %287 : f32 to vector<31x1xf32>
    %289 = arith.mulf %288, %98 : vector<31x1xf32>
    %c37 = arith.constant 37 : index
    %290 = memref.load %arg4[%c37] : memref<96xf32, #tpu.memory_space<smem>>
    %291 = vector.broadcast %290 : f32 to vector<31x1xf32>
    %292 = arith.mulf %291, %99 : vector<31x1xf32>
    %293 = arith.addf %289, %292 : vector<31x1xf32>
    %c38 = arith.constant 38 : index
    %294 = memref.load %arg4[%c38] : memref<96xf32, #tpu.memory_space<smem>>
    %295 = vector.broadcast %294 : f32 to vector<31x1xf32>
    %296 = arith.mulf %295, %100 : vector<31x1xf32>
    %297 = arith.addf %293, %296 : vector<31x1xf32>
    %c39 = arith.constant 39 : index
    %298 = memref.load %arg4[%c39] : memref<96xf32, #tpu.memory_space<smem>>
    %299 = vector.broadcast %298 : f32 to vector<31x1xf32>
    %300 = arith.mulf %299, %101 : vector<31x1xf32>
    %301 = arith.addf %297, %300 : vector<31x1xf32>
    %c40 = arith.constant 40 : index
    %302 = memref.load %arg4[%c40] : memref<96xf32, #tpu.memory_space<smem>>
    %303 = vector.broadcast %302 : f32 to vector<31x1xf32>
    %304 = arith.mulf %303, %102 : vector<31x1xf32>
    %305 = arith.addf %301, %304 : vector<31x1xf32>
    %c41 = arith.constant 41 : index
    %306 = memref.load %arg4[%c41] : memref<96xf32, #tpu.memory_space<smem>>
    %307 = vector.broadcast %306 : f32 to vector<31x1xf32>
    %308 = arith.mulf %307, %103 : vector<31x1xf32>
    %309 = arith.addf %305, %308 : vector<31x1xf32>
    %c42 = arith.constant 42 : index
    %310 = memref.load %arg4[%c42] : memref<96xf32, #tpu.memory_space<smem>>
    %311 = vector.broadcast %310 : f32 to vector<31x1xf32>
    %312 = arith.mulf %311, %104 : vector<31x1xf32>
    %313 = arith.addf %309, %312 : vector<31x1xf32>
    %c43 = arith.constant 43 : index
    %314 = memref.load %arg4[%c43] : memref<96xf32, #tpu.memory_space<smem>>
    %315 = vector.broadcast %314 : f32 to vector<31x1xf32>
    %316 = arith.mulf %315, %105 : vector<31x1xf32>
    %317 = arith.addf %313, %316 : vector<31x1xf32>
    %c44 = arith.constant 44 : index
    %318 = memref.load %arg4[%c44] : memref<96xf32, #tpu.memory_space<smem>>
    %319 = vector.broadcast %318 : f32 to vector<31x1xf32>
    %320 = arith.mulf %319, %106 : vector<31x1xf32>
    %321 = arith.addf %317, %320 : vector<31x1xf32>
    %c45 = arith.constant 45 : index
    %322 = memref.load %arg4[%c45] : memref<96xf32, #tpu.memory_space<smem>>
    %323 = vector.broadcast %322 : f32 to vector<31x1xf32>
    %324 = arith.mulf %323, %107 : vector<31x1xf32>
    %325 = arith.addf %321, %324 : vector<31x1xf32>
    %c46 = arith.constant 46 : index
    %326 = memref.load %arg4[%c46] : memref<96xf32, #tpu.memory_space<smem>>
    %327 = vector.broadcast %326 : f32 to vector<31x1xf32>
    %328 = arith.mulf %327, %108 : vector<31x1xf32>
    %329 = arith.addf %325, %328 : vector<31x1xf32>
    %c47 = arith.constant 47 : index
    %330 = memref.load %arg4[%c47] : memref<96xf32, #tpu.memory_space<smem>>
    %331 = vector.broadcast %330 : f32 to vector<31x1xf32>
    %332 = arith.mulf %331, %109 : vector<31x1xf32>
    %333 = arith.addf %329, %332 : vector<31x1xf32>
    %c3_85 = arith.constant 3 : index
    %334 = memref.load %arg5[%c3_85] : memref<8xf32, #tpu.memory_space<smem>>
    %335 = vector.broadcast %334 : f32 to vector<31x1xf32>
    %336 = arith.addf %333, %335 : vector<31x1xf32>
    %cst_86 = arith.constant 0.000000e+00 : f32
    %337 = vector.broadcast %cst_86 : f32 to vector<31x1xf32>
    %338 = arith.maximumf %336, %337 : vector<31x1xf32>
    %c0_87 = arith.constant 0 : index
    %c0_88 = arith.constant 0 : index
    %339 = vector.load %arg9[%c0_87, %c0_88] : memref<64x1xf32, #tpu.memory_space<vmem>>, vector<31x1xf32>
    tpu.vector_store %arg9[%c0_87, %c0_88], %338 {strides = array<i32>} : memref<64x1xf32, #tpu.memory_space<vmem>>, vector<31x1xf32>,
    %c0_89 = arith.constant 0 : index
    %c0_90 = arith.constant 0 : index
    %340 = tpu.strided_load %arg9[%c0_89, %c0_90] {strides = array<i32: 2, 1>} : memref<64x1xf32, #tpu.memory_space<vmem>>, vector<15x1xf32>
    %c1_91 = arith.constant 1 : index
    %c0_92 = arith.constant 0 : index
    %341 = tpu.strided_load %arg9[%c1_91, %c0_92] {strides = array<i32: 2, 1>} : memref<64x1xf32, #tpu.memory_space<vmem>>, vector<15x1xf32>
    %c2_93 = arith.constant 2 : index
    %c0_94 = arith.constant 0 : index
    %342 = tpu.strided_load %arg9[%c2_93, %c0_94] {strides = array<i32: 2, 1>} : memref<64x1xf32, #tpu.memory_space<vmem>>, vector<15x1xf32>
    %343 = arith.maximumf %340, %341 : vector<15x1xf32>
    %344 = arith.maximumf %343, %342 : vector<15x1xf32>
    %345 = tpu.concatenate %0, %344, %0 in 0 : vector<1x1xf32>, vector<15x1xf32>, vector<1x1xf32> -> vector<17x1xf32>
    %c48 = arith.constant 48 : index
    %346 = memref.load %arg4[%c48] : memref<96xf32, #tpu.memory_space<smem>>
    %347 = vector.broadcast %346 : f32 to vector<31x1xf32>
    %348 = arith.mulf %347, %98 : vector<31x1xf32>
    %c49 = arith.constant 49 : index
    %349 = memref.load %arg4[%c49] : memref<96xf32, #tpu.memory_space<smem>>
    %350 = vector.broadcast %349 : f32 to vector<31x1xf32>
    %351 = arith.mulf %350, %99 : vector<31x1xf32>
    %352 = arith.addf %348, %351 : vector<31x1xf32>
    %c50 = arith.constant 50 : index
    %353 = memref.load %arg4[%c50] : memref<96xf32, #tpu.memory_space<smem>>
    %354 = vector.broadcast %353 : f32 to vector<31x1xf32>
    %355 = arith.mulf %354, %100 : vector<31x1xf32>
    %356 = arith.addf %352, %355 : vector<31x1xf32>
    %c51 = arith.constant 51 : index
    %357 = memref.load %arg4[%c51] : memref<96xf32, #tpu.memory_space<smem>>
    %358 = vector.broadcast %357 : f32 to vector<31x1xf32>
    %359 = arith.mulf %358, %101 : vector<31x1xf32>
    %360 = arith.addf %356, %359 : vector<31x1xf32>
    %c52 = arith.constant 52 : index
    %361 = memref.load %arg4[%c52] : memref<96xf32, #tpu.memory_space<smem>>
    %362 = vector.broadcast %361 : f32 to vector<31x1xf32>
    %363 = arith.mulf %362, %102 : vector<31x1xf32>
    %364 = arith.addf %360, %363 : vector<31x1xf32>
    %c53 = arith.constant 53 : index
    %365 = memref.load %arg4[%c53] : memref<96xf32, #tpu.memory_space<smem>>
    %366 = vector.broadcast %365 : f32 to vector<31x1xf32>
    %367 = arith.mulf %366, %103 : vector<31x1xf32>
    %368 = arith.addf %364, %367 : vector<31x1xf32>
    %c54 = arith.constant 54 : index
    %369 = memref.load %arg4[%c54] : memref<96xf32, #tpu.memory_space<smem>>
    %370 = vector.broadcast %369 : f32 to vector<31x1xf32>
    %371 = arith.mulf %370, %104 : vector<31x1xf32>
    %372 = arith.addf %368, %371 : vector<31x1xf32>
    %c55 = arith.constant 55 : index
    %373 = memref.load %arg4[%c55] : memref<96xf32, #tpu.memory_space<smem>>
    %374 = vector.broadcast %373 : f32 to vector<31x1xf32>
    %375 = arith.mulf %374, %105 : vector<31x1xf32>
    %376 = arith.addf %372, %375 : vector<31x1xf32>
    %c56 = arith.constant 56 : index
    %377 = memref.load %arg4[%c56] : memref<96xf32, #tpu.memory_space<smem>>
    %378 = vector.broadcast %377 : f32 to vector<31x1xf32>
    %379 = arith.mulf %378, %106 : vector<31x1xf32>
    %380 = arith.addf %376, %379 : vector<31x1xf32>
    %c57 = arith.constant 57 : index
    %381 = memref.load %arg4[%c57] : memref<96xf32, #tpu.memory_space<smem>>
    %382 = vector.broadcast %381 : f32 to vector<31x1xf32>
    %383 = arith.mulf %382, %107 : vector<31x1xf32>
    %384 = arith.addf %380, %383 : vector<31x1xf32>
    %c58 = arith.constant 58 : index
    %385 = memref.load %arg4[%c58] : memref<96xf32, #tpu.memory_space<smem>>
    %386 = vector.broadcast %385 : f32 to vector<31x1xf32>
    %387 = arith.mulf %386, %108 : vector<31x1xf32>
    %388 = arith.addf %384, %387 : vector<31x1xf32>
    %c59 = arith.constant 59 : index
    %389 = memref.load %arg4[%c59] : memref<96xf32, #tpu.memory_space<smem>>
    %390 = vector.broadcast %389 : f32 to vector<31x1xf32>
    %391 = arith.mulf %390, %109 : vector<31x1xf32>
    %392 = arith.addf %388, %391 : vector<31x1xf32>
    %c4_95 = arith.constant 4 : index
    %393 = memref.load %arg5[%c4_95] : memref<8xf32, #tpu.memory_space<smem>>
    %394 = vector.broadcast %393 : f32 to vector<31x1xf32>
    %395 = arith.addf %392, %394 : vector<31x1xf32>
    %cst_96 = arith.constant 0.000000e+00 : f32
    %396 = vector.broadcast %cst_96 : f32 to vector<31x1xf32>
    %397 = arith.maximumf %395, %396 : vector<31x1xf32>
    %c0_97 = arith.constant 0 : index
    %c0_98 = arith.constant 0 : index
    %398 = vector.load %arg9[%c0_97, %c0_98] : memref<64x1xf32, #tpu.memory_space<vmem>>, vector<31x1xf32>
    tpu.vector_store %arg9[%c0_97, %c0_98], %397 {strides = array<i32>} : memref<64x1xf32, #tpu.memory_space<vmem>>, vector<31x1xf32>,
    %c0_99 = arith.constant 0 : index
    %c0_100 = arith.constant 0 : index
    %399 = tpu.strided_load %arg9[%c0_99, %c0_100] {strides = array<i32: 2, 1>} : memref<64x1xf32, #tpu.memory_space<vmem>>, vector<15x1xf32>
    %c1_101 = arith.constant 1 : index
    %c0_102 = arith.constant 0 : index
    %400 = tpu.strided_load %arg9[%c1_101, %c0_102] {strides = array<i32: 2, 1>} : memref<64x1xf32, #tpu.memory_space<vmem>>, vector<15x1xf32>
    %c2_103 = arith.constant 2 : index
    %c0_104 = arith.constant 0 : index
    %401 = tpu.strided_load %arg9[%c2_103, %c0_104] {strides = array<i32: 2, 1>} : memref<64x1xf32, #tpu.memory_space<vmem>>, vector<15x1xf32>
    %402 = arith.maximumf %399, %400 : vector<15x1xf32>
    %403 = arith.maximumf %402, %401 : vector<15x1xf32>
    %404 = tpu.concatenate %0, %403, %0 in 0 : vector<1x1xf32>, vector<15x1xf32>, vector<1x1xf32> -> vector<17x1xf32>
    %c60 = arith.constant 60 : index
    %405 = memref.load %arg4[%c60] : memref<96xf32, #tpu.memory_space<smem>>
    %406 = vector.broadcast %405 : f32 to vector<31x1xf32>
    %407 = arith.mulf %406, %98 : vector<31x1xf32>
    %c61 = arith.constant 61 : index
    %408 = memref.load %arg4[%c61] : memref<96xf32, #tpu.memory_space<smem>>
    %409 = vector.broadcast %408 : f32 to vector<31x1xf32>
    %410 = arith.mulf %409, %99 : vector<31x1xf32>
    %411 = arith.addf %407, %410 : vector<31x1xf32>
    %c62 = arith.constant 62 : index
    %412 = memref.load %arg4[%c62] : memref<96xf32, #tpu.memory_space<smem>>
    %413 = vector.broadcast %412 : f32 to vector<31x1xf32>
    %414 = arith.mulf %413, %100 : vector<31x1xf32>
    %415 = arith.addf %411, %414 : vector<31x1xf32>
    %c63 = arith.constant 63 : index
    %416 = memref.load %arg4[%c63] : memref<96xf32, #tpu.memory_space<smem>>
    %417 = vector.broadcast %416 : f32 to vector<31x1xf32>
    %418 = arith.mulf %417, %101 : vector<31x1xf32>
    %419 = arith.addf %415, %418 : vector<31x1xf32>
    %c64 = arith.constant 64 : index
    %420 = memref.load %arg4[%c64] : memref<96xf32, #tpu.memory_space<smem>>
    %421 = vector.broadcast %420 : f32 to vector<31x1xf32>
    %422 = arith.mulf %421, %102 : vector<31x1xf32>
    %423 = arith.addf %419, %422 : vector<31x1xf32>
    %c65 = arith.constant 65 : index
    %424 = memref.load %arg4[%c65] : memref<96xf32, #tpu.memory_space<smem>>
    %425 = vector.broadcast %424 : f32 to vector<31x1xf32>
    %426 = arith.mulf %425, %103 : vector<31x1xf32>
    %427 = arith.addf %423, %426 : vector<31x1xf32>
    %c66 = arith.constant 66 : index
    %428 = memref.load %arg4[%c66] : memref<96xf32, #tpu.memory_space<smem>>
    %429 = vector.broadcast %428 : f32 to vector<31x1xf32>
    %430 = arith.mulf %429, %104 : vector<31x1xf32>
    %431 = arith.addf %427, %430 : vector<31x1xf32>
    %c67 = arith.constant 67 : index
    %432 = memref.load %arg4[%c67] : memref<96xf32, #tpu.memory_space<smem>>
    %433 = vector.broadcast %432 : f32 to vector<31x1xf32>
    %434 = arith.mulf %433, %105 : vector<31x1xf32>
    %435 = arith.addf %431, %434 : vector<31x1xf32>
    %c68 = arith.constant 68 : index
    %436 = memref.load %arg4[%c68] : memref<96xf32, #tpu.memory_space<smem>>
    %437 = vector.broadcast %436 : f32 to vector<31x1xf32>
    %438 = arith.mulf %437, %106 : vector<31x1xf32>
    %439 = arith.addf %435, %438 : vector<31x1xf32>
    %c69 = arith.constant 69 : index
    %440 = memref.load %arg4[%c69] : memref<96xf32, #tpu.memory_space<smem>>
    %441 = vector.broadcast %440 : f32 to vector<31x1xf32>
    %442 = arith.mulf %441, %107 : vector<31x1xf32>
    %443 = arith.addf %439, %442 : vector<31x1xf32>
    %c70 = arith.constant 70 : index
    %444 = memref.load %arg4[%c70] : memref<96xf32, #tpu.memory_space<smem>>
    %445 = vector.broadcast %444 : f32 to vector<31x1xf32>
    %446 = arith.mulf %445, %108 : vector<31x1xf32>
    %447 = arith.addf %443, %446 : vector<31x1xf32>
    %c71 = arith.constant 71 : index
    %448 = memref.load %arg4[%c71] : memref<96xf32, #tpu.memory_space<smem>>
    %449 = vector.broadcast %448 : f32 to vector<31x1xf32>
    %450 = arith.mulf %449, %109 : vector<31x1xf32>
    %451 = arith.addf %447, %450 : vector<31x1xf32>
    %c5_105 = arith.constant 5 : index
    %452 = memref.load %arg5[%c5_105] : memref<8xf32, #tpu.memory_space<smem>>
    %453 = vector.broadcast %452 : f32 to vector<31x1xf32>
    %454 = arith.addf %451, %453 : vector<31x1xf32>
    %cst_106 = arith.constant 0.000000e+00 : f32
    %455 = vector.broadcast %cst_106 : f32 to vector<31x1xf32>
    %456 = arith.maximumf %454, %455 : vector<31x1xf32>
    %c0_107 = arith.constant 0 : index
    %c0_108 = arith.constant 0 : index
    %457 = vector.load %arg9[%c0_107, %c0_108] : memref<64x1xf32, #tpu.memory_space<vmem>>, vector<31x1xf32>
    tpu.vector_store %arg9[%c0_107, %c0_108], %456 {strides = array<i32>} : memref<64x1xf32, #tpu.memory_space<vmem>>, vector<31x1xf32>,
    %c0_109 = arith.constant 0 : index
    %c0_110 = arith.constant 0 : index
    %458 = tpu.strided_load %arg9[%c0_109, %c0_110] {strides = array<i32: 2, 1>} : memref<64x1xf32, #tpu.memory_space<vmem>>, vector<15x1xf32>
    %c1_111 = arith.constant 1 : index
    %c0_112 = arith.constant 0 : index
    %459 = tpu.strided_load %arg9[%c1_111, %c0_112] {strides = array<i32: 2, 1>} : memref<64x1xf32, #tpu.memory_space<vmem>>, vector<15x1xf32>
    %c2_113 = arith.constant 2 : index
    %c0_114 = arith.constant 0 : index
    %460 = tpu.strided_load %arg9[%c2_113, %c0_114] {strides = array<i32: 2, 1>} : memref<64x1xf32, #tpu.memory_space<vmem>>, vector<15x1xf32>
    %461 = arith.maximumf %458, %459 : vector<15x1xf32>
    %462 = arith.maximumf %461, %460 : vector<15x1xf32>
    %463 = tpu.concatenate %0, %462, %0 in 0 : vector<1x1xf32>, vector<15x1xf32>, vector<1x1xf32> -> vector<17x1xf32>
    %c72 = arith.constant 72 : index
    %464 = memref.load %arg4[%c72] : memref<96xf32, #tpu.memory_space<smem>>
    %465 = vector.broadcast %464 : f32 to vector<31x1xf32>
    %466 = arith.mulf %465, %98 : vector<31x1xf32>
    %c73 = arith.constant 73 : index
    %467 = memref.load %arg4[%c73] : memref<96xf32, #tpu.memory_space<smem>>
    %468 = vector.broadcast %467 : f32 to vector<31x1xf32>
    %469 = arith.mulf %468, %99 : vector<31x1xf32>
    %470 = arith.addf %466, %469 : vector<31x1xf32>
    %c74 = arith.constant 74 : index
    %471 = memref.load %arg4[%c74] : memref<96xf32, #tpu.memory_space<smem>>
    %472 = vector.broadcast %471 : f32 to vector<31x1xf32>
    %473 = arith.mulf %472, %100 : vector<31x1xf32>
    %474 = arith.addf %470, %473 : vector<31x1xf32>
    %c75 = arith.constant 75 : index
    %475 = memref.load %arg4[%c75] : memref<96xf32, #tpu.memory_space<smem>>
    %476 = vector.broadcast %475 : f32 to vector<31x1xf32>
    %477 = arith.mulf %476, %101 : vector<31x1xf32>
    %478 = arith.addf %474, %477 : vector<31x1xf32>
    %c76 = arith.constant 76 : index
    %479 = memref.load %arg4[%c76] : memref<96xf32, #tpu.memory_space<smem>>
    %480 = vector.broadcast %479 : f32 to vector<31x1xf32>
    %481 = arith.mulf %480, %102 : vector<31x1xf32>
    %482 = arith.addf %478, %481 : vector<31x1xf32>
    %c77 = arith.constant 77 : index
    %483 = memref.load %arg4[%c77] : memref<96xf32, #tpu.memory_space<smem>>
    %484 = vector.broadcast %483 : f32 to vector<31x1xf32>
    %485 = arith.mulf %484, %103 : vector<31x1xf32>
    %486 = arith.addf %482, %485 : vector<31x1xf32>
    %c78 = arith.constant 78 : index
    %487 = memref.load %arg4[%c78] : memref<96xf32, #tpu.memory_space<smem>>
    %488 = vector.broadcast %487 : f32 to vector<31x1xf32>
    %489 = arith.mulf %488, %104 : vector<31x1xf32>
    %490 = arith.addf %486, %489 : vector<31x1xf32>
    %c79 = arith.constant 79 : index
    %491 = memref.load %arg4[%c79] : memref<96xf32, #tpu.memory_space<smem>>
    %492 = vector.broadcast %491 : f32 to vector<31x1xf32>
    %493 = arith.mulf %492, %105 : vector<31x1xf32>
    %494 = arith.addf %490, %493 : vector<31x1xf32>
    %c80 = arith.constant 80 : index
    %495 = memref.load %arg4[%c80] : memref<96xf32, #tpu.memory_space<smem>>
    %496 = vector.broadcast %495 : f32 to vector<31x1xf32>
    %497 = arith.mulf %496, %106 : vector<31x1xf32>
    %498 = arith.addf %494, %497 : vector<31x1xf32>
    %c81 = arith.constant 81 : index
    %499 = memref.load %arg4[%c81] : memref<96xf32, #tpu.memory_space<smem>>
    %500 = vector.broadcast %499 : f32 to vector<31x1xf32>
    %501 = arith.mulf %500, %107 : vector<31x1xf32>
    %502 = arith.addf %498, %501 : vector<31x1xf32>
    %c82 = arith.constant 82 : index
    %503 = memref.load %arg4[%c82] : memref<96xf32, #tpu.memory_space<smem>>
    %504 = vector.broadcast %503 : f32 to vector<31x1xf32>
    %505 = arith.mulf %504, %108 : vector<31x1xf32>
    %506 = arith.addf %502, %505 : vector<31x1xf32>
    %c83 = arith.constant 83 : index
    %507 = memref.load %arg4[%c83] : memref<96xf32, #tpu.memory_space<smem>>
    %508 = vector.broadcast %507 : f32 to vector<31x1xf32>
    %509 = arith.mulf %508, %109 : vector<31x1xf32>
    %510 = arith.addf %506, %509 : vector<31x1xf32>
    %c6_115 = arith.constant 6 : index
    %511 = memref.load %arg5[%c6_115] : memref<8xf32, #tpu.memory_space<smem>>
    %512 = vector.broadcast %511 : f32 to vector<31x1xf32>
    %513 = arith.addf %510, %512 : vector<31x1xf32>
    %cst_116 = arith.constant 0.000000e+00 : f32
    %514 = vector.broadcast %cst_116 : f32 to vector<31x1xf32>
    %515 = arith.maximumf %513, %514 : vector<31x1xf32>
    %c0_117 = arith.constant 0 : index
    %c0_118 = arith.constant 0 : index
    %516 = vector.load %arg9[%c0_117, %c0_118] : memref<64x1xf32, #tpu.memory_space<vmem>>, vector<31x1xf32>
    tpu.vector_store %arg9[%c0_117, %c0_118], %515 {strides = array<i32>} : memref<64x1xf32, #tpu.memory_space<vmem>>, vector<31x1xf32>,
    %c0_119 = arith.constant 0 : index
    %c0_120 = arith.constant 0 : index
    %517 = tpu.strided_load %arg9[%c0_119, %c0_120] {strides = array<i32: 2, 1>} : memref<64x1xf32, #tpu.memory_space<vmem>>, vector<15x1xf32>
    %c1_121 = arith.constant 1 : index
    %c0_122 = arith.constant 0 : index
    %518 = tpu.strided_load %arg9[%c1_121, %c0_122] {strides = array<i32: 2, 1>} : memref<64x1xf32, #tpu.memory_space<vmem>>, vector<15x1xf32>
    %c2_123 = arith.constant 2 : index
    %c0_124 = arith.constant 0 : index
    %519 = tpu.strided_load %arg9[%c2_123, %c0_124] {strides = array<i32: 2, 1>} : memref<64x1xf32, #tpu.memory_space<vmem>>, vector<15x1xf32>
    %520 = arith.maximumf %517, %518 : vector<15x1xf32>
    %521 = arith.maximumf %520, %519 : vector<15x1xf32>
    %522 = tpu.concatenate %0, %521, %0 in 0 : vector<1x1xf32>, vector<15x1xf32>, vector<1x1xf32> -> vector<17x1xf32>
    %c84 = arith.constant 84 : index
    %523 = memref.load %arg4[%c84] : memref<96xf32, #tpu.memory_space<smem>>
    %524 = vector.broadcast %523 : f32 to vector<31x1xf32>
    %525 = arith.mulf %524, %98 : vector<31x1xf32>
    %c85 = arith.constant 85 : index
    %526 = memref.load %arg4[%c85] : memref<96xf32, #tpu.memory_space<smem>>
    %527 = vector.broadcast %526 : f32 to vector<31x1xf32>
    %528 = arith.mulf %527, %99 : vector<31x1xf32>
    %529 = arith.addf %525, %528 : vector<31x1xf32>
    %c86 = arith.constant 86 : index
    %530 = memref.load %arg4[%c86] : memref<96xf32, #tpu.memory_space<smem>>
    %531 = vector.broadcast %530 : f32 to vector<31x1xf32>
    %532 = arith.mulf %531, %100 : vector<31x1xf32>
    %533 = arith.addf %529, %532 : vector<31x1xf32>
    %c87 = arith.constant 87 : index
    %534 = memref.load %arg4[%c87] : memref<96xf32, #tpu.memory_space<smem>>
    %535 = vector.broadcast %534 : f32 to vector<31x1xf32>
    %536 = arith.mulf %535, %101 : vector<31x1xf32>
    %537 = arith.addf %533, %536 : vector<31x1xf32>
    %c88 = arith.constant 88 : index
    %538 = memref.load %arg4[%c88] : memref<96xf32, #tpu.memory_space<smem>>
    %539 = vector.broadcast %538 : f32 to vector<31x1xf32>
    %540 = arith.mulf %539, %102 : vector<31x1xf32>
    %541 = arith.addf %537, %540 : vector<31x1xf32>
    %c89 = arith.constant 89 : index
    %542 = memref.load %arg4[%c89] : memref<96xf32, #tpu.memory_space<smem>>
    %543 = vector.broadcast %542 : f32 to vector<31x1xf32>
    %544 = arith.mulf %543, %103 : vector<31x1xf32>
    %545 = arith.addf %541, %544 : vector<31x1xf32>
    %c90 = arith.constant 90 : index
    %546 = memref.load %arg4[%c90] : memref<96xf32, #tpu.memory_space<smem>>
    %547 = vector.broadcast %546 : f32 to vector<31x1xf32>
    %548 = arith.mulf %547, %104 : vector<31x1xf32>
    %549 = arith.addf %545, %548 : vector<31x1xf32>
    %c91 = arith.constant 91 : index
    %550 = memref.load %arg4[%c91] : memref<96xf32, #tpu.memory_space<smem>>
    %551 = vector.broadcast %550 : f32 to vector<31x1xf32>
    %552 = arith.mulf %551, %105 : vector<31x1xf32>
    %553 = arith.addf %549, %552 : vector<31x1xf32>
    %c92 = arith.constant 92 : index
    %554 = memref.load %arg4[%c92] : memref<96xf32, #tpu.memory_space<smem>>
    %555 = vector.broadcast %554 : f32 to vector<31x1xf32>
    %556 = arith.mulf %555, %106 : vector<31x1xf32>
    %557 = arith.addf %553, %556 : vector<31x1xf32>
    %c93 = arith.constant 93 : index
    %558 = memref.load %arg4[%c93] : memref<96xf32, #tpu.memory_space<smem>>
    %559 = vector.broadcast %558 : f32 to vector<31x1xf32>
    %560 = arith.mulf %559, %107 : vector<31x1xf32>
    %561 = arith.addf %557, %560 : vector<31x1xf32>
    %c94 = arith.constant 94 : index
    %562 = memref.load %arg4[%c94] : memref<96xf32, #tpu.memory_space<smem>>
    %563 = vector.broadcast %562 : f32 to vector<31x1xf32>
    %564 = arith.mulf %563, %108 : vector<31x1xf32>
    %565 = arith.addf %561, %564 : vector<31x1xf32>
    %c95 = arith.constant 95 : index
    %566 = memref.load %arg4[%c95] : memref<96xf32, #tpu.memory_space<smem>>
    %567 = vector.broadcast %566 : f32 to vector<31x1xf32>
    %568 = arith.mulf %567, %109 : vector<31x1xf32>
    %569 = arith.addf %565, %568 : vector<31x1xf32>
    %c7_125 = arith.constant 7 : index
    %570 = memref.load %arg5[%c7_125] : memref<8xf32, #tpu.memory_space<smem>>
    %571 = vector.broadcast %570 : f32 to vector<31x1xf32>
    %572 = arith.addf %569, %571 : vector<31x1xf32>
    %cst_126 = arith.constant 0.000000e+00 : f32
    %573 = vector.broadcast %cst_126 : f32 to vector<31x1xf32>
    %574 = arith.maximumf %572, %573 : vector<31x1xf32>
    %c0_127 = arith.constant 0 : index
    %c0_128 = arith.constant 0 : index
    %575 = vector.load %arg9[%c0_127, %c0_128] : memref<64x1xf32, #tpu.memory_space<vmem>>, vector<31x1xf32>
    tpu.vector_store %arg9[%c0_127, %c0_128], %574 {strides = array<i32>} : memref<64x1xf32, #tpu.memory_space<vmem>>, vector<31x1xf32>,
    %c0_129 = arith.constant 0 : index
    %c0_130 = arith.constant 0 : index
    %576 = tpu.strided_load %arg9[%c0_129, %c0_130] {strides = array<i32: 2, 1>} : memref<64x1xf32, #tpu.memory_space<vmem>>, vector<15x1xf32>
    %c1_131 = arith.constant 1 : index
    %c0_132 = arith.constant 0 : index
    %577 = tpu.strided_load %arg9[%c1_131, %c0_132] {strides = array<i32: 2, 1>} : memref<64x1xf32, #tpu.memory_space<vmem>>, vector<15x1xf32>
    %c2_133 = arith.constant 2 : index
    %c0_134 = arith.constant 0 : index
    %578 = tpu.strided_load %arg9[%c2_133, %c0_134] {strides = array<i32: 2, 1>} : memref<64x1xf32, #tpu.memory_space<vmem>>, vector<15x1xf32>
    %579 = arith.maximumf %576, %577 : vector<15x1xf32>
    %580 = arith.maximumf %579, %578 : vector<15x1xf32>
    %581 = tpu.concatenate %0, %580, %0 in 0 : vector<1x1xf32>, vector<15x1xf32>, vector<1x1xf32> -> vector<17x1xf32>
    %cst_135 = arith.constant 0.000000e+00 : f32
    %582 = vector.broadcast %cst_135 : f32 to vector<1x1xf32>
    %c0_136 = arith.constant 0 : index
    %c0_137 = arith.constant 0 : index
    %c0_138 = arith.constant 0 : index
    %583 = vector.load %arg6[%c0_136, %c0_137, %c0_138] : memref<8x17x1xf32, #tpu.memory_space<vmem>>, vector<1x17x1xf32>
    %584 = vector.shape_cast %583 : vector<1x17x1xf32> to vector<17x1xf32>
    %585 = arith.mulf %168, %584 : vector<17x1xf32>
    %cst_139 = arith.constant dense<0.000000e+00> : vector<1xf32>
    %586 = vector.multi_reduction <add>, %585, %cst_139 [0] : vector<17x1xf32> to vector<1xf32>
    %587 = vector.shape_cast %586 : vector<1xf32> to vector<1x1xf32>
    %588 = arith.addf %582, %587 : vector<1x1xf32>
    %c1_140 = arith.constant 1 : index
    %c0_141 = arith.constant 0 : index
    %c0_142 = arith.constant 0 : index
    %589 = vector.load %arg6[%c1_140, %c0_141, %c0_142] : memref<8x17x1xf32, #tpu.memory_space<vmem>>, vector<1x17x1xf32>
    %590 = vector.shape_cast %589 : vector<1x17x1xf32> to vector<17x1xf32>
    %591 = arith.mulf %227, %590 : vector<17x1xf32>
    %cst_143 = arith.constant dense<0.000000e+00> : vector<1xf32>
    %592 = vector.multi_reduction <add>, %591, %cst_143 [0] : vector<17x1xf32> to vector<1xf32>
    %593 = vector.shape_cast %592 : vector<1xf32> to vector<1x1xf32>
    %594 = arith.addf %588, %593 : vector<1x1xf32>
    %c2_144 = arith.constant 2 : index
    %c0_145 = arith.constant 0 : index
    %c0_146 = arith.constant 0 : index
    %595 = vector.load %arg6[%c2_144, %c0_145, %c0_146] : memref<8x17x1xf32, #tpu.memory_space<vmem>>, vector<1x17x1xf32>
    %596 = vector.shape_cast %595 : vector<1x17x1xf32> to vector<17x1xf32>
    %597 = arith.mulf %286, %596 : vector<17x1xf32>
    %cst_147 = arith.constant dense<0.000000e+00> : vector<1xf32>
    %598 = vector.multi_reduction <add>, %597, %cst_147 [0] : vector<17x1xf32> to vector<1xf32>
    %599 = vector.shape_cast %598 : vector<1xf32> to vector<1x1xf32>
    %600 = arith.addf %594, %599 : vector<1x1xf32>
    %c3_148 = arith.constant 3 : index
    %c0_149 = arith.constant 0 : index
    %c0_150 = arith.constant 0 : index
    %601 = vector.load %arg6[%c3_148, %c0_149, %c0_150] : memref<8x17x1xf32, #tpu.memory_space<vmem>>, vector<1x17x1xf32>
    %602 = vector.shape_cast %601 : vector<1x17x1xf32> to vector<17x1xf32>
    %603 = arith.mulf %345, %602 : vector<17x1xf32>
    %cst_151 = arith.constant dense<0.000000e+00> : vector<1xf32>
    %604 = vector.multi_reduction <add>, %603, %cst_151 [0] : vector<17x1xf32> to vector<1xf32>
    %605 = vector.shape_cast %604 : vector<1xf32> to vector<1x1xf32>
    %606 = arith.addf %600, %605 : vector<1x1xf32>
    %c4_152 = arith.constant 4 : index
    %c0_153 = arith.constant 0 : index
    %c0_154 = arith.constant 0 : index
    %607 = vector.load %arg6[%c4_152, %c0_153, %c0_154] : memref<8x17x1xf32, #tpu.memory_space<vmem>>, vector<1x17x1xf32>
    %608 = vector.shape_cast %607 : vector<1x17x1xf32> to vector<17x1xf32>
    %609 = arith.mulf %404, %608 : vector<17x1xf32>
    %cst_155 = arith.constant dense<0.000000e+00> : vector<1xf32>
    %610 = vector.multi_reduction <add>, %609, %cst_155 [0] : vector<17x1xf32> to vector<1xf32>
    %611 = vector.shape_cast %610 : vector<1xf32> to vector<1x1xf32>
    %612 = arith.addf %606, %611 : vector<1x1xf32>
    %c5_156 = arith.constant 5 : index
    %c0_157 = arith.constant 0 : index
    %c0_158 = arith.constant 0 : index
    %613 = vector.load %arg6[%c5_156, %c0_157, %c0_158] : memref<8x17x1xf32, #tpu.memory_space<vmem>>, vector<1x17x1xf32>
    %614 = vector.shape_cast %613 : vector<1x17x1xf32> to vector<17x1xf32>
    %615 = arith.mulf %463, %614 : vector<17x1xf32>
    %cst_159 = arith.constant dense<0.000000e+00> : vector<1xf32>
    %616 = vector.multi_reduction <add>, %615, %cst_159 [0] : vector<17x1xf32> to vector<1xf32>
    %617 = vector.shape_cast %616 : vector<1xf32> to vector<1x1xf32>
    %618 = arith.addf %612, %617 : vector<1x1xf32>
    %c6_160 = arith.constant 6 : index
    %c0_161 = arith.constant 0 : index
    %c0_162 = arith.constant 0 : index
    %619 = vector.load %arg6[%c6_160, %c0_161, %c0_162] : memref<8x17x1xf32, #tpu.memory_space<vmem>>, vector<1x17x1xf32>
    %620 = vector.shape_cast %619 : vector<1x17x1xf32> to vector<17x1xf32>
    %621 = arith.mulf %522, %620 : vector<17x1xf32>
    %cst_163 = arith.constant dense<0.000000e+00> : vector<1xf32>
    %622 = vector.multi_reduction <add>, %621, %cst_163 [0] : vector<17x1xf32> to vector<1xf32>
    %623 = vector.shape_cast %622 : vector<1xf32> to vector<1x1xf32>
    %624 = arith.addf %618, %623 : vector<1x1xf32>
    %c7_164 = arith.constant 7 : index
    %c0_165 = arith.constant 0 : index
    %c0_166 = arith.constant 0 : index
    %625 = vector.load %arg6[%c7_164, %c0_165, %c0_166] : memref<8x17x1xf32, #tpu.memory_space<vmem>>, vector<1x17x1xf32>
    %626 = vector.shape_cast %625 : vector<1x17x1xf32> to vector<17x1xf32>
    %627 = arith.mulf %581, %626 : vector<17x1xf32>
    %cst_167 = arith.constant dense<0.000000e+00> : vector<1xf32>
    %628 = vector.multi_reduction <add>, %627, %cst_167 [0] : vector<17x1xf32> to vector<1xf32>
    %629 = vector.shape_cast %628 : vector<1xf32> to vector<1x1xf32>
    %630 = arith.addf %624, %629 : vector<1x1xf32>
    %c0_168 = arith.constant 0 : index
    %631 = memref.load %arg7[%c0_168] : memref<1xf32, #tpu.memory_space<smem>>
    %632 = vector.broadcast %631 : f32 to vector<1x1xf32>
    %633 = arith.addf %630, %632 : vector<1x1xf32>
    %634 = vector.shape_cast %633 : vector<1x1xf32> to vector<1x1x1xf32>
    %c0_169 = arith.constant 0 : index
    %c0_170 = arith.constant 0 : index
    %c0_171 = arith.constant 0 : index
    %635 = vector.load %arg8[%c0_169, %c0_170, %c0_171] : memref<1x1x1xf32, #tpu.memory_space<vmem>>, vector<1x1x1xf32>
    tpu.vector_store %arg8[%c0_169, %c0_170, %c0_171], %634 {strides = array<i32>} : memref<1x1x1xf32, #tpu.memory_space<vmem>>, vector<1x1x1xf32>,
    return
  }
  func.func @transform_0(%arg0: i32) -> (i32, i32, i32) {
    %c0_i32 = arith.constant 0 : i32
    %c0_i32_0 = arith.constant 0 : i32
    %c0_i32_1 = arith.constant 0 : i32
    return %arg0, %c0_i32, %c0_i32_0 : i32, i32, i32
  }
  func.func @transform_1(%arg0: i32) -> i32 {
    %c0_i32 = arith.constant 0 : i32
    %c0_i32_0 = arith.constant 0 : i32
    return %c0_i32 : i32
  }
  func.func @transform_2(%arg0: i32) -> i32 {
    %c0_i32 = arith.constant 0 : i32
    %c0_i32_0 = arith.constant 0 : i32
    return %c0_i32 : i32
  }
  func.func @transform_3(%arg0: i32) -> i32 {
    %c0_i32 = arith.constant 0 : i32
    %c0_i32_0 = arith.constant 0 : i32
    return %c0_i32 : i32
  }
  func.func @transform_4(%arg0: i32) -> i32 {
    %c0_i32 = arith.constant 0 : i32
    %c0_i32_0 = arith.constant 0 : i32
    return %c0_i32 : i32
  }
  func.func @transform_5(%arg0: i32) -> (i32, i32, i32) {
    %c0_i32 = arith.constant 0 : i32
    %c0_i32_0 = arith.constant 0 : i32
    %c0_i32_1 = arith.constant 0 : i32
    %c0_i32_2 = arith.constant 0 : i32
    return %c0_i32, %c0_i32_0, %c0_i32_1 : i32, i32, i32
  }
  func.func @transform_6(%arg0: i32) -> i32 {
    %c0_i32 = arith.constant 0 : i32
    %c0_i32_0 = arith.constant 0 : i32
    return %c0_i32 : i32
  }
  func.func @transform_7(%arg0: i32) -> (i32, i32, i32) {
    %c0_i32 = arith.constant 0 : i32
    %c0_i32_0 = arith.constant 0 : i32
    %c0_i32_1 = arith.constant 0 : i32
    return %arg0, %c0_i32, %c0_i32_0 : i32, i32, i32
  }
}

</mosaic_0001>

<llo_original>
// kernel: distortion_detector_forward.1
$region0: #{distortion_detector_forward.1}
  #allocation0 [shape = 'u32[]', space=smem, size = 0x4, offset = 0x4, fixed_abs, tag = 'smem constant byte address 0x4 - core index']
  #allocation1 [shape = 'u32[144,128]{1,0:T(1,128)}', space=vmem, size = 0x12000, scoped, tag = 'internal scratch']
  #allocation2 [shape = 'f32[64,1]{1,0:T(8,128)}', space=vmem, size = 0x8000, scoped, tag = 'scratch operand']
  #allocation3 [shape = 'f32[1]{0:T(128)S(6)}', space=smem, size = 0x200, scoped, tag = 'scoped memory for distortion_detector_forward.1']
  %s0 = inlined_call_operand.vmem [shape: f32[2,66,1], index: 0, kind: input, shape index: {}]
  %s1 = inlined_call_operand.vmem [shape: f32[12], index: 1, kind: input, shape index: {}]
  %s2 = inlined_call_operand.vmem [shape: f32[4], index: 2, kind: input, shape index: {}]
  %s3 = inlined_call_operand.vmem [shape: f32[96], index: 3, kind: input, shape index: {}]
  %s4 = inlined_call_operand.vmem [shape: f32[8], index: 4, kind: input, shape index: {}]
  %s5 = inlined_call_operand.vmem [shape: f32[8,17,1], index: 5, kind: input, shape index: {}]
  %s6 = inlined_call_operand.<no memory space> [shape: f32[1], index: 6, kind: input, shape index: {}]
  %s7 = inlined_call_operand.vmem [shape: f32[2,1,1], index: 7, kind: output, shape index: {}]
  %s8 = sld [smem:[#allocation0]]
  $region77: #{distortion_detector_forward.1} parent=0
    _
  %s10 = ssub.s32 1, %s8
  %s11 = scalar_select 0, %s10, %s8
  %12 = sst [smem:[#allocation3]] %s6
  $region1: #{distortion_detector_forward.1} parent=0
    #allocation4 [shape = 'u8[512]{0}', space=smem, size = 0x200, scoped, tag = 'input window, operand 1, single buffered']
    #allocation5 [shape = 's32[2]{0}', space=sflag, size = 0x8, scoped, tag = 'scoped memory for distortion_detector_forward.1']
    #allocation6 [shape = 'u8[512]{0}', space=smem, size = 0x200, scoped, tag = 'input window, operand 2, single buffered']
    #allocation7 [shape = 's32[1]{0}', space=sflag, size = 0x4, scoped, tag = 'scoped memory for distortion_detector_forward.1']
    #allocation8 [shape = 'u8[512]{0}', space=smem, size = 0x200, scoped, tag = 'input window, operand 3, single buffered']
    #allocation9 [shape = 'u8[512]{0}', space=smem, size = 0x200, scoped, tag = 'input window, operand 4, single buffered']
    #allocation10 [shape = 's32[1]{0}', space=sflag, size = 0x4, scoped, tag = 'scoped memory for distortion_detector_forward.1']
    %13 = vsyncpa [#allocation5], 0
    %14 = vsyncpa [#allocation7], 0
    %15 = vsyncpa [#allocation10], 0
    loop: start=0, step=1, limit=4
    $region2: #{distortion_detector_forward.1} parent=1 // loop_pre_header
      _
    $region3: #{distortion_detector_forward.1} parent=1 // loop_header
      %s17 = sphi 0, %s21
      %p18 = scmp.ge.s32.totalorder %s17, 4
      %s27 = sphi 0, %s29
      %s30 = sphi 0, %s27
      %s31 = sphi 0, %s30
      %s47 = sphi 0, %s31
      %s51 = sphi 0, %s51
      %s53 = sphi 0, %s51
      %s54 = sphi 0, %s53
      %s68 = sphi 0, %s54
      %s72 = sphi 0, %s72
      %s74 = sphi 0, %s72
      %s75 = sphi 0, %s74
      %s89 = sphi 0, %s75
      %s93 = sphi 0, %s93
      %s95 = sphi 0, %s93
      %s96 = sphi 0, %s95
      %s110 = sphi 0, %s96
      %s114 = sphi 0, %s114
      %s116 = sphi 0, %s114
      %s117 = sphi 0, %s116
      %s131 = sphi 0, %s117
      %s135 = sphi 0, %s135
      %s137 = sphi 0, %s135
      %s138 = sphi 0, %s137
      %s152 = sphi 0, %s138
      %s156 = sphi 0, %s156
      %s158 = sphi 0, %s156
      %s159 = sphi 0, %s158
      %s173 = sphi 0, %s159
      %s179 = sphi 0, %s181
      %s182 = sphi 0, %s179
      %s183 = sphi 0, %s182
      %s199 = sphi 0, %s183
    $region4: #{distortion_detector_forward.1} parent=1 // loop_header_branch
      %20 = sbr.rel (%p18) target = $region8
    $region5: #{distortion_detector_forward.1} parent=1 // loop_body
      %s22 = ssub.s32 %s17, 1
      %s23 = ssub.s32 %s17, 2
      %s24 = sadd.s32 %s17, 1
      %s25 = ssub.s32 %s17, %s24
      %p26 = scmp.eq.s32.totalorder %s25, 0
      %s28 = sadd.s32 %s27, 1
      %s29 = scalar_select %p26, %s27, %s28
      %p32 = pneg %p26
      %p33 = scmp.eq.s32.totalorder %s17, 1
      %p34 = por %p32, %p33
      %p35 = scmp.ne.s32.totalorder %s27, %s30
      %p36 = scmp.eq.s32.totalorder %s17, 0
      %p37 = por %p35, %p36
      %p38 = scmp.ne.s32.totalorder %s27, %s30
      %p39 = scmp.eq.s32.totalorder %s22, 1
      %p40 = por %p38, %p39
      %p41 = scmp.ne.s32.totalorder %s30, %s31
      %p42 = scmp.eq.s32.totalorder %s22, 0
      %p43 = por %p41, %p42
      %p44 = scmp.ne.s32.totalorder %s30, %s31
      %p45 = scmp.eq.s32.totalorder %s23, 1
      %p46 = por %p44, %p45
      %p48 = scmp.ne.s32.totalorder %s31, %s47
      %p49 = scmp.eq.s32.totalorder %s23, 0
      %p50 = por %p48, %p49
      %s52 = sadd.s32 %s51, 1
      %p55 = scmp.eq.s32.totalorder %s17, 1
      %p56 = scmp.ne.s32.totalorder %s51, %s53
      %p57 = scmp.eq.s32.totalorder %s17, 0
      %p58 = por %p56, %p57
      %p59 = scmp.ne.s32.totalorder %s51, %s53
      %p60 = scmp.eq.s32.totalorder %s22, 1
      %p61 = por %p59, %p60
      %p62 = scmp.ne.s32.totalorder %s53, %s54
      %p63 = scmp.eq.s32.totalorder %s22, 0
      %p64 = por %p62, %p63
      %p65 = scmp.ne.s32.totalorder %s53, %s54
      %p66 = scmp.eq.s32.totalorder %s23, 1
      %p67 = por %p65, %p66
      %p69 = scmp.ne.s32.totalorder %s54, %s68
      %p70 = scmp.eq.s32.totalorder %s23, 0
      %p71 = por %p69, %p70
      %s73 = sadd.s32 %s72, 1
      %p76 = scmp.eq.s32.totalorder %s17, 1
      %p77 = scmp.ne.s32.totalorder %s72, %s74
      %p78 = scmp.eq.s32.totalorder %s17, 0
      %p79 = por %p77, %p78
      %p80 = scmp.ne.s32.totalorder %s72, %s74
      %p81 = scmp.eq.s32.totalorder %s22, 1
      %p82 = por %p80, %p81
      %p83 = scmp.ne.s32.totalorder %s74, %s75
      %p84 = scmp.eq.s32.totalorder %s22, 0
      %p85 = por %p83, %p84
      %p86 = scmp.ne.s32.totalorder %s74, %s75
      %p87 = scmp.eq.s32.totalorder %s23, 1
      %p88 = por %p86, %p87
      %p90 = scmp.ne.s32.totalorder %s75, %s89
      %p91 = scmp.eq.s32.totalorder %s23, 0
      %p92 = por %p90, %p91
      %s94 = sadd.s32 %s93, 1
      %p97 = scmp.eq.s32.totalorder %s17, 1
      %p98 = scmp.ne.s32.totalorder %s93, %s95
      %p99 = scmp.eq.s32.totalorder %s17, 0
      %p100 = por %p98, %p99
      %p101 = scmp.ne.s32.totalorder %s93, %s95
      %p102 = scmp.eq.s32.totalorder %s22, 1
      %p103 = por %p101, %p102
      %p104 = scmp.ne.s32.totalorder %s95, %s96
      %p105 = scmp.eq.s32.totalorder %s22, 0
      %p106 = por %p104, %p105
      %p107 = scmp.ne.s32.totalorder %s95, %s96
      %p108 = scmp.eq.s32.totalorder %s23, 1
      %p109 = por %p107, %p108
      %p111 = scmp.ne.s32.totalorder %s96, %s110
      %p112 = scmp.eq.s32.totalorder %s23, 0
      %p113 = por %p111, %p112
      %s115 = sadd.s32 %s114, 1
      %p118 = scmp.eq.s32.totalorder %s17, 1
      %p119 = scmp.ne.s32.totalorder %s114, %s116
      %p120 = scmp.eq.s32.totalorder %s17, 0
      %p121 = por %p119, %p120
      %p122 = scmp.ne.s32.totalorder %s114, %s116
      %p123 = scmp.eq.s32.totalorder %s22, 1
      %p124 = por %p122, %p123
      %p125 = scmp.ne.s32.totalorder %s116, %s117
      %p126 = scmp.eq.s32.totalorder %s22, 0
      %p127 = por %p125, %p126
      %p128 = scmp.ne.s32.totalorder %s116, %s117
      %p129 = scmp.eq.s32.totalorder %s23, 1
      %p130 = por %p128, %p129
      %p132 = scmp.ne.s32.totalorder %s117, %s131
      %p133 = scmp.eq.s32.totalorder %s23, 0
      %p134 = por %p132, %p133
      %s136 = sadd.s32 %s135, 1
      %p139 = scmp.eq.s32.totalorder %s17, 1
      %p140 = scmp.ne.s32.totalorder %s135, %s137
      %p141 = scmp.eq.s32.totalorder %s17, 0
      %p142 = por %p140, %p141
      %p143 = scmp.ne.s32.totalorder %s135, %s137
      %p144 = scmp.eq.s32.totalorder %s22, 1
      %p145 = por %p143, %p144
      %p146 = scmp.ne.s32.totalorder %s137, %s138
      %p147 = scmp.eq.s32.totalorder %s22, 0
      %p148 = por %p146, %p147
      %p149 = scmp.ne.s32.totalorder %s137, %s138
      %p150 = scmp.eq.s32.totalorder %s23, 1
      %p151 = por %p149, %p150
      %p153 = scmp.ne.s32.totalorder %s138, %s152
      %p154 = scmp.eq.s32.totalorder %s23, 0
      %p155 = por %p153, %p154
      %s157 = sadd.s32 %s156, 1
      %p160 = scmp.eq.s32.totalorder %s17, 1
      %p161 = scmp.ne.s32.totalorder %s156, %s158
      %p162 = scmp.eq.s32.totalorder %s17, 0
      %p163 = por %p161, %p162
      %p164 = scmp.ne.s32.totalorder %s156, %s158
      %p165 = scmp.eq.s32.totalorder %s22, 1
      %p166 = por %p164, %p165
      %p167 = scmp.ne.s32.totalorder %s158, %s159
      %p168 = scmp.eq.s32.totalorder %s22, 0
      %p169 = por %p167, %p168
      %p170 = scmp.ne.s32.totalorder %s158, %s159
      %p171 = scmp.eq.s32.totalorder %s23, 1
      %p172 = por %p170, %p171
      %p174 = scmp.ne.s32.totalorder %s159, %s173
      %p175 = scmp.eq.s32.totalorder %s23, 0
      %p176 = por %p174, %p175
      %s177 = ssub.s32 %s17, %s24
      %p178 = scmp.eq.s32.totalorder %s177, 0
      %s180 = sadd.s32 %s179, 1
      %s181 = scalar_select %p178, %s179, %s180
      %p184 = pneg %p178
      %p185 = scmp.eq.s32.totalorder %s17, 1
      %p186 = por %p184, %p185
      %p187 = scmp.ne.s32.totalorder %s179, %s182
      %p188 = scmp.eq.s32.totalorder %s17, 0
      %p189 = por %p187, %p188
      %p190 = scmp.ne.s32.totalorder %s179, %s182
      %p191 = scmp.eq.s32.totalorder %s22, 1
      %p192 = por %p190, %p191
      %p193 = scmp.ne.s32.totalorder %s182, %s183
      %p194 = scmp.eq.s32.totalorder %s22, 0
      %p195 = por %p193, %p194
      %p196 = scmp.ne.s32.totalorder %s182, %s183
      %p197 = scmp.eq.s32.totalorder %s23, 1
      %p198 = por %p196, %p197
      %p200 = scmp.ne.s32.totalorder %s183, %s199
      %p201 = scmp.eq.s32.totalorder %s23, 0
      %p202 = por %p200, %p201
      %p203 = scmp.le.s32.totalorder 1, %s17
      %p204 = scmp.lt.s32.totalorder %s17, 3
      %p205 = pnand %p203, %p204
      %p206 = pneg %p205
      // Predicated region
      $region9: #{distortion_detector_forward.1} parent=5 // pred_check
        _
      $region10: #{distortion_detector_forward.1} parent=5 // pred_check_branch
        %208 = sbr.rel (%p205) target = $region12
      $region11: #{distortion_detector_forward.1} parent=5 // pred_region
        %s209 = ssub.s32 %s17, 1
        // Predicated region
        $region13: #{distortion_detector_forward.1} parent=11 // pred_check
          %p210 = pneg %p64
        $region14: #{distortion_detector_forward.1} parent=11 // pred_check_branch
          %212 = sbr.rel (%p210) target = $region16
        $region15: #{distortion_detector_forward.1} parent=11 // pred_region
          %s214 = ssub.s32 16, 16
          %215 = vsyncadd [#allocation5], %s214
          %s217 = sshll.u32 %s1, 4
          %s218 = int_to_ptr.vmem [resolvable:$true] %s217
          %220 = dma.vmem_to_smem %s218, 16, [#allocation4], [#allocation5]
        $region16: #{distortion_detector_forward.1} parent=11 // pred_fallthru
          _
        // Predicated region
        $region17: #{distortion_detector_forward.1} parent=11 // pred_check
          %p221 = pneg %p85
        $region18: #{distortion_detector_forward.1} parent=11 // pred_check_branch
          %223 = sbr.rel (%p221) target = $region20
        $region19: #{distortion_detector_forward.1} parent=11 // pred_region
          %s225 = ssub.s32 16, 16
          %226 = vsyncadd [#allocation7], %s225
          %s228 = sshll.u32 %s2, 4
          %s229 = int_to_ptr.vmem [resolvable:$true] %s228
          %231 = dma.vmem_to_smem %s229, 16, [#allocation6], [#allocation7]
        $region20: #{distortion_detector_forward.1} parent=11 // pred_fallthru
          _
        // Predicated region
        $region21: #{distortion_detector_forward.1} parent=11 // pred_check
          %p232 = pneg %p106
        $region22: #{distortion_detector_forward.1} parent=11 // pred_check_branch
          %234 = sbr.rel (%p232) target = $region24
        $region23: #{distortion_detector_forward.1} parent=11 // pred_region
          %s236 = ssub.s32 16, 16
          %237 = vsyncadd [#allocation7], %s236
          %s239 = sshll.u32 %s3, 4
          %s240 = int_to_ptr.vmem [resolvable:$true] %s239
          %242 = dma.vmem_to_smem %s240, 16, [#allocation8], [#allocation7]
        $region24: #{distortion_detector_forward.1} parent=11 // pred_fallthru
          _
        // Predicated region
        $region25: #{distortion_detector_forward.1} parent=11 // pred_check
          %p243 = pneg %p127
        $region26: #{distortion_detector_forward.1} parent=11 // pred_check_branch
          %245 = sbr.rel (%p243) target = $region28
        $region27: #{distortion_detector_forward.1} parent=11 // pred_region
          %s247 = ssub.s32 16, 16
          %248 = vsyncadd [#allocation10], %s247
          %s250 = sshll.u32 %s4, 4
          %s251 = int_to_ptr.vmem [resolvable:$true] %s250
          %253 = dma.vmem_to_smem %s251, 16, [#allocation9], [#allocation10]
        $region28: #{distortion_detector_forward.1} parent=11 // pred_fallthru
          _
        // Predicated region
        $region29: #{distortion_detector_forward.1} parent=11 // pred_check
          %p254 = pneg %p148
        $region30: #{distortion_detector_forward.1} parent=11 // pred_check_branch
          %256 = sbr.rel (%p254) target = $region32
        $region31: #{distortion_detector_forward.1} parent=11 // pred_region
          _
        $region32: #{distortion_detector_forward.1} parent=11 // pred_fallthru
          _
        // Predicated region
        $region33: #{distortion_detector_forward.1} parent=11 // pred_check
          %p257 = pneg %p169
        $region34: #{distortion_detector_forward.1} parent=11 // pred_check_branch
          %259 = sbr.rel (%p257) target = $region36
        $region35: #{distortion_detector_forward.1} parent=11 // pred_region
          _
        $region36: #{distortion_detector_forward.1} parent=11 // pred_fallthru
          _
      $region12: #{distortion_detector_forward.1} parent=5 // pred_fallthru
        _
      %p260 = scmp.lt.s32.totalorder %s17, 2
      // Predicated region
      $region37: #{distortion_detector_forward.1} parent=5 // pred_check
        %p261 = pneg %p260
      $region38: #{distortion_detector_forward.1} parent=5 // pred_check_branch
        %263 = sbr.rel (%p261) target = $region40
      $region39: #{distortion_detector_forward.1} parent=5 // pred_region
        // Predicated region
        $region41: #{distortion_detector_forward.1} parent=39 // pred_check
          %p264 = pneg %p37
        $region42: #{distortion_detector_forward.1} parent=39 // pred_check_branch
          %266 = sbr.rel (%p264) target = $region44
        $region43: #{distortion_detector_forward.1} parent=39 // pred_region
          %p267 = scmp.lt.s32.totalorder %s17, 1
          %s268 = scalar_select %p267, %s17, 1
          %s269 = smul.addr %s268, 9
          %s270 = smul.addr %s269, 8
          %s271 = scalar_lea.vmem %s0, %s270
        $region44: #{distortion_detector_forward.1} parent=39 // pred_fallthru
          _
      $region40: #{distortion_detector_forward.1} parent=5 // pred_fallthru
        _
      %p272 = scmp.le.s32.totalorder 1, %s17
      %p273 = scmp.lt.s32.totalorder %s17, 3
      %p274 = pnand %p272, %p273
      %p275 = pneg %p274
      // Predicated region
      $region45: #{distortion_detector_forward.1} parent=5 // pred_check
        _
      $region46: #{distortion_detector_forward.1} parent=5 // pred_check_branch
        %277 = sbr.rel (%p274) target = $region48
      $region47: #{distortion_detector_forward.1} parent=5 // pred_region
        %s278 = ssub.s32 %s17, 1
        // Predicated region
        $region49: #{distortion_detector_forward.1} parent=47 // pred_check
          %p279 = pneg %p64
        $region50: #{distortion_detector_forward.1} parent=47 // pred_check_branch
          %281 = sbr.rel (%p279) target = $region52
        $region51: #{distortion_detector_forward.1} parent=47 // pred_region
          %282 = dma.done [#allocation5], 16
        $region52: #{distortion_detector_forward.1} parent=47 // pred_fallthru
          _
        // Predicated region
        $region53: #{distortion_detector_forward.1} parent=47 // pred_check
          %p283 = pneg %p85
        $region54: #{distortion_detector_forward.1} parent=47 // pred_check_branch
          %285 = sbr.rel (%p283) target = $region56
        $region55: #{distortion_detector_forward.1} parent=47 // pred_region
          %286 = dma.done [#allocation7], 16
        $region56: #{distortion_detector_forward.1} parent=47 // pred_fallthru
          _
        // Predicated region
        $region57: #{distortion_detector_forward.1} parent=47 // pred_check
          %p287 = pneg %p106
        $region58: #{distortion_detector_forward.1} parent=47 // pred_check_branch
          %289 = sbr.rel (%p287) target = $region60
        $region59: #{distortion_detector_forward.1} parent=47 // pred_region
          %290 = dma.done [#allocation7], 16
        $region60: #{distortion_detector_forward.1} parent=47 // pred_fallthru
          _
        // Predicated region
        $region61: #{distortion_detector_forward.1} parent=47 // pred_check
          %p291 = pneg %p127
        $region62: #{distortion_detector_forward.1} parent=47 // pred_check_branch
          %293 = sbr.rel (%p291) target = $region64
        $region63: #{distortion_detector_forward.1} parent=47 // pred_region
          %294 = dma.done [#allocation10], 16
        $region64: #{distortion_detector_forward.1} parent=47 // pred_fallthru
          _
        %295 = sfence
        %p296 = scmp.lt.s32.totalorder %s22, 1
        %s297 = scalar_select %p296, %s22, 1
        %s298 = smul.addr %s297, 9
        %s299 = smul.addr %s298, 8
        %s300 = scalar_lea.vmem %s0, %s299
        %p301 = pneg %p43
        %p302 = pneg %p40
        %p303 = pneg %p64
        %p304 = pneg %p61
        %p305 = pneg %p85
        %p306 = pneg %p82
        %p307 = pneg %p106
        %p308 = pneg %p103
        %p309 = pneg %p127
        %p310 = pneg %p124
        %p311 = pneg %p148
        %p312 = pneg %p145
        %p313 = pneg %p169
        %p314 = pneg %p166
        %p315 = pneg %p195
        %p316 = pneg %p192
        %p317 = scmp.lt.s32.totalorder %s22, 1
        %s318 = scalar_select %p317, %s22, 1
        %s319 = scalar_lea.vmem %s7, %s318
        %p320 = scmp.lt.s32.totalorder %s22, 1
        %s321 = scalar_select %p320, %s22, 1
        %s322 = smul.addr %s321, 9
        %s323 = smul.addr %s322, 8
        %s324 = scalar_lea.vmem %s0, %s323
        %p325 = scmp.lt.s32.totalorder %s22, 1
        %s326 = scalar_select %p325, %s22, 1
        %s327 = scalar_lea.vmem %s7, %s326
        %v328 = vld [vmem:[%s324] sm:$0xff]
        %v329 = vld [vmem:[%s324 + $0x8] sm:$0xff]
        %v330 = vld [vmem:[%s324 + $0x10] sm:$0xff]
        %v331 = vld [vmem:[%s324 + $0x18] sm:$0xff]
        %v332 = vld [vmem:[%s324 + $0x20] sm:$0xff]
        %v333 = vld [vmem:[%s324 + $0x28] sm:$0xff]
        %v334 = vld [vmem:[%s324 + $0x30] sm:$0xff]
        %v335 = vld [vmem:[%s324 + $0x38] sm:$0xff]
        %v336 = vld [vmem:[%s324 + $0x40] sm:$0x3]
        %s337 = sld [smem:[#allocation4]]
        %v338 = vstv %s337
        %v339 = vmul.f32 %v338, %v328
        %v340 = vmul.f32 %v338, %v329
        %v341 = vmul.f32 %v338, %v330
        %v342 = vmul.f32 %v338, %v331
        %v343 = vmul.f32 %v338, %v332
        %v344 = vmul.f32 %v338, %v333
        %v345 = vmul.f32 %v338, %v334
        %v346 = vmul.f32 %v338, %v335
        %s347 = sld [smem:[#allocation4 + $0x1]]
        %v348 = vstv %s347
        %v349 = vmul.f32 %v348, %v328
        %v350 = vmul.f32 %v348, %v329
        %v351 = vmul.f32 %v348, %v330
        %v352 = vmul.f32 %v348, %v331
        %v353 = vmul.f32 %v348, %v332
        %v354 = vmul.f32 %v348, %v333
        %v355 = vmul.f32 %v348, %v334
        %v356 = vmul.f32 %v348, %v335
        %v357 = vmul.f32 %v348, %v336
        %vm367 = vcmask 1046528
        %v368 = vrot.slane %v349, 1
        %v369 = vrot.slane %v350, 1
        %v370 = vsel %vm367, %v368, %v369
        %v371 = vrot.slane %v351, 1
        %v372 = vsel %vm367, %v369, %v371
        %v373 = vrot.slane %v352, 1
        %v374 = vsel %vm367, %v371, %v373
        %v375 = vrot.slane %v353, 1
        %v376 = vsel %vm367, %v373, %v375
        %v377 = vrot.slane %v354, 1
        %v378 = vsel %vm367, %v375, %v377
        %v379 = vrot.slane %v355, 1
        %v380 = vsel %vm367, %v377, %v379
        %v381 = vrot.slane %v356, 1
        %v382 = vsel %vm367, %v379, %v381
        %v383 = vrot.slane %v357, 1
        %v384 = vsel %vm367, %v381, %v383
        %v393 = vadd.f32 %v339, %v370
        %v394 = vadd.f32 %v340, %v372
        %v395 = vadd.f32 %v341, %v374
        %v396 = vadd.f32 %v342, %v376
        %v397 = vadd.f32 %v343, %v378
        %v398 = vadd.f32 %v344, %v380
        %v399 = vadd.f32 %v345, %v382
        %v400 = vadd.f32 %v346, %v384
        %s401 = sld [smem:[#allocation4 + $0x2]]
        %v402 = vstv %s401
        %v403 = vmul.f32 %v402, %v328
        %v404 = vmul.f32 %v402, %v329
        %v405 = vmul.f32 %v402, %v330
        %v406 = vmul.f32 %v402, %v331
        %v407 = vmul.f32 %v402, %v332
        %v408 = vmul.f32 %v402, %v333
        %v409 = vmul.f32 %v402, %v334
        %v410 = vmul.f32 %v402, %v335
        %v411 = vmul.f32 %v402, %v336
        %vm421 = vcmask 1045504
        %v422 = vrot.slane %v403, 2
        %v423 = vrot.slane %v404, 2
        %v424 = vsel %vm421, %v422, %v423
        %v425 = vrot.slane %v405, 2
        %v426 = vsel %vm421, %v423, %v425
        %v427 = vrot.slane %v406, 2
        %v428 = vsel %vm421, %v425, %v427
        %v429 = vrot.slane %v407, 2
        %v430 = vsel %vm421, %v427, %v429
        %v431 = vrot.slane %v408, 2
        %v432 = vsel %vm421, %v429, %v431
        %v433 = vrot.slane %v409, 2
        %v434 = vsel %vm421, %v431, %v433
        %v435 = vrot.slane %v410, 2
        %v436 = vsel %vm421, %v433, %v435
        %v437 = vrot.slane %v411, 2
        %v438 = vsel %vm421, %v435, %v437
        %v447 = vadd.f32 %v393, %v424
        %v448 = vadd.f32 %v394, %v426
        %v449 = vadd.f32 %v395, %v428
        %v450 = vadd.f32 %v396, %v430
        %v451 = vadd.f32 %v397, %v432
        %v452 = vadd.f32 %v398, %v434
        %v453 = vadd.f32 %v399, %v436
        %v454 = vadd.f32 %v400, %v438
        %s455 = sld [smem:[#allocation6]]
        %v456 = vstv %s455
        %v457 = vadd.f32 %v447, %v456
        %v458 = vadd.f32 %v448, %v456
        %v459 = vadd.f32 %v449, %v456
        %v460 = vadd.f32 %v450, %v456
        %v461 = vadd.f32 %v451, %v456
        %v462 = vadd.f32 %v452, %v456
        %v463 = vadd.f32 %v453, %v456
        %v464 = vadd.f32 %v454, %v456
        %v465 = vmax.f32 %v457, 0.0
        %v466 = vmax.f32 %v458, 0.0
        %v467 = vmax.f32 %v459, 0.0
        %v468 = vmax.f32 %v460, 0.0
        %v469 = vmax.f32 %v461, 0.0
        %v470 = vmax.f32 %v462, 0.0
        %v471 = vmax.f32 %v463, 0.0
        %v472 = vmax.f32 %v464, 0.0
        %vm473 = vcmask 7168
        %474 = vst.msk [vmem:[#allocation2] sm:$0xff] %vm473, %v465
        %475 = vst.msk [vmem:[#allocation2 + $0x8] sm:$0xff] %vm473, %v466
        %476 = vst.msk [vmem:[#allocation2 + $0x10] sm:$0xff] %vm473, %v467
        %477 = vst.msk [vmem:[#allocation2 + $0x18] sm:$0xff] %vm473, %v468
        %478 = vst.msk [vmem:[#allocation2 + $0x20] sm:$0xff] %vm473, %v469
        %479 = vst.msk [vmem:[#allocation2 + $0x28] sm:$0xff] %vm473, %v470
        %480 = vst.msk [vmem:[#allocation2 + $0x30] sm:$0xff] %vm473, %v471
        %481 = vst.msk [vmem:[#allocation2 + $0x38] sm:$0xff] %vm473, %v472
        %v482 = vld [vmem:[#allocation2] ss:$2 sm:$0xff]
        %s483 = scalar_lea.vmem [#allocation2], 16
        %v484 = vld [vmem:[%s483] ss:$2 sm:$0xff]
        %s485 = scalar_lea.vmem [#allocation2], 32
        %v486 = vld [vmem:[%s485] ss:$2 sm:$0xff]
        %s487 = scalar_lea.vmem [#allocation2], 48
        %v488 = vld [vmem:[%s487] ss:$2 sm:$0x7f]
        %s489 = scalar_lea.vmem [#allocation2], 1
        %v490 = vld [vmem:[%s489] ss:$2 sm:$0xff]
        %s491 = scalar_lea.vmem [#allocation2], 17
        %v492 = vld [vmem:[%s491] ss:$2 sm:$0xff]
        %s493 = scalar_lea.vmem [#allocation2], 33
        %v494 = vld [vmem:[%s493] ss:$2 sm:$0xff]
        %s495 = scalar_lea.vmem [#allocation2], 49
        %v496 = vld [vmem:[%s495] ss:$2 sm:$0x7f]
        %s497 = scalar_lea.vmem [#allocation2], 2
        %v498 = vld [vmem:[%s497] ss:$2 sm:$0xff]
        %s499 = scalar_lea.vmem [#allocation2], 18
        %v500 = vld [vmem:[%s499] ss:$2 sm:$0xff]
        %s501 = scalar_lea.vmem [#allocation2], 34
        %v502 = vld [vmem:[%s501] ss:$2 sm:$0xff]
        %s503 = scalar_lea.vmem [#allocation2], 50
        %v504 = vld [vmem:[%s503] ss:$2 sm:$0x7f]
        %v505 = vmax.f32 %v482, %v490
        %v506 = vmax.f32 %v484, %v492
        %v507 = vmax.f32 %v486, %v494
        %v508 = vmax.f32 %v488, %v496
        %v509 = vmax.f32 %v505, %v498
        %v510 = vmax.f32 %v506, %v500
        %v511 = vmax.f32 %v507, %v502
        %v512 = vmax.f32 %v508, %v504
        %vm517 = vcmask 1040384
        %v518 = vrot.slane %v509, 7
        %v519 = vrot.slane %v510, 7
        %v520 = vsel %vm517, %v518, %v519
        %v521 = vrot.slane %v511, 7
        %v522 = vsel %vm517, %v519, %v521
        %v523 = vrot.slane %v512, 7
        %v524 = vsel %vm517, %v521, %v523
        %v529 = vsel %vm517, 0.0, %v518
        %s530 = sld [smem:[#allocation4 + $0x3]]
        %v531 = vstv %s530
        %v532 = vmul.f32 %v531, %v328
        %v533 = vmul.f32 %v531, %v329
        %v534 = vmul.f32 %v531, %v330
        %v535 = vmul.f32 %v531, %v331
        %v536 = vmul.f32 %v531, %v332
        %v537 = vmul.f32 %v531, %v333
        %v538 = vmul.f32 %v531, %v334
        %v539 = vmul.f32 %v531, %v335
        %s540 = sld [smem:[#allocation4 + $0x4]]
        %v541 = vstv %s540
        %v542 = vmul.f32 %v541, %v328
        %v543 = vmul.f32 %v541, %v329
        %v544 = vmul.f32 %v541, %v330
        %v545 = vmul.f32 %v541, %v331
        %v546 = vmul.f32 %v541, %v332
        %v547 = vmul.f32 %v541, %v333
        %v548 = vmul.f32 %v541, %v334
        %v549 = vmul.f32 %v541, %v335
        %v550 = vmul.f32 %v541, %v336
        %v560 = vrot.slane %v542, 1
        %v561 = vrot.slane %v543, 1
        %v562 = vsel %vm367, %v560, %v561
        %v563 = vrot.slane %v544, 1
        %v564 = vsel %vm367, %v561, %v563
        %v565 = vrot.slane %v545, 1
        %v566 = vsel %vm367, %v563, %v565
        %v567 = vrot.slane %v546, 1
        %v568 = vsel %vm367, %v565, %v567
        %v569 = vrot.slane %v547, 1
        %v570 = vsel %vm367, %v567, %v569
        %v571 = vrot.slane %v548, 1
        %v572 = vsel %vm367, %v569, %v571
        %v573 = vrot.slane %v549, 1
        %v574 = vsel %vm367, %v571, %v573
        %v575 = vrot.slane %v550, 1
        %v576 = vsel %vm367, %v573, %v575
        %v585 = vadd.f32 %v532, %v562
        %v586 = vadd.f32 %v533, %v564
        %v587 = vadd.f32 %v534, %v566
        %v588 = vadd.f32 %v535, %v568
        %v589 = vadd.f32 %v536, %v570
        %v590 = vadd.f32 %v537, %v572
        %v591 = vadd.f32 %v538, %v574
        %v592 = vadd.f32 %v539, %v576
        %s593 = sld [smem:[#allocation4 + $0x5]]
        %v594 = vstv %s593
        %v595 = vmul.f32 %v594, %v328
        %v596 = vmul.f32 %v594, %v329
        %v597 = vmul.f32 %v594, %v330
        %v598 = vmul.f32 %v594, %v331
        %v599 = vmul.f32 %v594, %v332
        %v600 = vmul.f32 %v594, %v333
        %v601 = vmul.f32 %v594, %v334
        %v602 = vmul.f32 %v594, %v335
        %v603 = vmul.f32 %v594, %v336
        %v613 = vrot.slane %v595, 2
        %v614 = vrot.slane %v596, 2
        %v615 = vsel %vm421, %v613, %v614
        %v616 = vrot.slane %v597, 2
        %v617 = vsel %vm421, %v614, %v616
        %v618 = vrot.slane %v598, 2
        %v619 = vsel %vm421, %v616, %v618
        %v620 = vrot.slane %v599, 2
        %v621 = vsel %vm421, %v618, %v620
        %v622 = vrot.slane %v600, 2
        %v623 = vsel %vm421, %v620, %v622
        %v624 = vrot.slane %v601, 2
        %v625 = vsel %vm421, %v622, %v624
        %v626 = vrot.slane %v602, 2
        %v627 = vsel %vm421, %v624, %v626
        %v628 = vrot.slane %v603, 2
        %v629 = vsel %vm421, %v626, %v628
        %v638 = vadd.f32 %v585, %v615
        %v639 = vadd.f32 %v586, %v617
        %v640 = vadd.f32 %v587, %v619
        %v641 = vadd.f32 %v588, %v621
        %v642 = vadd.f32 %v589, %v623
        %v643 = vadd.f32 %v590, %v625
        %v644 = vadd.f32 %v591, %v627
        %v645 = vadd.f32 %v592, %v629
        %s646 = sld [smem:[#allocation6 + $0x1]]
        %v647 = vstv %s646
        %v648 = vadd.f32 %v638, %v647
        %v649 = vadd.f32 %v639, %v647
        %v650 = vadd.f32 %v640, %v647
        %v651 = vadd.f32 %v641, %v647
        %v652 = vadd.f32 %v642, %v647
        %v653 = vadd.f32 %v643, %v647
        %v654 = vadd.f32 %v644, %v647
        %v655 = vadd.f32 %v645, %v647
        %v656 = vmax.f32 %v648, 0.0
        %v657 = vmax.f32 %v649, 0.0
        %v658 = vmax.f32 %v650, 0.0
        %v659 = vmax.f32 %v651, 0.0
        %v660 = vmax.f32 %v652, 0.0
        %v661 = vmax.f32 %v653, 0.0
        %v662 = vmax.f32 %v654, 0.0
        %v663 = vmax.f32 %v655, 0.0
        %664 = vst.msk [vmem:[#allocation2] sm:$0xff] %vm473, %v656
        %665 = vst.msk [vmem:[#allocation2 + $0x8] sm:$0xff] %vm473, %v657
        %666 = vst.msk [vmem:[#allocation2 + $0x10] sm:$0xff] %vm473, %v658
        %667 = vst.msk [vmem:[#allocation2 + $0x18] sm:$0xff] %vm473, %v659
        %668 = vst.msk [vmem:[#allocation2 + $0x20] sm:$0xff] %vm473, %v660
        %669 = vst.msk [vmem:[#allocation2 + $0x28] sm:$0xff] %vm473, %v661
        %670 = vst.msk [vmem:[#allocation2 + $0x30] sm:$0xff] %vm473, %v662
        %671 = vst.msk [vmem:[#allocation2 + $0x38] sm:$0xff] %vm473, %v663
        %v672 = vld [vmem:[#allocation2] ss:$2 sm:$0xff]
        %v673 = vld [vmem:[%s483] ss:$2 sm:$0xff]
        %v674 = vld [vmem:[%s485] ss:$2 sm:$0xff]
        %v675 = vld [vmem:[%s487] ss:$2 sm:$0x7f]
        %v676 = vld [vmem:[%s489] ss:$2 sm:$0xff]
        %v677 = vld [vmem:[%s491] ss:$2 sm:$0xff]
        %v678 = vld [vmem:[%s493] ss:$2 sm:$0xff]
        %v679 = vld [vmem:[%s495] ss:$2 sm:$0x7f]
        %v680 = vld [vmem:[%s497] ss:$2 sm:$0xff]
        %v681 = vld [vmem:[%s499] ss:$2 sm:$0xff]
        %v682 = vld [vmem:[%s501] ss:$2 sm:$0xff]
        %v683 = vld [vmem:[%s503] ss:$2 sm:$0x7f]
        %v684 = vmax.f32 %v672, %v676
        %v685 = vmax.f32 %v673, %v677
        %v686 = vmax.f32 %v674, %v678
        %v687 = vmax.f32 %v675, %v679
        %v688 = vmax.f32 %v684, %v680
        %v689 = vmax.f32 %v685, %v681
        %v690 = vmax.f32 %v686, %v682
        %v691 = vmax.f32 %v687, %v683
        %v696 = vrot.slane %v688, 7
        %v697 = vrot.slane %v689, 7
        %v698 = vsel %vm517, %v696, %v697
        %v699 = vrot.slane %v690, 7
        %v700 = vsel %vm517, %v697, %v699
        %v701 = vrot.slane %v691, 7
        %v702 = vsel %vm517, %v699, %v701
        %v707 = vsel %vm517, 0.0, %v696
        %s708 = sld [smem:[#allocation4 + $0x6]]
        %v709 = vstv %s708
        %v710 = vmul.f32 %v709, %v328
        %v711 = vmul.f32 %v709, %v329
        %v712 = vmul.f32 %v709, %v330
        %v713 = vmul.f32 %v709, %v331
        %v714 = vmul.f32 %v709, %v332
        %v715 = vmul.f32 %v709, %v333
        %v716 = vmul.f32 %v709, %v334
        %v717 = vmul.f32 %v709, %v335
        %s718 = sld [smem:[#allocation4 + $0x7]]
        %v719 = vstv %s718
        %v720 = vmul.f32 %v719, %v328
        %v721 = vmul.f32 %v719, %v329
        %v722 = vmul.f32 %v719, %v330
        %v723 = vmul.f32 %v719, %v331
        %v724 = vmul.f32 %v719, %v332
        %v725 = vmul.f32 %v719, %v333
        %v726 = vmul.f32 %v719, %v334
        %v727 = vmul.f32 %v719, %v335
        %v728 = vmul.f32 %v719, %v336
        %v738 = vrot.slane %v720, 1
        %v739 = vrot.slane %v721, 1
        %v740 = vsel %vm367, %v738, %v739
        %v741 = vrot.slane %v722, 1
        %v742 = vsel %vm367, %v739, %v741
        %v743 = vrot.slane %v723, 1
        %v744 = vsel %vm367, %v741, %v743
        %v745 = vrot.slane %v724, 1
        %v746 = vsel %vm367, %v743, %v745
        %v747 = vrot.slane %v725, 1
        %v748 = vsel %vm367, %v745, %v747
        %v749 = vrot.slane %v726, 1
        %v750 = vsel %vm367, %v747, %v749
        %v751 = vrot.slane %v727, 1
        %v752 = vsel %vm367, %v749, %v751
        %v753 = vrot.slane %v728, 1
        %v754 = vsel %vm367, %v751, %v753
        %v763 = vadd.f32 %v710, %v740
        %v764 = vadd.f32 %v711, %v742
        %v765 = vadd.f32 %v712, %v744
        %v766 = vadd.f32 %v713, %v746
        %v767 = vadd.f32 %v714, %v748
        %v768 = vadd.f32 %v715, %v750
        %v769 = vadd.f32 %v716, %v752
        %v770 = vadd.f32 %v717, %v754
        %s771 = sld [smem:[#allocation4 + $0x8]]
        %v772 = vstv %s771
        %v773 = vmul.f32 %v772, %v328
        %v774 = vmul.f32 %v772, %v329
        %v775 = vmul.f32 %v772, %v330
        %v776 = vmul.f32 %v772, %v331
        %v777 = vmul.f32 %v772, %v332
        %v778 = vmul.f32 %v772, %v333
        %v779 = vmul.f32 %v772, %v334
        %v780 = vmul.f32 %v772, %v335
        %v781 = vmul.f32 %v772, %v336
        %v791 = vrot.slane %v773, 2
        %v792 = vrot.slane %v774, 2
        %v793 = vsel %vm421, %v791, %v792
        %v794 = vrot.slane %v775, 2
        %v795 = vsel %vm421, %v792, %v794
        %v796 = vrot.slane %v776, 2
        %v797 = vsel %vm421, %v794, %v796
        %v798 = vrot.slane %v777, 2
        %v799 = vsel %vm421, %v796, %v798
        %v800 = vrot.slane %v778, 2
        %v801 = vsel %vm421, %v798, %v800
        %v802 = vrot.slane %v779, 2
        %v803 = vsel %vm421, %v800, %v802
        %v804 = vrot.slane %v780, 2
        %v805 = vsel %vm421, %v802, %v804
        %v806 = vrot.slane %v781, 2
        %v807 = vsel %vm421, %v804, %v806
        %v816 = vadd.f32 %v763, %v793
        %v817 = vadd.f32 %v764, %v795
        %v818 = vadd.f32 %v765, %v797
        %v819 = vadd.f32 %v766, %v799
        %v820 = vadd.f32 %v767, %v801
        %v821 = vadd.f32 %v768, %v803
        %v822 = vadd.f32 %v769, %v805
        %v823 = vadd.f32 %v770, %v807
        %s824 = sld [smem:[#allocation6 + $0x2]]
        %v825 = vstv %s824
        %v826 = vadd.f32 %v816, %v825
        %v827 = vadd.f32 %v817, %v825
        %v828 = vadd.f32 %v818, %v825
        %v829 = vadd.f32 %v819, %v825
        %v830 = vadd.f32 %v820, %v825
        %v831 = vadd.f32 %v821, %v825
        %v832 = vadd.f32 %v822, %v825
        %v833 = vadd.f32 %v823, %v825
        %v834 = vmax.f32 %v826, 0.0
        %v835 = vmax.f32 %v827, 0.0
        %v836 = vmax.f32 %v828, 0.0
        %v837 = vmax.f32 %v829, 0.0
        %v838 = vmax.f32 %v830, 0.0
        %v839 = vmax.f32 %v831, 0.0
        %v840 = vmax.f32 %v832, 0.0
        %v841 = vmax.f32 %v833, 0.0
        %842 = vst.msk [vmem:[#allocation2] sm:$0xff] %vm473, %v834
        %843 = vst.msk [vmem:[#allocation2 + $0x8] sm:$0xff] %vm473, %v835
        %844 = vst.msk [vmem:[#allocation2 + $0x10] sm:$0xff] %vm473, %v836
        %845 = vst.msk [vmem:[#allocation2 + $0x18] sm:$0xff] %vm473, %v837
        %846 = vst.msk [vmem:[#allocation2 + $0x20] sm:$0xff] %vm473, %v838
        %847 = vst.msk [vmem:[#allocation2 + $0x28] sm:$0xff] %vm473, %v839
        %848 = vst.msk [vmem:[#allocation2 + $0x30] sm:$0xff] %vm473, %v840
        %849 = vst.msk [vmem:[#allocation2 + $0x38] sm:$0xff] %vm473, %v841
        %v850 = vld [vmem:[#allocation2] ss:$2 sm:$0xff]
        %v851 = vld [vmem:[%s483] ss:$2 sm:$0xff]
        %v852 = vld [vmem:[%s485] ss:$2 sm:$0xff]
        %v853 = vld [vmem:[%s487] ss:$2 sm:$0x7f]
        %v854 = vld [vmem:[%s489] ss:$2 sm:$0xff]
        %v855 = vld [vmem:[%s491] ss:$2 sm:$0xff]
        %v856 = vld [vmem:[%s493] ss:$2 sm:$0xff]
        %v857 = vld [vmem:[%s495] ss:$2 sm:$0x7f]
        %v858 = vld [vmem:[%s497] ss:$2 sm:$0xff]
        %v859 = vld [vmem:[%s499] ss:$2 sm:$0xff]
        %v860 = vld [vmem:[%s501] ss:$2 sm:$0xff]
        %v861 = vld [vmem:[%s503] ss:$2 sm:$0x7f]
        %v862 = vmax.f32 %v850, %v854
        %v863 = vmax.f32 %v851, %v855
        %v864 = vmax.f32 %v852, %v856
        %v865 = vmax.f32 %v853, %v857
        %v866 = vmax.f32 %v862, %v858
        %v867 = vmax.f32 %v863, %v859
        %v868 = vmax.f32 %v864, %v860
        %v869 = vmax.f32 %v865, %v861
        %v874 = vrot.slane %v866, 7
        %v875 = vrot.slane %v867, 7
        %v876 = vsel %vm517, %v874, %v875
        %v877 = vrot.slane %v868, 7
        %v878 = vsel %vm517, %v875, %v877
        %v879 = vrot.slane %v869, 7
        %v880 = vsel %vm517, %v877, %v879
        %v885 = vsel %vm517, 0.0, %v874
        %s886 = sld [smem:[#allocation4 + $0x9]]
        %v887 = vstv %s886
        %v888 = vmul.f32 %v887, %v328
        %v889 = vmul.f32 %v887, %v329
        %v890 = vmul.f32 %v887, %v330
        %v891 = vmul.f32 %v887, %v331
        %v892 = vmul.f32 %v887, %v332
        %v893 = vmul.f32 %v887, %v333
        %v894 = vmul.f32 %v887, %v334
        %v895 = vmul.f32 %v887, %v335
        %s896 = sld [smem:[#allocation4 + $0xa]]
        %v897 = vstv %s896
        %v898 = vmul.f32 %v897, %v328
        %v899 = vmul.f32 %v897, %v329
        %v900 = vmul.f32 %v897, %v330
        %v901 = vmul.f32 %v897, %v331
        %v902 = vmul.f32 %v897, %v332
        %v903 = vmul.f32 %v897, %v333
        %v904 = vmul.f32 %v897, %v334
        %v905 = vmul.f32 %v897, %v335
        %v906 = vmul.f32 %v897, %v336
        %v916 = vrot.slane %v898, 1
        %v917 = vrot.slane %v899, 1
        %v918 = vsel %vm367, %v916, %v917
        %v919 = vrot.slane %v900, 1
        %v920 = vsel %vm367, %v917, %v919
        %v921 = vrot.slane %v901, 1
        %v922 = vsel %vm367, %v919, %v921
        %v923 = vrot.slane %v902, 1
        %v924 = vsel %vm367, %v921, %v923
        %v925 = vrot.slane %v903, 1
        %v926 = vsel %vm367, %v923, %v925
        %v927 = vrot.slane %v904, 1
        %v928 = vsel %vm367, %v925, %v927
        %v929 = vrot.slane %v905, 1
        %v930 = vsel %vm367, %v927, %v929
        %v931 = vrot.slane %v906, 1
        %v932 = vsel %vm367, %v929, %v931
        %v941 = vadd.f32 %v888, %v918
        %v942 = vadd.f32 %v889, %v920
        %v943 = vadd.f32 %v890, %v922
        %v944 = vadd.f32 %v891, %v924
        %v945 = vadd.f32 %v892, %v926
        %v946 = vadd.f32 %v893, %v928
        %v947 = vadd.f32 %v894, %v930
        %v948 = vadd.f32 %v895, %v932
        %s949 = sld [smem:[#allocation4 + $0xb]]
        %v950 = vstv %s949
        %v951 = vmul.f32 %v950, %v328
        %v952 = vmul.f32 %v950, %v329
        %v953 = vmul.f32 %v950, %v330
        %v954 = vmul.f32 %v950, %v331
        %v955 = vmul.f32 %v950, %v332
        %v956 = vmul.f32 %v950, %v333
        %v957 = vmul.f32 %v950, %v334
        %v958 = vmul.f32 %v950, %v335
        %v959 = vmul.f32 %v950, %v336
        %v969 = vrot.slane %v951, 2
        %v970 = vrot.slane %v952, 2
        %v971 = vsel %vm421, %v969, %v970
        %v972 = vrot.slane %v953, 2
        %v973 = vsel %vm421, %v970, %v972
        %v974 = vrot.slane %v954, 2
        %v975 = vsel %vm421, %v972, %v974
        %v976 = vrot.slane %v955, 2
        %v977 = vsel %vm421, %v974, %v976
        %v978 = vrot.slane %v956, 2
        %v979 = vsel %vm421, %v976, %v978
        %v980 = vrot.slane %v957, 2
        %v981 = vsel %vm421, %v978, %v980
        %v982 = vrot.slane %v958, 2
        %v983 = vsel %vm421, %v980, %v982
        %v984 = vrot.slane %v959, 2
        %v985 = vsel %vm421, %v982, %v984
        %v994 = vadd.f32 %v941, %v971
        %v995 = vadd.f32 %v942, %v973
        %v996 = vadd.f32 %v943, %v975
        %v997 = vadd.f32 %v944, %v977
        %v998 = vadd.f32 %v945, %v979
        %v999 = vadd.f32 %v946, %v981
        %v1000 = vadd.f32 %v947, %v983
        %v1001 = vadd.f32 %v948, %v985
        %s1002 = sld [smem:[#allocation6 + $0x3]]
        %v1003 = vstv %s1002
        %v1004 = vadd.f32 %v994, %v1003
        %v1005 = vadd.f32 %v995, %v1003
        %v1006 = vadd.f32 %v996, %v1003
        %v1007 = vadd.f32 %v997, %v1003
        %v1008 = vadd.f32 %v998, %v1003
        %v1009 = vadd.f32 %v999, %v1003
        %v1010 = vadd.f32 %v1000, %v1003
        %v1011 = vadd.f32 %v1001, %v1003
        %v1012 = vmax.f32 %v1004, 0.0
        %v1013 = vmax.f32 %v1005, 0.0
        %v1014 = vmax.f32 %v1006, 0.0
        %v1015 = vmax.f32 %v1007, 0.0
        %v1016 = vmax.f32 %v1008, 0.0
        %v1017 = vmax.f32 %v1009, 0.0
        %v1018 = vmax.f32 %v1010, 0.0
        %v1019 = vmax.f32 %v1011, 0.0
        %1020 = vst.msk [vmem:[#allocation2] sm:$0xff] %vm473, %v1012
        %1021 = vst.msk [vmem:[#allocation2 + $0x8] sm:$0xff] %vm473, %v1013
        %1022 = vst.msk [vmem:[#allocation2 + $0x10] sm:$0xff] %vm473, %v1014
        %1023 = vst.msk [vmem:[#allocation2 + $0x18] sm:$0xff] %vm473, %v1015
        %1024 = vst.msk [vmem:[#allocation2 + $0x20] sm:$0xff] %vm473, %v1016
        %1025 = vst.msk [vmem:[#allocation2 + $0x28] sm:$0xff] %vm473, %v1017
        %1026 = vst.msk [vmem:[#allocation2 + $0x30] sm:$0xff] %vm473, %v1018
        %1027 = vst.msk [vmem:[#allocation2 + $0x38] sm:$0xff] %vm473, %v1019
        %v1028 = vld [vmem:[#allocation2] ss:$2 sm:$0xff]
        %v1029 = vld [vmem:[%s483] ss:$2 sm:$0xff]
        %v1030 = vld [vmem:[%s485] ss:$2 sm:$0xff]
        %v1031 = vld [vmem:[%s487] ss:$2 sm:$0x7f]
        %v1032 = vld [vmem:[%s489] ss:$2 sm:$0xff]
        %v1033 = vld [vmem:[%s491] ss:$2 sm:$0xff]
        %v1034 = vld [vmem:[%s493] ss:$2 sm:$0xff]
        %v1035 = vld [vmem:[%s495] ss:$2 sm:$0x7f]
        %v1036 = vld [vmem:[%s497] ss:$2 sm:$0xff]
        %v1037 = vld [vmem:[%s499] ss:$2 sm:$0xff]
        %v1038 = vld [vmem:[%s501] ss:$2 sm:$0xff]
        %v1039 = vld [vmem:[%s503] ss:$2 sm:$0x7f]
        %v1040 = vmax.f32 %v1028, %v1032
        %v1041 = vmax.f32 %v1029, %v1033
        %v1042 = vmax.f32 %v1030, %v1034
        %v1043 = vmax.f32 %v1031, %v1035
        %v1044 = vmax.f32 %v1040, %v1036
        %v1045 = vmax.f32 %v1041, %v1037
        %v1046 = vmax.f32 %v1042, %v1038
        %v1047 = vmax.f32 %v1043, %v1039
        %v1052 = vrot.slane %v1044, 7
        %v1053 = vrot.slane %v1045, 7
        %v1054 = vsel %vm517, %v1052, %v1053
        %v1055 = vrot.slane %v1046, 7
        %v1056 = vsel %vm517, %v1053, %v1055
        %v1057 = vrot.slane %v1047, 7
        %v1058 = vsel %vm517, %v1055, %v1057
        %v1063 = vsel %vm517, 0.0, %v1052
        %s1064 = sld [smem:[#allocation8]]
        %v1065 = vstv %s1064
        %v1066 = vmul.f32 %v1065, %v529
        %v1067 = vmul.f32 %v1065, %v520
        %v1068 = vmul.f32 %v1065, %v522
        %v1069 = vmul.f32 %v1065, %v524
        %s1070 = sld [smem:[#allocation8 + $0x1]]
        %v1071 = vstv %s1070
        %v1072 = vmul.f32 %v1071, %v529
        %v1073 = vmul.f32 %v1071, %v520
        %v1074 = vmul.f32 %v1071, %v522
        %v1075 = vmul.f32 %v1071, %v524
        %v1080 = vrot.slane %v1072, 1
        %v1081 = vrot.slane %v1073, 1
        %v1082 = vsel %vm367, %v1080, %v1081
        %v1083 = vrot.slane %v1074, 1
        %v1084 = vsel %vm367, %v1081, %v1083
        %v1085 = vrot.slane %v1075, 1
        %v1086 = vsel %vm367, %v1083, %v1085
        %v1091 = vadd.f32 %v1066, %v1082
        %v1092 = vadd.f32 %v1067, %v1084
        %v1093 = vadd.f32 %v1068, %v1086
        %v1094 = vadd.f32 %v1069, %v1085
        %s1095 = sld [smem:[#allocation8 + $0x2]]
        %v1096 = vstv %s1095
        %v1097 = vmul.f32 %v1096, %v529
        %v1098 = vmul.f32 %v1096, %v520
        %v1099 = vmul.f32 %v1096, %v522
        %v1100 = vmul.f32 %v1096, %v524
        %v1101 = vmul.f32 %v1096, 0.0
        %v1107 = vrot.slane %v1097, 2
        %v1108 = vrot.slane %v1098, 2
        %v1109 = vsel %vm421, %v1107, %v1108
        %v1110 = vrot.slane %v1099, 2
        %v1111 = vsel %vm421, %v1108, %v1110
        %v1112 = vrot.slane %v1100, 2
        %v1113 = vsel %vm421, %v1110, %v1112
        %v1114 = vrot.slane %v1101, 2
        %v1115 = vsel %vm421, %v1112, %v1114
        %v1120 = vadd.f32 %v1091, %v1109
        %v1121 = vadd.f32 %v1092, %v1111
        %v1122 = vadd.f32 %v1093, %v1113
        %v1123 = vadd.f32 %v1094, %v1115
        %s1124 = sld [smem:[#allocation8 + $0x3]]
        %v1125 = vstv %s1124
        %v1126 = vmul.f32 %v1125, %v707
        %v1127 = vmul.f32 %v1125, %v698
        %v1128 = vmul.f32 %v1125, %v700
        %v1129 = vmul.f32 %v1125, %v702
        %v1130 = vadd.f32 %v1120, %v1126
        %v1131 = vadd.f32 %v1121, %v1127
        %v1132 = vadd.f32 %v1122, %v1128
        %v1133 = vadd.f32 %v1123, %v1129
        %s1134 = sld [smem:[#allocation8 + $0x4]]
        %v1135 = vstv %s1134
        %v1136 = vmul.f32 %v1135, %v707
        %v1137 = vmul.f32 %v1135, %v698
        %v1138 = vmul.f32 %v1135, %v700
        %v1139 = vmul.f32 %v1135, %v702
        %v1144 = vrot.slane %v1136, 1
        %v1145 = vrot.slane %v1137, 1
        %v1146 = vsel %vm367, %v1144, %v1145
        %v1147 = vrot.slane %v1138, 1
        %v1148 = vsel %vm367, %v1145, %v1147
        %v1149 = vrot.slane %v1139, 1
        %v1150 = vsel %vm367, %v1147, %v1149
        %v1155 = vadd.f32 %v1130, %v1146
        %v1156 = vadd.f32 %v1131, %v1148
        %v1157 = vadd.f32 %v1132, %v1150
        %v1158 = vadd.f32 %v1133, %v1149
        %s1159 = sld [smem:[#allocation8 + $0x5]]
        %v1160 = vstv %s1159
        %v1161 = vmul.f32 %v1160, %v707
        %v1162 = vmul.f32 %v1160, %v698
        %v1163 = vmul.f32 %v1160, %v700
        %v1164 = vmul.f32 %v1160, %v702
        %v1165 = vmul.f32 %v1160, 0.0
        %v1171 = vrot.slane %v1161, 2
        %v1172 = vrot.slane %v1162, 2
        %v1173 = vsel %vm421, %v1171, %v1172
        %v1174 = vrot.slane %v1163, 2
        %v1175 = vsel %vm421, %v1172, %v1174
        %v1176 = vrot.slane %v1164, 2
        %v1177 = vsel %vm421, %v1174, %v1176
        %v1178 = vrot.slane %v1165, 2
        %v1179 = vsel %vm421, %v1176, %v1178
        %v1184 = vadd.f32 %v1155, %v1173
        %v1185 = vadd.f32 %v1156, %v1175
        %v1186 = vadd.f32 %v1157, %v1177
        %v1187 = vadd.f32 %v1158, %v1179
        %s1188 = sld [smem:[#allocation8 + $0x6]]
        %v1189 = vstv %s1188
        %v1190 = vmul.f32 %v1189, %v885
        %v1191 = vmul.f32 %v1189, %v876
        %v1192 = vmul.f32 %v1189, %v878
        %v1193 = vmul.f32 %v1189, %v880
        %v1194 = vadd.f32 %v1184, %v1190
        %v1195 = vadd.f32 %v1185, %v1191
        %v1196 = vadd.f32 %v1186, %v1192
        %v1197 = vadd.f32 %v1187, %v1193
        %s1198 = sld [smem:[#allocation8 + $0x7]]
        %v1199 = vstv %s1198
        %v1200 = vmul.f32 %v1199, %v885
        %v1201 = vmul.f32 %v1199, %v876
        %v1202 = vmul.f32 %v1199, %v878
        %v1203 = vmul.f32 %v1199, %v880
        %v1208 = vrot.slane %v1200, 1
        %v1209 = vrot.slane %v1201, 1
        %v1210 = vsel %vm367, %v1208, %v1209
        %v1211 = vrot.slane %v1202, 1
        %v1212 = vsel %vm367, %v1209, %v1211
        %v1213 = vrot.slane %v1203, 1
        %v1214 = vsel %vm367, %v1211, %v1213
        %v1219 = vadd.f32 %v1194, %v1210
        %v1220 = vadd.f32 %v1195, %v1212
        %v1221 = vadd.f32 %v1196, %v1214
        %v1222 = vadd.f32 %v1197, %v1213
        %s1223 = sld [smem:[#allocation8 + $0x8]]
        %v1224 = vstv %s1223
        %v1225 = vmul.f32 %v1224, %v885
        %v1226 = vmul.f32 %v1224, %v876
        %v1227 = vmul.f32 %v1224, %v878
        %v1228 = vmul.f32 %v1224, %v880
        %v1229 = vmul.f32 %v1224, 0.0
        %v1235 = vrot.slane %v1225, 2
        %v1236 = vrot.slane %v1226, 2
        %v1237 = vsel %vm421, %v1235, %v1236
        %v1238 = vrot.slane %v1227, 2
        %v1239 = vsel %vm421, %v1236, %v1238
        %v1240 = vrot.slane %v1228, 2
        %v1241 = vsel %vm421, %v1238, %v1240
        %v1242 = vrot.slane %v1229, 2
        %v1243 = vsel %vm421, %v1240, %v1242
        %v1248 = vadd.f32 %v1219, %v1237
        %v1249 = vadd.f32 %v1220, %v1239
        %v1250 = vadd.f32 %v1221, %v1241
        %v1251 = vadd.f32 %v1222, %v1243
        %s1252 = sld [smem:[#allocation8 + $0x9]]
        %v1253 = vstv %s1252
        %v1254 = vmul.f32 %v1253, %v1063
        %v1255 = vmul.f32 %v1253, %v1054
        %v1256 = vmul.f32 %v1253, %v1056
        %v1257 = vmul.f32 %v1253, %v1058
        %v1258 = vadd.f32 %v1248, %v1254
        %v1259 = vadd.f32 %v1249, %v1255
        %v1260 = vadd.f32 %v1250, %v1256
        %v1261 = vadd.f32 %v1251, %v1257
        %s1262 = sld [smem:[#allocation8 + $0xa]]
        %v1263 = vstv %s1262
        %v1264 = vmul.f32 %v1263, %v1063
        %v1265 = vmul.f32 %v1263, %v1054
        %v1266 = vmul.f32 %v1263, %v1056
        %v1267 = vmul.f32 %v1263, %v1058
        %v1272 = vrot.slane %v1264, 1
        %v1273 = vrot.slane %v1265, 1
        %v1274 = vsel %vm367, %v1272, %v1273
        %v1275 = vrot.slane %v1266, 1
        %v1276 = vsel %vm367, %v1273, %v1275
        %v1277 = vrot.slane %v1267, 1
        %v1278 = vsel %vm367, %v1275, %v1277
        %v1283 = vadd.f32 %v1258, %v1274
        %v1284 = vadd.f32 %v1259, %v1276
        %v1285 = vadd.f32 %v1260, %v1278
        %v1286 = vadd.f32 %v1261, %v1277
        %s1287 = sld [smem:[#allocation8 + $0xb]]
        %v1288 = vstv %s1287
        %v1289 = vmul.f32 %v1288, %v1063
        %v1290 = vmul.f32 %v1288, %v1054
        %v1291 = vmul.f32 %v1288, %v1056
        %v1292 = vmul.f32 %v1288, %v1058
        %v1293 = vmul.f32 %v1288, 0.0
        %v1299 = vrot.slane %v1289, 2
        %v1300 = vrot.slane %v1290, 2
        %v1301 = vsel %vm421, %v1299, %v1300
        %v1302 = vrot.slane %v1291, 2
        %v1303 = vsel %vm421, %v1300, %v1302
        %v1304 = vrot.slane %v1292, 2
        %v1305 = vsel %vm421, %v1302, %v1304
        %v1306 = vrot.slane %v1293, 2
        %v1307 = vsel %vm421, %v1304, %v1306
        %v1312 = vadd.f32 %v1283, %v1301
        %v1313 = vadd.f32 %v1284, %v1303
        %v1314 = vadd.f32 %v1285, %v1305
        %v1315 = vadd.f32 %v1286, %v1307
        %s1316 = sld [smem:[#allocation9]]
        %v1317 = vstv %s1316
        %v1318 = vadd.f32 %v1312, %v1317
        %v1319 = vadd.f32 %v1313, %v1317
        %v1320 = vadd.f32 %v1314, %v1317
        %v1321 = vadd.f32 %v1315, %v1317
        %v1322 = vmax.f32 %v1318, 0.0
        %v1323 = vmax.f32 %v1319, 0.0
        %v1324 = vmax.f32 %v1320, 0.0
        %v1325 = vmax.f32 %v1321, 0.0
        %1326 = vst.msk [vmem:[#allocation2] sm:$0xff] %vm473, %v1322
        %1327 = vst.msk [vmem:[#allocation2 + $0x8] sm:$0xff] %vm473, %v1323
        %1328 = vst.msk [vmem:[#allocation2 + $0x10] sm:$0xff] %vm473, %v1324
        %vm1329 = vcmask 6144
        %1330 = vst.msk [vmem:[#allocation2 + $0x18] sm:$0x7f] %vm1329, %v1325
        %v1331 = vld [vmem:[#allocation2] ss:$2 sm:$0xff]
        %v1332 = vld [vmem:[%s483] ss:$2 sm:$0x7f]
        %v1333 = vld [vmem:[%s489] ss:$2 sm:$0xff]
        %v1334 = vld [vmem:[%s491] ss:$2 sm:$0x7f]
        %v1335 = vld [vmem:[%s497] ss:$2 sm:$0xff]
        %v1336 = vld [vmem:[%s499] ss:$2 sm:$0x7f]
        %v1337 = vmax.f32 %v1331, %v1333
        %v1338 = vmax.f32 %v1332, %v1334
        %v1339 = vmax.f32 %v1337, %v1335
        %v1340 = vmax.f32 %v1338, %v1336
        %v1343 = vrot.slane %v1339, 7
        %v1344 = vrot.slane %v1340, 7
        %v1345 = vsel %vm517, %v1343, %v1344
        %v1348 = vsel %vm517, 0.0, %v1343
        %s1349 = sld [smem:[#allocation8 + $0xc]]
        %v1350 = vstv %s1349
        %v1351 = vmul.f32 %v1350, %v529
        %v1352 = vmul.f32 %v1350, %v520
        %v1353 = vmul.f32 %v1350, %v522
        %v1354 = vmul.f32 %v1350, %v524
        %s1355 = sld [smem:[#allocation8 + $0xd]]
        %v1356 = vstv %s1355
        %v1357 = vmul.f32 %v1356, %v529
        %v1358 = vmul.f32 %v1356, %v520
        %v1359 = vmul.f32 %v1356, %v522
        %v1360 = vmul.f32 %v1356, %v524
        %v1365 = vrot.slane %v1357, 1
        %v1366 = vrot.slane %v1358, 1
        %v1367 = vsel %vm367, %v1365, %v1366
        %v1368 = vrot.slane %v1359, 1
        %v1369 = vsel %vm367, %v1366, %v1368
        %v1370 = vrot.slane %v1360, 1
        %v1371 = vsel %vm367, %v1368, %v1370
        %v1376 = vadd.f32 %v1351, %v1367
        %v1377 = vadd.f32 %v1352, %v1369
        %v1378 = vadd.f32 %v1353, %v1371
        %v1379 = vadd.f32 %v1354, %v1370
        %s1380 = sld [smem:[#allocation8 + $0xe]]
        %v1381 = vstv %s1380
        %v1382 = vmul.f32 %v1381, %v529
        %v1383 = vmul.f32 %v1381, %v520
        %v1384 = vmul.f32 %v1381, %v522
        %v1385 = vmul.f32 %v1381, %v524
        %v1386 = vmul.f32 %v1381, 0.0
        %v1392 = vrot.slane %v1382, 2
        %v1393 = vrot.slane %v1383, 2
        %v1394 = vsel %vm421, %v1392, %v1393
        %v1395 = vrot.slane %v1384, 2
        %v1396 = vsel %vm421, %v1393, %v1395
        %v1397 = vrot.slane %v1385, 2
        %v1398 = vsel %vm421, %v1395, %v1397
        %v1399 = vrot.slane %v1386, 2
        %v1400 = vsel %vm421, %v1397, %v1399
        %v1405 = vadd.f32 %v1376, %v1394
        %v1406 = vadd.f32 %v1377, %v1396
        %v1407 = vadd.f32 %v1378, %v1398
        %v1408 = vadd.f32 %v1379, %v1400
        %s1409 = sld [smem:[#allocation8 + $0xf]]
        %v1410 = vstv %s1409
        %v1411 = vmul.f32 %v1410, %v707
        %v1412 = vmul.f32 %v1410, %v698
        %v1413 = vmul.f32 %v1410, %v700
        %v1414 = vmul.f32 %v1410, %v702
        %v1415 = vadd.f32 %v1405, %v1411
        %v1416 = vadd.f32 %v1406, %v1412
        %v1417 = vadd.f32 %v1407, %v1413
        %v1418 = vadd.f32 %v1408, %v1414
        %s1419 = sld [smem:[#allocation8 + $0x10]]
        %v1420 = vstv %s1419
        %v1421 = vmul.f32 %v1420, %v707
        %v1422 = vmul.f32 %v1420, %v698
        %v1423 = vmul.f32 %v1420, %v700
        %v1424 = vmul.f32 %v1420, %v702
        %v1429 = vrot.slane %v1421, 1
        %v1430 = vrot.slane %v1422, 1
        %v1431 = vsel %vm367, %v1429, %v1430
        %v1432 = vrot.slane %v1423, 1
        %v1433 = vsel %vm367, %v1430, %v1432
        %v1434 = vrot.slane %v1424, 1
        %v1435 = vsel %vm367, %v1432, %v1434
        %v1440 = vadd.f32 %v1415, %v1431
        %v1441 = vadd.f32 %v1416, %v1433
        %v1442 = vadd.f32 %v1417, %v1435
        %v1443 = vadd.f32 %v1418, %v1434
        %s1444 = sld [smem:[#allocation8 + $0x11]]
        %v1445 = vstv %s1444
        %v1446 = vmul.f32 %v1445, %v707
        %v1447 = vmul.f32 %v1445, %v698
        %v1448 = vmul.f32 %v1445, %v700
        %v1449 = vmul.f32 %v1445, %v702
        %v1450 = vmul.f32 %v1445, 0.0
        %v1456 = vrot.slane %v1446, 2
        %v1457 = vrot.slane %v1447, 2
        %v1458 = vsel %vm421, %v1456, %v1457
        %v1459 = vrot.slane %v1448, 2
        %v1460 = vsel %vm421, %v1457, %v1459
        %v1461 = vrot.slane %v1449, 2
        %v1462 = vsel %vm421, %v1459, %v1461
        %v1463 = vrot.slane %v1450, 2
        %v1464 = vsel %vm421, %v1461, %v1463
        %v1469 = vadd.f32 %v1440, %v1458
        %v1470 = vadd.f32 %v1441, %v1460
        %v1471 = vadd.f32 %v1442, %v1462
        %v1472 = vadd.f32 %v1443, %v1464
        %s1473 = sld [smem:[#allocation8 + $0x12]]
        %v1474 = vstv %s1473
        %v1475 = vmul.f32 %v1474, %v885
        %v1476 = vmul.f32 %v1474, %v876
        %v1477 = vmul.f32 %v1474, %v878
        %v1478 = vmul.f32 %v1474, %v880
        %v1479 = vadd.f32 %v1469, %v1475
        %v1480 = vadd.f32 %v1470, %v1476
        %v1481 = vadd.f32 %v1471, %v1477
        %v1482 = vadd.f32 %v1472, %v1478
        %s1483 = sld [smem:[#allocation8 + $0x13]]
        %v1484 = vstv %s1483
        %v1485 = vmul.f32 %v1484, %v885
        %v1486 = vmul.f32 %v1484, %v876
        %v1487 = vmul.f32 %v1484, %v878
        %v1488 = vmul.f32 %v1484, %v880
        %v1493 = vrot.slane %v1485, 1
        %v1494 = vrot.slane %v1486, 1
        %v1495 = vsel %vm367, %v1493, %v1494
        %v1496 = vrot.slane %v1487, 1
        %v1497 = vsel %vm367, %v1494, %v1496
        %v1498 = vrot.slane %v1488, 1
        %v1499 = vsel %vm367, %v1496, %v1498
        %v1504 = vadd.f32 %v1479, %v1495
        %v1505 = vadd.f32 %v1480, %v1497
        %v1506 = vadd.f32 %v1481, %v1499
        %v1507 = vadd.f32 %v1482, %v1498
        %s1508 = sld [smem:[#allocation8 + $0x14]]
        %v1509 = vstv %s1508
        %v1510 = vmul.f32 %v1509, %v885
        %v1511 = vmul.f32 %v1509, %v876
        %v1512 = vmul.f32 %v1509, %v878
        %v1513 = vmul.f32 %v1509, %v880
        %v1514 = vmul.f32 %v1509, 0.0
        %v1520 = vrot.slane %v1510, 2
        %v1521 = vrot.slane %v1511, 2
        %v1522 = vsel %vm421, %v1520, %v1521
        %v1523 = vrot.slane %v1512, 2
        %v1524 = vsel %vm421, %v1521, %v1523
        %v1525 = vrot.slane %v1513, 2
        %v1526 = vsel %vm421, %v1523, %v1525
        %v1527 = vrot.slane %v1514, 2
        %v1528 = vsel %vm421, %v1525, %v1527
        %v1533 = vadd.f32 %v1504, %v1522
        %v1534 = vadd.f32 %v1505, %v1524
        %v1535 = vadd.f32 %v1506, %v1526
        %v1536 = vadd.f32 %v1507, %v1528
        %s1537 = sld [smem:[#allocation8 + $0x15]]
        %v1538 = vstv %s1537
        %v1539 = vmul.f32 %v1538, %v1063
        %v1540 = vmul.f32 %v1538, %v1054
        %v1541 = vmul.f32 %v1538, %v1056
        %v1542 = vmul.f32 %v1538, %v1058
        %v1543 = vadd.f32 %v1533, %v1539
        %v1544 = vadd.f32 %v1534, %v1540
        %v1545 = vadd.f32 %v1535, %v1541
        %v1546 = vadd.f32 %v1536, %v1542
        %s1547 = sld [smem:[#allocation8 + $0x16]]
        %v1548 = vstv %s1547
        %v1549 = vmul.f32 %v1548, %v1063
        %v1550 = vmul.f32 %v1548, %v1054
        %v1551 = vmul.f32 %v1548, %v1056
        %v1552 = vmul.f32 %v1548, %v1058
        %v1557 = vrot.slane %v1549, 1
        %v1558 = vrot.slane %v1550, 1
        %v1559 = vsel %vm367, %v1557, %v1558
        %v1560 = vrot.slane %v1551, 1
        %v1561 = vsel %vm367, %v1558, %v1560
        %v1562 = vrot.slane %v1552, 1
        %v1563 = vsel %vm367, %v1560, %v1562
        %v1568 = vadd.f32 %v1543, %v1559
        %v1569 = vadd.f32 %v1544, %v1561
        %v1570 = vadd.f32 %v1545, %v1563
        %v1571 = vadd.f32 %v1546, %v1562
        %s1572 = sld [smem:[#allocation8 + $0x17]]
        %v1573 = vstv %s1572
        %v1574 = vmul.f32 %v1573, %v1063
        %v1575 = vmul.f32 %v1573, %v1054
        %v1576 = vmul.f32 %v1573, %v1056
        %v1577 = vmul.f32 %v1573, %v1058
        %v1578 = vmul.f32 %v1573, 0.0
        %v1584 = vrot.slane %v1574, 2
        %v1585 = vrot.slane %v1575, 2
        %v1586 = vsel %vm421, %v1584, %v1585
        %v1587 = vrot.slane %v1576, 2
        %v1588 = vsel %vm421, %v1585, %v1587
        %v1589 = vrot.slane %v1577, 2
        %v1590 = vsel %vm421, %v1587, %v1589
        %v1591 = vrot.slane %v1578, 2
        %v1592 = vsel %vm421, %v1589, %v1591
        %v1597 = vadd.f32 %v1568, %v1586
        %v1598 = vadd.f32 %v1569, %v1588
        %v1599 = vadd.f32 %v1570, %v1590
        %v1600 = vadd.f32 %v1571, %v1592
        %s1601 = sld [smem:[#allocation9 + $0x1]]
        %v1602 = vstv %s1601
        %v1603 = vadd.f32 %v1597, %v1602
        %v1604 = vadd.f32 %v1598, %v1602
        %v1605 = vadd.f32 %v1599, %v1602
        %v1606 = vadd.f32 %v1600, %v1602
        %v1607 = vmax.f32 %v1603, 0.0
        %v1608 = vmax.f32 %v1604, 0.0
        %v1609 = vmax.f32 %v1605, 0.0
        %v1610 = vmax.f32 %v1606, 0.0
        %1611 = vst.msk [vmem:[#allocation2] sm:$0xff] %vm473, %v1607
        %1612 = vst.msk [vmem:[#allocation2 + $0x8] sm:$0xff] %vm473, %v1608
        %1613 = vst.msk [vmem:[#allocation2 + $0x10] sm:$0xff] %vm473, %v1609
        %1614 = vst.msk [vmem:[#allocation2 + $0x18] sm:$0x7f] %vm1329, %v1610
        %v1615 = vld [vmem:[#allocation2] ss:$2 sm:$0xff]
        %v1616 = vld [vmem:[%s483] ss:$2 sm:$0x7f]
        %v1617 = vld [vmem:[%s489] ss:$2 sm:$0xff]
        %v1618 = vld [vmem:[%s491] ss:$2 sm:$0x7f]
        %v1619 = vld [vmem:[%s497] ss:$2 sm:$0xff]
        %v1620 = vld [vmem:[%s499] ss:$2 sm:$0x7f]
        %v1621 = vmax.f32 %v1615, %v1617
        %v1622 = vmax.f32 %v1616, %v1618
        %v1623 = vmax.f32 %v1621, %v1619
        %v1624 = vmax.f32 %v1622, %v1620
        %v1627 = vrot.slane %v1623, 7
        %v1628 = vrot.slane %v1624, 7
        %v1629 = vsel %vm517, %v1627, %v1628
        %v1632 = vsel %vm517, 0.0, %v1627
        %s1633 = sld [smem:[#allocation8 + $0x18]]
        %v1634 = vstv %s1633
        %v1635 = vmul.f32 %v1634, %v529
        %v1636 = vmul.f32 %v1634, %v520
        %v1637 = vmul.f32 %v1634, %v522
        %v1638 = vmul.f32 %v1634, %v524
        %s1639 = sld [smem:[#allocation8 + $0x19]]
        %v1640 = vstv %s1639
        %v1641 = vmul.f32 %v1640, %v529
        %v1642 = vmul.f32 %v1640, %v520
        %v1643 = vmul.f32 %v1640, %v522
        %v1644 = vmul.f32 %v1640, %v524
        %v1649 = vrot.slane %v1641, 1
        %v1650 = vrot.slane %v1642, 1
        %v1651 = vsel %vm367, %v1649, %v1650
        %v1652 = vrot.slane %v1643, 1
        %v1653 = vsel %vm367, %v1650, %v1652
        %v1654 = vrot.slane %v1644, 1
        %v1655 = vsel %vm367, %v1652, %v1654
        %v1660 = vadd.f32 %v1635, %v1651
        %v1661 = vadd.f32 %v1636, %v1653
        %v1662 = vadd.f32 %v1637, %v1655
        %v1663 = vadd.f32 %v1638, %v1654
        %s1664 = sld [smem:[#allocation8 + $0x1a]]
        %v1665 = vstv %s1664
        %v1666 = vmul.f32 %v1665, %v529
        %v1667 = vmul.f32 %v1665, %v520
        %v1668 = vmul.f32 %v1665, %v522
        %v1669 = vmul.f32 %v1665, %v524
        %v1670 = vmul.f32 %v1665, 0.0
        %v1676 = vrot.slane %v1666, 2
        %v1677 = vrot.slane %v1667, 2
        %v1678 = vsel %vm421, %v1676, %v1677
        %v1679 = vrot.slane %v1668, 2
        %v1680 = vsel %vm421, %v1677, %v1679
        %v1681 = vrot.slane %v1669, 2
        %v1682 = vsel %vm421, %v1679, %v1681
        %v1683 = vrot.slane %v1670, 2
        %v1684 = vsel %vm421, %v1681, %v1683
        %v1689 = vadd.f32 %v1660, %v1678
        %v1690 = vadd.f32 %v1661, %v1680
        %v1691 = vadd.f32 %v1662, %v1682
        %v1692 = vadd.f32 %v1663, %v1684
        %s1693 = sld [smem:[#allocation8 + $0x1b]]
        %v1694 = vstv %s1693
        %v1695 = vmul.f32 %v1694, %v707
        %v1696 = vmul.f32 %v1694, %v698
        %v1697 = vmul.f32 %v1694, %v700
        %v1698 = vmul.f32 %v1694, %v702
        %v1699 = vadd.f32 %v1689, %v1695
        %v1700 = vadd.f32 %v1690, %v1696
        %v1701 = vadd.f32 %v1691, %v1697
        %v1702 = vadd.f32 %v1692, %v1698
        %s1703 = sld [smem:[#allocation8 + $0x1c]]
        %v1704 = vstv %s1703
        %v1705 = vmul.f32 %v1704, %v707
        %v1706 = vmul.f32 %v1704, %v698
        %v1707 = vmul.f32 %v1704, %v700
        %v1708 = vmul.f32 %v1704, %v702
        %v1713 = vrot.slane %v1705, 1
        %v1714 = vrot.slane %v1706, 1
        %v1715 = vsel %vm367, %v1713, %v1714
        %v1716 = vrot.slane %v1707, 1
        %v1717 = vsel %vm367, %v1714, %v1716
        %v1718 = vrot.slane %v1708, 1
        %v1719 = vsel %vm367, %v1716, %v1718
        %v1724 = vadd.f32 %v1699, %v1715
        %v1725 = vadd.f32 %v1700, %v1717
        %v1726 = vadd.f32 %v1701, %v1719
        %v1727 = vadd.f32 %v1702, %v1718
        %s1728 = sld [smem:[#allocation8 + $0x1d]]
        %v1729 = vstv %s1728
        %v1730 = vmul.f32 %v1729, %v707
        %v1731 = vmul.f32 %v1729, %v698
        %v1732 = vmul.f32 %v1729, %v700
        %v1733 = vmul.f32 %v1729, %v702
        %v1734 = vmul.f32 %v1729, 0.0
        %v1740 = vrot.slane %v1730, 2
        %v1741 = vrot.slane %v1731, 2
        %v1742 = vsel %vm421, %v1740, %v1741
        %v1743 = vrot.slane %v1732, 2
        %v1744 = vsel %vm421, %v1741, %v1743
        %v1745 = vrot.slane %v1733, 2
        %v1746 = vsel %vm421, %v1743, %v1745
        %v1747 = vrot.slane %v1734, 2
        %v1748 = vsel %vm421, %v1745, %v1747
        %v1753 = vadd.f32 %v1724, %v1742
        %v1754 = vadd.f32 %v1725, %v1744
        %v1755 = vadd.f32 %v1726, %v1746
        %v1756 = vadd.f32 %v1727, %v1748
        %s1757 = sld [smem:[#allocation8 + $0x1e]]
        %v1758 = vstv %s1757
        %v1759 = vmul.f32 %v1758, %v885
        %v1760 = vmul.f32 %v1758, %v876
        %v1761 = vmul.f32 %v1758, %v878
        %v1762 = vmul.f32 %v1758, %v880
        %v1763 = vadd.f32 %v1753, %v1759
        %v1764 = vadd.f32 %v1754, %v1760
        %v1765 = vadd.f32 %v1755, %v1761
        %v1766 = vadd.f32 %v1756, %v1762
        %s1767 = sld [smem:[#allocation8 + $0x1f]]
        %v1768 = vstv %s1767
        %v1769 = vmul.f32 %v1768, %v885
        %v1770 = vmul.f32 %v1768, %v876
        %v1771 = vmul.f32 %v1768, %v878
        %v1772 = vmul.f32 %v1768, %v880
        %v1777 = vrot.slane %v1769, 1
        %v1778 = vrot.slane %v1770, 1
        %v1779 = vsel %vm367, %v1777, %v1778
        %v1780 = vrot.slane %v1771, 1
        %v1781 = vsel %vm367, %v1778, %v1780
        %v1782 = vrot.slane %v1772, 1
        %v1783 = vsel %vm367, %v1780, %v1782
        %v1788 = vadd.f32 %v1763, %v1779
        %v1789 = vadd.f32 %v1764, %v1781
        %v1790 = vadd.f32 %v1765, %v1783
        %v1791 = vadd.f32 %v1766, %v1782
        %s1792 = sld [smem:[#allocation8 + $0x20]]
        %v1793 = vstv %s1792
        %v1794 = vmul.f32 %v1793, %v885
        %v1795 = vmul.f32 %v1793, %v876
        %v1796 = vmul.f32 %v1793, %v878
        %v1797 = vmul.f32 %v1793, %v880
        %v1798 = vmul.f32 %v1793, 0.0
        %v1804 = vrot.slane %v1794, 2
        %v1805 = vrot.slane %v1795, 2
        %v1806 = vsel %vm421, %v1804, %v1805
        %v1807 = vrot.slane %v1796, 2
        %v1808 = vsel %vm421, %v1805, %v1807
        %v1809 = vrot.slane %v1797, 2
        %v1810 = vsel %vm421, %v1807, %v1809
        %v1811 = vrot.slane %v1798, 2
        %v1812 = vsel %vm421, %v1809, %v1811
        %v1817 = vadd.f32 %v1788, %v1806
        %v1818 = vadd.f32 %v1789, %v1808
        %v1819 = vadd.f32 %v1790, %v1810
        %v1820 = vadd.f32 %v1791, %v1812
        %s1821 = sld [smem:[#allocation8 + $0x21]]
        %v1822 = vstv %s1821
        %v1823 = vmul.f32 %v1822, %v1063
        %v1824 = vmul.f32 %v1822, %v1054
        %v1825 = vmul.f32 %v1822, %v1056
        %v1826 = vmul.f32 %v1822, %v1058
        %v1827 = vadd.f32 %v1817, %v1823
        %v1828 = vadd.f32 %v1818, %v1824
        %v1829 = vadd.f32 %v1819, %v1825
        %v1830 = vadd.f32 %v1820, %v1826
        %s1831 = sld [smem:[#allocation8 + $0x22]]
        %v1832 = vstv %s1831
        %v1833 = vmul.f32 %v1832, %v1063
        %v1834 = vmul.f32 %v1832, %v1054
        %v1835 = vmul.f32 %v1832, %v1056
        %v1836 = vmul.f32 %v1832, %v1058
        %v1841 = vrot.slane %v1833, 1
        %v1842 = vrot.slane %v1834, 1
        %v1843 = vsel %vm367, %v1841, %v1842
        %v1844 = vrot.slane %v1835, 1
        %v1845 = vsel %vm367, %v1842, %v1844
        %v1846 = vrot.slane %v1836, 1
        %v1847 = vsel %vm367, %v1844, %v1846
        %v1852 = vadd.f32 %v1827, %v1843
        %v1853 = vadd.f32 %v1828, %v1845
        %v1854 = vadd.f32 %v1829, %v1847
        %v1855 = vadd.f32 %v1830, %v1846
        %s1856 = sld [smem:[#allocation8 + $0x23]]
        %v1857 = vstv %s1856
        %v1858 = vmul.f32 %v1857, %v1063
        %v1859 = vmul.f32 %v1857, %v1054
        %v1860 = vmul.f32 %v1857, %v1056
        %v1861 = vmul.f32 %v1857, %v1058
        %v1862 = vmul.f32 %v1857, 0.0
        %v1868 = vrot.slane %v1858, 2
        %v1869 = vrot.slane %v1859, 2
        %v1870 = vsel %vm421, %v1868, %v1869
        %v1871 = vrot.slane %v1860, 2
        %v1872 = vsel %vm421, %v1869, %v1871
        %v1873 = vrot.slane %v1861, 2
        %v1874 = vsel %vm421, %v1871, %v1873
        %v1875 = vrot.slane %v1862, 2
        %v1876 = vsel %vm421, %v1873, %v1875
        %v1881 = vadd.f32 %v1852, %v1870
        %v1882 = vadd.f32 %v1853, %v1872
        %v1883 = vadd.f32 %v1854, %v1874
        %v1884 = vadd.f32 %v1855, %v1876
        %s1885 = sld [smem:[#allocation9 + $0x2]]
        %v1886 = vstv %s1885
        %v1887 = vadd.f32 %v1881, %v1886
        %v1888 = vadd.f32 %v1882, %v1886
        %v1889 = vadd.f32 %v1883, %v1886
        %v1890 = vadd.f32 %v1884, %v1886
        %v1891 = vmax.f32 %v1887, 0.0
        %v1892 = vmax.f32 %v1888, 0.0
        %v1893 = vmax.f32 %v1889, 0.0
        %v1894 = vmax.f32 %v1890, 0.0
        %1895 = vst.msk [vmem:[#allocation2] sm:$0xff] %vm473, %v1891
        %1896 = vst.msk [vmem:[#allocation2 + $0x8] sm:$0xff] %vm473, %v1892
        %1897 = vst.msk [vmem:[#allocation2 + $0x10] sm:$0xff] %vm473, %v1893
        %1898 = vst.msk [vmem:[#allocation2 + $0x18] sm:$0x7f] %vm1329, %v1894
        %v1899 = vld [vmem:[#allocation2] ss:$2 sm:$0xff]
        %v1900 = vld [vmem:[%s483] ss:$2 sm:$0x7f]
        %v1901 = vld [vmem:[%s489] ss:$2 sm:$0xff]
        %v1902 = vld [vmem:[%s491] ss:$2 sm:$0x7f]
        %v1903 = vld [vmem:[%s497] ss:$2 sm:$0xff]
        %v1904 = vld [vmem:[%s499] ss:$2 sm:$0x7f]
        %v1905 = vmax.f32 %v1899, %v1901
        %v1906 = vmax.f32 %v1900, %v1902
        %v1907 = vmax.f32 %v1905, %v1903
        %v1908 = vmax.f32 %v1906, %v1904
        %v1911 = vrot.slane %v1907, 7
        %v1912 = vrot.slane %v1908, 7
        %v1913 = vsel %vm517, %v1911, %v1912
        %v1916 = vsel %vm517, 0.0, %v1911
        %s1917 = sld [smem:[#allocation8 + $0x24]]
        %v1918 = vstv %s1917
        %v1919 = vmul.f32 %v1918, %v529
        %v1920 = vmul.f32 %v1918, %v520
        %v1921 = vmul.f32 %v1918, %v522
        %v1922 = vmul.f32 %v1918, %v524
        %s1923 = sld [smem:[#allocation8 + $0x25]]
        %v1924 = vstv %s1923
        %v1925 = vmul.f32 %v1924, %v529
        %v1926 = vmul.f32 %v1924, %v520
        %v1927 = vmul.f32 %v1924, %v522
        %v1928 = vmul.f32 %v1924, %v524
        %v1933 = vrot.slane %v1925, 1
        %v1934 = vrot.slane %v1926, 1
        %v1935 = vsel %vm367, %v1933, %v1934
        %v1936 = vrot.slane %v1927, 1
        %v1937 = vsel %vm367, %v1934, %v1936
        %v1938 = vrot.slane %v1928, 1
        %v1939 = vsel %vm367, %v1936, %v1938
        %v1944 = vadd.f32 %v1919, %v1935
        %v1945 = vadd.f32 %v1920, %v1937
        %v1946 = vadd.f32 %v1921, %v1939
        %v1947 = vadd.f32 %v1922, %v1938
        %s1948 = sld [smem:[#allocation8 + $0x26]]
        %v1949 = vstv %s1948
        %v1950 = vmul.f32 %v1949, %v529
        %v1951 = vmul.f32 %v1949, %v520
        %v1952 = vmul.f32 %v1949, %v522
        %v1953 = vmul.f32 %v1949, %v524
        %v1954 = vmul.f32 %v1949, 0.0
        %v1960 = vrot.slane %v1950, 2
        %v1961 = vrot.slane %v1951, 2
        %v1962 = vsel %vm421, %v1960, %v1961
        %v1963 = vrot.slane %v1952, 2
        %v1964 = vsel %vm421, %v1961, %v1963
        %v1965 = vrot.slane %v1953, 2
        %v1966 = vsel %vm421, %v1963, %v1965
        %v1967 = vrot.slane %v1954, 2
        %v1968 = vsel %vm421, %v1965, %v1967
        %v1973 = vadd.f32 %v1944, %v1962
        %v1974 = vadd.f32 %v1945, %v1964
        %v1975 = vadd.f32 %v1946, %v1966
        %v1976 = vadd.f32 %v1947, %v1968
        %s1977 = sld [smem:[#allocation8 + $0x27]]
        %v1978 = vstv %s1977
        %v1979 = vmul.f32 %v1978, %v707
        %v1980 = vmul.f32 %v1978, %v698
        %v1981 = vmul.f32 %v1978, %v700
        %v1982 = vmul.f32 %v1978, %v702
        %v1983 = vadd.f32 %v1973, %v1979
        %v1984 = vadd.f32 %v1974, %v1980
        %v1985 = vadd.f32 %v1975, %v1981
        %v1986 = vadd.f32 %v1976, %v1982
        %s1987 = sld [smem:[#allocation8 + $0x28]]
        %v1988 = vstv %s1987
        %v1989 = vmul.f32 %v1988, %v707
        %v1990 = vmul.f32 %v1988, %v698
        %v1991 = vmul.f32 %v1988, %v700
        %v1992 = vmul.f32 %v1988, %v702
        %v1997 = vrot.slane %v1989, 1
        %v1998 = vrot.slane %v1990, 1
        %v1999 = vsel %vm367, %v1997, %v1998
        %v2000 = vrot.slane %v1991, 1
        %v2001 = vsel %vm367, %v1998, %v2000
        %v2002 = vrot.slane %v1992, 1
        %v2003 = vsel %vm367, %v2000, %v2002
        %v2008 = vadd.f32 %v1983, %v1999
        %v2009 = vadd.f32 %v1984, %v2001
        %v2010 = vadd.f32 %v1985, %v2003
        %v2011 = vadd.f32 %v1986, %v2002
        %s2012 = sld [smem:[#allocation8 + $0x29]]
        %v2013 = vstv %s2012
        %v2014 = vmul.f32 %v2013, %v707
        %v2015 = vmul.f32 %v2013, %v698
        %v2016 = vmul.f32 %v2013, %v700
        %v2017 = vmul.f32 %v2013, %v702
        %v2018 = vmul.f32 %v2013, 0.0
        %v2024 = vrot.slane %v2014, 2
        %v2025 = vrot.slane %v2015, 2
        %v2026 = vsel %vm421, %v2024, %v2025
        %v2027 = vrot.slane %v2016, 2
        %v2028 = vsel %vm421, %v2025, %v2027
        %v2029 = vrot.slane %v2017, 2
        %v2030 = vsel %vm421, %v2027, %v2029
        %v2031 = vrot.slane %v2018, 2
        %v2032 = vsel %vm421, %v2029, %v2031
        %v2037 = vadd.f32 %v2008, %v2026
        %v2038 = vadd.f32 %v2009, %v2028
        %v2039 = vadd.f32 %v2010, %v2030
        %v2040 = vadd.f32 %v2011, %v2032
        %s2041 = sld [smem:[#allocation8 + $0x2a]]
        %v2042 = vstv %s2041
        %v2043 = vmul.f32 %v2042, %v885
        %v2044 = vmul.f32 %v2042, %v876
        %v2045 = vmul.f32 %v2042, %v878
        %v2046 = vmul.f32 %v2042, %v880
        %v2047 = vadd.f32 %v2037, %v2043
        %v2048 = vadd.f32 %v2038, %v2044
        %v2049 = vadd.f32 %v2039, %v2045
        %v2050 = vadd.f32 %v2040, %v2046
        %s2051 = sld [smem:[#allocation8 + $0x2b]]
        %v2052 = vstv %s2051
        %v2053 = vmul.f32 %v2052, %v885
        %v2054 = vmul.f32 %v2052, %v876
        %v2055 = vmul.f32 %v2052, %v878
        %v2056 = vmul.f32 %v2052, %v880
        %v2061 = vrot.slane %v2053, 1
        %v2062 = vrot.slane %v2054, 1
        %v2063 = vsel %vm367, %v2061, %v2062
        %v2064 = vrot.slane %v2055, 1
        %v2065 = vsel %vm367, %v2062, %v2064
        %v2066 = vrot.slane %v2056, 1
        %v2067 = vsel %vm367, %v2064, %v2066
        %v2072 = vadd.f32 %v2047, %v2063
        %v2073 = vadd.f32 %v2048, %v2065
        %v2074 = vadd.f32 %v2049, %v2067
        %v2075 = vadd.f32 %v2050, %v2066
        %s2076 = sld [smem:[#allocation8 + $0x2c]]
        %v2077 = vstv %s2076
        %v2078 = vmul.f32 %v2077, %v885
        %v2079 = vmul.f32 %v2077, %v876
        %v2080 = vmul.f32 %v2077, %v878
        %v2081 = vmul.f32 %v2077, %v880
        %v2082 = vmul.f32 %v2077, 0.0
        %v2088 = vrot.slane %v2078, 2
        %v2089 = vrot.slane %v2079, 2
        %v2090 = vsel %vm421, %v2088, %v2089
        %v2091 = vrot.slane %v2080, 2
        %v2092 = vsel %vm421, %v2089, %v2091
        %v2093 = vrot.slane %v2081, 2
        %v2094 = vsel %vm421, %v2091, %v2093
        %v2095 = vrot.slane %v2082, 2
        %v2096 = vsel %vm421, %v2093, %v2095
        %v2101 = vadd.f32 %v2072, %v2090
        %v2102 = vadd.f32 %v2073, %v2092
        %v2103 = vadd.f32 %v2074, %v2094
        %v2104 = vadd.f32 %v2075, %v2096
        %s2105 = sld [smem:[#allocation8 + $0x2d]]
        %v2106 = vstv %s2105
        %v2107 = vmul.f32 %v2106, %v1063
        %v2108 = vmul.f32 %v2106, %v1054
        %v2109 = vmul.f32 %v2106, %v1056
        %v2110 = vmul.f32 %v2106, %v1058
        %v2111 = vadd.f32 %v2101, %v2107
        %v2112 = vadd.f32 %v2102, %v2108
        %v2113 = vadd.f32 %v2103, %v2109
        %v2114 = vadd.f32 %v2104, %v2110
        %s2115 = sld [smem:[#allocation8 + $0x2e]]
        %v2116 = vstv %s2115
        %v2117 = vmul.f32 %v2116, %v1063
        %v2118 = vmul.f32 %v2116, %v1054
        %v2119 = vmul.f32 %v2116, %v1056
        %v2120 = vmul.f32 %v2116, %v1058
        %v2125 = vrot.slane %v2117, 1
        %v2126 = vrot.slane %v2118, 1
        %v2127 = vsel %vm367, %v2125, %v2126
        %v2128 = vrot.slane %v2119, 1
        %v2129 = vsel %vm367, %v2126, %v2128
        %v2130 = vrot.slane %v2120, 1
        %v2131 = vsel %vm367, %v2128, %v2130
        %v2136 = vadd.f32 %v2111, %v2127
        %v2137 = vadd.f32 %v2112, %v2129
        %v2138 = vadd.f32 %v2113, %v2131
        %v2139 = vadd.f32 %v2114, %v2130
        %s2140 = sld [smem:[#allocation8 + $0x2f]]
        %v2141 = vstv %s2140
        %v2142 = vmul.f32 %v2141, %v1063
        %v2143 = vmul.f32 %v2141, %v1054
        %v2144 = vmul.f32 %v2141, %v1056
        %v2145 = vmul.f32 %v2141, %v1058
        %v2146 = vmul.f32 %v2141, 0.0
        %v2152 = vrot.slane %v2142, 2
        %v2153 = vrot.slane %v2143, 2
        %v2154 = vsel %vm421, %v2152, %v2153
        %v2155 = vrot.slane %v2144, 2
        %v2156 = vsel %vm421, %v2153, %v2155
        %v2157 = vrot.slane %v2145, 2
        %v2158 = vsel %vm421, %v2155, %v2157
        %v2159 = vrot.slane %v2146, 2
        %v2160 = vsel %vm421, %v2157, %v2159
        %v2165 = vadd.f32 %v2136, %v2154
        %v2166 = vadd.f32 %v2137, %v2156
        %v2167 = vadd.f32 %v2138, %v2158
        %v2168 = vadd.f32 %v2139, %v2160
        %s2169 = sld [smem:[#allocation9 + $0x3]]
        %v2170 = vstv %s2169
        %v2171 = vadd.f32 %v2165, %v2170
        %v2172 = vadd.f32 %v2166, %v2170
        %v2173 = vadd.f32 %v2167, %v2170
        %v2174 = vadd.f32 %v2168, %v2170
        %v2175 = vmax.f32 %v2171, 0.0
        %v2176 = vmax.f32 %v2172, 0.0
        %v2177 = vmax.f32 %v2173, 0.0
        %v2178 = vmax.f32 %v2174, 0.0
        %2179 = vst.msk [vmem:[#allocation2] sm:$0xff] %vm473, %v2175
        %2180 = vst.msk [vmem:[#allocation2 + $0x8] sm:$0xff] %vm473, %v2176
        %2181 = vst.msk [vmem:[#allocation2 + $0x10] sm:$0xff] %vm473, %v2177
        %2182 = vst.msk [vmem:[#allocation2 + $0x18] sm:$0x7f] %vm1329, %v2178
        %v2183 = vld [vmem:[#allocation2] ss:$2 sm:$0xff]
        %v2184 = vld [vmem:[%s483] ss:$2 sm:$0x7f]
        %v2185 = vld [vmem:[%s489] ss:$2 sm:$0xff]
        %v2186 = vld [vmem:[%s491] ss:$2 sm:$0x7f]
        %v2187 = vld [vmem:[%s497] ss:$2 sm:$0xff]
        %v2188 = vld [vmem:[%s499] ss:$2 sm:$0x7f]
        %v2189 = vmax.f32 %v2183, %v2185
        %v2190 = vmax.f32 %v2184, %v2186
        %v2191 = vmax.f32 %v2189, %v2187
        %v2192 = vmax.f32 %v2190, %v2188
        %v2195 = vrot.slane %v2191, 7
        %v2196 = vrot.slane %v2192, 7
        %v2197 = vsel %vm517, %v2195, %v2196
        %v2200 = vsel %vm517, 0.0, %v2195
        %s2201 = sld [smem:[#allocation8 + $0x30]]
        %v2202 = vstv %s2201
        %v2203 = vmul.f32 %v2202, %v529
        %v2204 = vmul.f32 %v2202, %v520
        %v2205 = vmul.f32 %v2202, %v522
        %v2206 = vmul.f32 %v2202, %v524
        %s2207 = sld [smem:[#allocation8 + $0x31]]
        %v2208 = vstv %s2207
        %v2209 = vmul.f32 %v2208, %v529
        %v2210 = vmul.f32 %v2208, %v520
        %v2211 = vmul.f32 %v2208, %v522
        %v2212 = vmul.f32 %v2208, %v524
        %v2217 = vrot.slane %v2209, 1
        %v2218 = vrot.slane %v2210, 1
        %v2219 = vsel %vm367, %v2217, %v2218
        %v2220 = vrot.slane %v2211, 1
        %v2221 = vsel %vm367, %v2218, %v2220
        %v2222 = vrot.slane %v2212, 1
        %v2223 = vsel %vm367, %v2220, %v2222
        %v2228 = vadd.f32 %v2203, %v2219
        %v2229 = vadd.f32 %v2204, %v2221
        %v2230 = vadd.f32 %v2205, %v2223
        %v2231 = vadd.f32 %v2206, %v2222
        %s2232 = sld [smem:[#allocation8 + $0x32]]
        %v2233 = vstv %s2232
        %v2234 = vmul.f32 %v2233, %v529
        %v2235 = vmul.f32 %v2233, %v520
        %v2236 = vmul.f32 %v2233, %v522
        %v2237 = vmul.f32 %v2233, %v524
        %v2238 = vmul.f32 %v2233, 0.0
        %v2244 = vrot.slane %v2234, 2
        %v2245 = vrot.slane %v2235, 2
        %v2246 = vsel %vm421, %v2244, %v2245
        %v2247 = vrot.slane %v2236, 2
        %v2248 = vsel %vm421, %v2245, %v2247
        %v2249 = vrot.slane %v2237, 2
        %v2250 = vsel %vm421, %v2247, %v2249
        %v2251 = vrot.slane %v2238, 2
        %v2252 = vsel %vm421, %v2249, %v2251
        %v2257 = vadd.f32 %v2228, %v2246
        %v2258 = vadd.f32 %v2229, %v2248
        %v2259 = vadd.f32 %v2230, %v2250
        %v2260 = vadd.f32 %v2231, %v2252
        %s2261 = sld [smem:[#allocation8 + $0x33]]
        %v2262 = vstv %s2261
        %v2263 = vmul.f32 %v2262, %v707
        %v2264 = vmul.f32 %v2262, %v698
        %v2265 = vmul.f32 %v2262, %v700
        %v2266 = vmul.f32 %v2262, %v702
        %v2267 = vadd.f32 %v2257, %v2263
        %v2268 = vadd.f32 %v2258, %v2264
        %v2269 = vadd.f32 %v2259, %v2265
        %v2270 = vadd.f32 %v2260, %v2266
        %s2271 = sld [smem:[#allocation8 + $0x34]]
        %v2272 = vstv %s2271
        %v2273 = vmul.f32 %v2272, %v707
        %v2274 = vmul.f32 %v2272, %v698
        %v2275 = vmul.f32 %v2272, %v700
        %v2276 = vmul.f32 %v2272, %v702
        %v2281 = vrot.slane %v2273, 1
        %v2282 = vrot.slane %v2274, 1
        %v2283 = vsel %vm367, %v2281, %v2282
        %v2284 = vrot.slane %v2275, 1
        %v2285 = vsel %vm367, %v2282, %v2284
        %v2286 = vrot.slane %v2276, 1
        %v2287 = vsel %vm367, %v2284, %v2286
        %v2292 = vadd.f32 %v2267, %v2283
        %v2293 = vadd.f32 %v2268, %v2285
        %v2294 = vadd.f32 %v2269, %v2287
        %v2295 = vadd.f32 %v2270, %v2286
        %s2296 = sld [smem:[#allocation8 + $0x35]]
        %v2297 = vstv %s2296
        %v2298 = vmul.f32 %v2297, %v707
        %v2299 = vmul.f32 %v2297, %v698
        %v2300 = vmul.f32 %v2297, %v700
        %v2301 = vmul.f32 %v2297, %v702
        %v2302 = vmul.f32 %v2297, 0.0
        %v2308 = vrot.slane %v2298, 2
        %v2309 = vrot.slane %v2299, 2
        %v2310 = vsel %vm421, %v2308, %v2309
        %v2311 = vrot.slane %v2300, 2
        %v2312 = vsel %vm421, %v2309, %v2311
        %v2313 = vrot.slane %v2301, 2
        %v2314 = vsel %vm421, %v2311, %v2313
        %v2315 = vrot.slane %v2302, 2
        %v2316 = vsel %vm421, %v2313, %v2315
        %v2321 = vadd.f32 %v2292, %v2310
        %v2322 = vadd.f32 %v2293, %v2312
        %v2323 = vadd.f32 %v2294, %v2314
        %v2324 = vadd.f32 %v2295, %v2316
        %s2325 = sld [smem:[#allocation8 + $0x36]]
        %v2326 = vstv %s2325
        %v2327 = vmul.f32 %v2326, %v885
        %v2328 = vmul.f32 %v2326, %v876
        %v2329 = vmul.f32 %v2326, %v878
        %v2330 = vmul.f32 %v2326, %v880
        %v2331 = vadd.f32 %v2321, %v2327
        %v2332 = vadd.f32 %v2322, %v2328
        %v2333 = vadd.f32 %v2323, %v2329
        %v2334 = vadd.f32 %v2324, %v2330
        %s2335 = sld [smem:[#allocation8 + $0x37]]
        %v2336 = vstv %s2335
        %v2337 = vmul.f32 %v2336, %v885
        %v2338 = vmul.f32 %v2336, %v876
        %v2339 = vmul.f32 %v2336, %v878
        %v2340 = vmul.f32 %v2336, %v880
        %v2345 = vrot.slane %v2337, 1
        %v2346 = vrot.slane %v2338, 1
        %v2347 = vsel %vm367, %v2345, %v2346
        %v2348 = vrot.slane %v2339, 1
        %v2349 = vsel %vm367, %v2346, %v2348
        %v2350 = vrot.slane %v2340, 1
        %v2351 = vsel %vm367, %v2348, %v2350
        %v2356 = vadd.f32 %v2331, %v2347
        %v2357 = vadd.f32 %v2332, %v2349
        %v2358 = vadd.f32 %v2333, %v2351
        %v2359 = vadd.f32 %v2334, %v2350
        %s2360 = sld [smem:[#allocation8 + $0x38]]
        %v2361 = vstv %s2360
        %v2362 = vmul.f32 %v2361, %v885
        %v2363 = vmul.f32 %v2361, %v876
        %v2364 = vmul.f32 %v2361, %v878
        %v2365 = vmul.f32 %v2361, %v880
        %v2366 = vmul.f32 %v2361, 0.0
        %v2372 = vrot.slane %v2362, 2
        %v2373 = vrot.slane %v2363, 2
        %v2374 = vsel %vm421, %v2372, %v2373
        %v2375 = vrot.slane %v2364, 2
        %v2376 = vsel %vm421, %v2373, %v2375
        %v2377 = vrot.slane %v2365, 2
        %v2378 = vsel %vm421, %v2375, %v2377
        %v2379 = vrot.slane %v2366, 2
        %v2380 = vsel %vm421, %v2377, %v2379
        %v2385 = vadd.f32 %v2356, %v2374
        %v2386 = vadd.f32 %v2357, %v2376
        %v2387 = vadd.f32 %v2358, %v2378
        %v2388 = vadd.f32 %v2359, %v2380
        %s2389 = sld [smem:[#allocation8 + $0x39]]
        %v2390 = vstv %s2389
        %v2391 = vmul.f32 %v2390, %v1063
        %v2392 = vmul.f32 %v2390, %v1054
        %v2393 = vmul.f32 %v2390, %v1056
        %v2394 = vmul.f32 %v2390, %v1058
        %v2395 = vadd.f32 %v2385, %v2391
        %v2396 = vadd.f32 %v2386, %v2392
        %v2397 = vadd.f32 %v2387, %v2393
        %v2398 = vadd.f32 %v2388, %v2394
        %s2399 = sld [smem:[#allocation8 + $0x3a]]
        %v2400 = vstv %s2399
        %v2401 = vmul.f32 %v2400, %v1063
        %v2402 = vmul.f32 %v2400, %v1054
        %v2403 = vmul.f32 %v2400, %v1056
        %v2404 = vmul.f32 %v2400, %v1058
        %v2409 = vrot.slane %v2401, 1
        %v2410 = vrot.slane %v2402, 1
        %v2411 = vsel %vm367, %v2409, %v2410
        %v2412 = vrot.slane %v2403, 1
        %v2413 = vsel %vm367, %v2410, %v2412
        %v2414 = vrot.slane %v2404, 1
        %v2415 = vsel %vm367, %v2412, %v2414
        %v2420 = vadd.f32 %v2395, %v2411
        %v2421 = vadd.f32 %v2396, %v2413
        %v2422 = vadd.f32 %v2397, %v2415
        %v2423 = vadd.f32 %v2398, %v2414
        %s2424 = sld [smem:[#allocation8 + $0x3b]]
        %v2425 = vstv %s2424
        %v2426 = vmul.f32 %v2425, %v1063
        %v2427 = vmul.f32 %v2425, %v1054
        %v2428 = vmul.f32 %v2425, %v1056
        %v2429 = vmul.f32 %v2425, %v1058
        %v2430 = vmul.f32 %v2425, 0.0
        %v2436 = vrot.slane %v2426, 2
        %v2437 = vrot.slane %v2427, 2
        %v2438 = vsel %vm421, %v2436, %v2437
        %v2439 = vrot.slane %v2428, 2
        %v2440 = vsel %vm421, %v2437, %v2439
        %v2441 = vrot.slane %v2429, 2
        %v2442 = vsel %vm421, %v2439, %v2441
        %v2443 = vrot.slane %v2430, 2
        %v2444 = vsel %vm421, %v2441, %v2443
        %v2449 = vadd.f32 %v2420, %v2438
        %v2450 = vadd.f32 %v2421, %v2440
        %v2451 = vadd.f32 %v2422, %v2442
        %v2452 = vadd.f32 %v2423, %v2444
        %s2453 = sld [smem:[#allocation9 + $0x4]]
        %v2454 = vstv %s2453
        %v2455 = vadd.f32 %v2449, %v2454
        %v2456 = vadd.f32 %v2450, %v2454
        %v2457 = vadd.f32 %v2451, %v2454
        %v2458 = vadd.f32 %v2452, %v2454
        %v2459 = vmax.f32 %v2455, 0.0
        %v2460 = vmax.f32 %v2456, 0.0
        %v2461 = vmax.f32 %v2457, 0.0
        %v2462 = vmax.f32 %v2458, 0.0
        %2463 = vst.msk [vmem:[#allocation2] sm:$0xff] %vm473, %v2459
        %2464 = vst.msk [vmem:[#allocation2 + $0x8] sm:$0xff] %vm473, %v2460
        %2465 = vst.msk [vmem:[#allocation2 + $0x10] sm:$0xff] %vm473, %v2461
        %2466 = vst.msk [vmem:[#allocation2 + $0x18] sm:$0x7f] %vm1329, %v2462
        %v2467 = vld [vmem:[#allocation2] ss:$2 sm:$0xff]
        %v2468 = vld [vmem:[%s483] ss:$2 sm:$0x7f]
        %v2469 = vld [vmem:[%s489] ss:$2 sm:$0xff]
        %v2470 = vld [vmem:[%s491] ss:$2 sm:$0x7f]
        %v2471 = vld [vmem:[%s497] ss:$2 sm:$0xff]
        %v2472 = vld [vmem:[%s499] ss:$2 sm:$0x7f]
        %v2473 = vmax.f32 %v2467, %v2469
        %v2474 = vmax.f32 %v2468, %v2470
        %v2475 = vmax.f32 %v2473, %v2471
        %v2476 = vmax.f32 %v2474, %v2472
        %v2479 = vrot.slane %v2475, 7
        %v2480 = vrot.slane %v2476, 7
        %v2481 = vsel %vm517, %v2479, %v2480
        %v2484 = vsel %vm517, 0.0, %v2479
        %s2485 = sld [smem:[#allocation8 + $0x3c]]
        %v2486 = vstv %s2485
        %v2487 = vmul.f32 %v2486, %v529
        %v2488 = vmul.f32 %v2486, %v520
        %v2489 = vmul.f32 %v2486, %v522
        %v2490 = vmul.f32 %v2486, %v524
        %s2491 = sld [smem:[#allocation8 + $0x3d]]
        %v2492 = vstv %s2491
        %v2493 = vmul.f32 %v2492, %v529
        %v2494 = vmul.f32 %v2492, %v520
        %v2495 = vmul.f32 %v2492, %v522
        %v2496 = vmul.f32 %v2492, %v524
        %v2501 = vrot.slane %v2493, 1
        %v2502 = vrot.slane %v2494, 1
        %v2503 = vsel %vm367, %v2501, %v2502
        %v2504 = vrot.slane %v2495, 1
        %v2505 = vsel %vm367, %v2502, %v2504
        %v2506 = vrot.slane %v2496, 1
        %v2507 = vsel %vm367, %v2504, %v2506
        %v2512 = vadd.f32 %v2487, %v2503
        %v2513 = vadd.f32 %v2488, %v2505
        %v2514 = vadd.f32 %v2489, %v2507
        %v2515 = vadd.f32 %v2490, %v2506
        %s2516 = sld [smem:[#allocation8 + $0x3e]]
        %v2517 = vstv %s2516
        %v2518 = vmul.f32 %v2517, %v529
        %v2519 = vmul.f32 %v2517, %v520
        %v2520 = vmul.f32 %v2517, %v522
        %v2521 = vmul.f32 %v2517, %v524
        %v2522 = vmul.f32 %v2517, 0.0
        %v2528 = vrot.slane %v2518, 2
        %v2529 = vrot.slane %v2519, 2
        %v2530 = vsel %vm421, %v2528, %v2529
        %v2531 = vrot.slane %v2520, 2
        %v2532 = vsel %vm421, %v2529, %v2531
        %v2533 = vrot.slane %v2521, 2
        %v2534 = vsel %vm421, %v2531, %v2533
        %v2535 = vrot.slane %v2522, 2
        %v2536 = vsel %vm421, %v2533, %v2535
        %v2541 = vadd.f32 %v2512, %v2530
        %v2542 = vadd.f32 %v2513, %v2532
        %v2543 = vadd.f32 %v2514, %v2534
        %v2544 = vadd.f32 %v2515, %v2536
        %s2545 = sld [smem:[#allocation8 + $0x3f]]
        %v2546 = vstv %s2545
        %v2547 = vmul.f32 %v2546, %v707
        %v2548 = vmul.f32 %v2546, %v698
        %v2549 = vmul.f32 %v2546, %v700
        %v2550 = vmul.f32 %v2546, %v702
        %v2551 = vadd.f32 %v2541, %v2547
        %v2552 = vadd.f32 %v2542, %v2548
        %v2553 = vadd.f32 %v2543, %v2549
        %v2554 = vadd.f32 %v2544, %v2550
        %s2555 = sld [smem:[#allocation8 + $0x40]]
        %v2556 = vstv %s2555
        %v2557 = vmul.f32 %v2556, %v707
        %v2558 = vmul.f32 %v2556, %v698
        %v2559 = vmul.f32 %v2556, %v700
        %v2560 = vmul.f32 %v2556, %v702
        %v2565 = vrot.slane %v2557, 1
        %v2566 = vrot.slane %v2558, 1
        %v2567 = vsel %vm367, %v2565, %v2566
        %v2568 = vrot.slane %v2559, 1
        %v2569 = vsel %vm367, %v2566, %v2568
        %v2570 = vrot.slane %v2560, 1
        %v2571 = vsel %vm367, %v2568, %v2570
        %v2576 = vadd.f32 %v2551, %v2567
        %v2577 = vadd.f32 %v2552, %v2569
        %v2578 = vadd.f32 %v2553, %v2571
        %v2579 = vadd.f32 %v2554, %v2570
        %s2580 = sld [smem:[#allocation8 + $0x41]]
        %v2581 = vstv %s2580
        %v2582 = vmul.f32 %v2581, %v707
        %v2583 = vmul.f32 %v2581, %v698
        %v2584 = vmul.f32 %v2581, %v700
        %v2585 = vmul.f32 %v2581, %v702
        %v2586 = vmul.f32 %v2581, 0.0
        %v2592 = vrot.slane %v2582, 2
        %v2593 = vrot.slane %v2583, 2
        %v2594 = vsel %vm421, %v2592, %v2593
        %v2595 = vrot.slane %v2584, 2
        %v2596 = vsel %vm421, %v2593, %v2595
        %v2597 = vrot.slane %v2585, 2
        %v2598 = vsel %vm421, %v2595, %v2597
        %v2599 = vrot.slane %v2586, 2
        %v2600 = vsel %vm421, %v2597, %v2599
        %v2605 = vadd.f32 %v2576, %v2594
        %v2606 = vadd.f32 %v2577, %v2596
        %v2607 = vadd.f32 %v2578, %v2598
        %v2608 = vadd.f32 %v2579, %v2600
        %s2609 = sld [smem:[#allocation8 + $0x42]]
        %v2610 = vstv %s2609
        %v2611 = vmul.f32 %v2610, %v885
        %v2612 = vmul.f32 %v2610, %v876
        %v2613 = vmul.f32 %v2610, %v878
        %v2614 = vmul.f32 %v2610, %v880
        %v2615 = vadd.f32 %v2605, %v2611
        %v2616 = vadd.f32 %v2606, %v2612
        %v2617 = vadd.f32 %v2607, %v2613
        %v2618 = vadd.f32 %v2608, %v2614
        %s2619 = sld [smem:[#allocation8 + $0x43]]
        %v2620 = vstv %s2619
        %v2621 = vmul.f32 %v2620, %v885
        %v2622 = vmul.f32 %v2620, %v876
        %v2623 = vmul.f32 %v2620, %v878
        %v2624 = vmul.f32 %v2620, %v880
        %v2629 = vrot.slane %v2621, 1
        %v2630 = vrot.slane %v2622, 1
        %v2631 = vsel %vm367, %v2629, %v2630
        %v2632 = vrot.slane %v2623, 1
        %v2633 = vsel %vm367, %v2630, %v2632
        %v2634 = vrot.slane %v2624, 1
        %v2635 = vsel %vm367, %v2632, %v2634
        %v2640 = vadd.f32 %v2615, %v2631
        %v2641 = vadd.f32 %v2616, %v2633
        %v2642 = vadd.f32 %v2617, %v2635
        %v2643 = vadd.f32 %v2618, %v2634
        %s2644 = sld [smem:[#allocation8 + $0x44]]
        %v2645 = vstv %s2644
        %v2646 = vmul.f32 %v2645, %v885
        %v2647 = vmul.f32 %v2645, %v876
        %v2648 = vmul.f32 %v2645, %v878
        %v2649 = vmul.f32 %v2645, %v880
        %v2650 = vmul.f32 %v2645, 0.0
        %v2656 = vrot.slane %v2646, 2
        %v2657 = vrot.slane %v2647, 2
        %v2658 = vsel %vm421, %v2656, %v2657
        %v2659 = vrot.slane %v2648, 2
        %v2660 = vsel %vm421, %v2657, %v2659
        %v2661 = vrot.slane %v2649, 2
        %v2662 = vsel %vm421, %v2659, %v2661
        %v2663 = vrot.slane %v2650, 2
        %v2664 = vsel %vm421, %v2661, %v2663
        %v2669 = vadd.f32 %v2640, %v2658
        %v2670 = vadd.f32 %v2641, %v2660
        %v2671 = vadd.f32 %v2642, %v2662
        %v2672 = vadd.f32 %v2643, %v2664
        %s2673 = sld [smem:[#allocation8 + $0x45]]
        %v2674 = vstv %s2673
        %v2675 = vmul.f32 %v2674, %v1063
        %v2676 = vmul.f32 %v2674, %v1054
        %v2677 = vmul.f32 %v2674, %v1056
        %v2678 = vmul.f32 %v2674, %v1058
        %v2679 = vadd.f32 %v2669, %v2675
        %v2680 = vadd.f32 %v2670, %v2676
        %v2681 = vadd.f32 %v2671, %v2677
        %v2682 = vadd.f32 %v2672, %v2678
        %s2683 = sld [smem:[#allocation8 + $0x46]]
        %v2684 = vstv %s2683
        %v2685 = vmul.f32 %v2684, %v1063
        %v2686 = vmul.f32 %v2684, %v1054
        %v2687 = vmul.f32 %v2684, %v1056
        %v2688 = vmul.f32 %v2684, %v1058
        %v2693 = vrot.slane %v2685, 1
        %v2694 = vrot.slane %v2686, 1
        %v2695 = vsel %vm367, %v2693, %v2694
        %v2696 = vrot.slane %v2687, 1
        %v2697 = vsel %vm367, %v2694, %v2696
        %v2698 = vrot.slane %v2688, 1
        %v2699 = vsel %vm367, %v2696, %v2698
        %v2704 = vadd.f32 %v2679, %v2695
        %v2705 = vadd.f32 %v2680, %v2697
        %v2706 = vadd.f32 %v2681, %v2699
        %v2707 = vadd.f32 %v2682, %v2698
        %s2708 = sld [smem:[#allocation8 + $0x47]]
        %v2709 = vstv %s2708
        %v2710 = vmul.f32 %v2709, %v1063
        %v2711 = vmul.f32 %v2709, %v1054
        %v2712 = vmul.f32 %v2709, %v1056
        %v2713 = vmul.f32 %v2709, %v1058
        %v2714 = vmul.f32 %v2709, 0.0
        %v2720 = vrot.slane %v2710, 2
        %v2721 = vrot.slane %v2711, 2
        %v2722 = vsel %vm421, %v2720, %v2721
        %v2723 = vrot.slane %v2712, 2
        %v2724 = vsel %vm421, %v2721, %v2723
        %v2725 = vrot.slane %v2713, 2
        %v2726 = vsel %vm421, %v2723, %v2725
        %v2727 = vrot.slane %v2714, 2
        %v2728 = vsel %vm421, %v2725, %v2727
        %v2733 = vadd.f32 %v2704, %v2722
        %v2734 = vadd.f32 %v2705, %v2724
        %v2735 = vadd.f32 %v2706, %v2726
        %v2736 = vadd.f32 %v2707, %v2728
        %s2737 = sld [smem:[#allocation9 + $0x5]]
        %v2738 = vstv %s2737
        %v2739 = vadd.f32 %v2733, %v2738
        %v2740 = vadd.f32 %v2734, %v2738
        %v2741 = vadd.f32 %v2735, %v2738
        %v2742 = vadd.f32 %v2736, %v2738
        %v2743 = vmax.f32 %v2739, 0.0
        %v2744 = vmax.f32 %v2740, 0.0
        %v2745 = vmax.f32 %v2741, 0.0
        %v2746 = vmax.f32 %v2742, 0.0
        %2747 = vst.msk [vmem:[#allocation2] sm:$0xff] %vm473, %v2743
        %2748 = vst.msk [vmem:[#allocation2 + $0x8] sm:$0xff] %vm473, %v2744
        %2749 = vst.msk [vmem:[#allocation2 + $0x10] sm:$0xff] %vm473, %v2745
        %2750 = vst.msk [vmem:[#allocation2 + $0x18] sm:$0x7f] %vm1329, %v2746
        %v2751 = vld [vmem:[#allocation2] ss:$2 sm:$0xff]
        %v2752 = vld [vmem:[%s483] ss:$2 sm:$0x7f]
        %v2753 = vld [vmem:[%s489] ss:$2 sm:$0xff]
        %v2754 = vld [vmem:[%s491] ss:$2 sm:$0x7f]
        %v2755 = vld [vmem:[%s497] ss:$2 sm:$0xff]
        %v2756 = vld [vmem:[%s499] ss:$2 sm:$0x7f]
        %v2757 = vmax.f32 %v2751, %v2753
        %v2758 = vmax.f32 %v2752, %v2754
        %v2759 = vmax.f32 %v2757, %v2755
        %v2760 = vmax.f32 %v2758, %v2756
        %v2763 = vrot.slane %v2759, 7
        %v2764 = vrot.slane %v2760, 7
        %v2765 = vsel %vm517, %v2763, %v2764
        %v2768 = vsel %vm517, 0.0, %v2763
        %s2769 = sld [smem:[#allocation8 + $0x48]]
        %v2770 = vstv %s2769
        %v2771 = vmul.f32 %v2770, %v529
        %v2772 = vmul.f32 %v2770, %v520
        %v2773 = vmul.f32 %v2770, %v522
        %v2774 = vmul.f32 %v2770, %v524
        %s2775 = sld [smem:[#allocation8 + $0x49]]
        %v2776 = vstv %s2775
        %v2777 = vmul.f32 %v2776, %v529
        %v2778 = vmul.f32 %v2776, %v520
        %v2779 = vmul.f32 %v2776, %v522
        %v2780 = vmul.f32 %v2776, %v524
        %v2785 = vrot.slane %v2777, 1
        %v2786 = vrot.slane %v2778, 1
        %v2787 = vsel %vm367, %v2785, %v2786
        %v2788 = vrot.slane %v2779, 1
        %v2789 = vsel %vm367, %v2786, %v2788
        %v2790 = vrot.slane %v2780, 1
        %v2791 = vsel %vm367, %v2788, %v2790
        %v2796 = vadd.f32 %v2771, %v2787
        %v2797 = vadd.f32 %v2772, %v2789
        %v2798 = vadd.f32 %v2773, %v2791
        %v2799 = vadd.f32 %v2774, %v2790
        %s2800 = sld [smem:[#allocation8 + $0x4a]]
        %v2801 = vstv %s2800
        %v2802 = vmul.f32 %v2801, %v529
        %v2803 = vmul.f32 %v2801, %v520
        %v2804 = vmul.f32 %v2801, %v522
        %v2805 = vmul.f32 %v2801, %v524
        %v2806 = vmul.f32 %v2801, 0.0
        %v2812 = vrot.slane %v2802, 2
        %v2813 = vrot.slane %v2803, 2
        %v2814 = vsel %vm421, %v2812, %v2813
        %v2815 = vrot.slane %v2804, 2
        %v2816 = vsel %vm421, %v2813, %v2815
        %v2817 = vrot.slane %v2805, 2
        %v2818 = vsel %vm421, %v2815, %v2817
        %v2819 = vrot.slane %v2806, 2
        %v2820 = vsel %vm421, %v2817, %v2819
        %v2825 = vadd.f32 %v2796, %v2814
        %v2826 = vadd.f32 %v2797, %v2816
        %v2827 = vadd.f32 %v2798, %v2818
        %v2828 = vadd.f32 %v2799, %v2820
        %s2829 = sld [smem:[#allocation8 + $0x4b]]
        %v2830 = vstv %s2829
        %v2831 = vmul.f32 %v2830, %v707
        %v2832 = vmul.f32 %v2830, %v698
        %v2833 = vmul.f32 %v2830, %v700
        %v2834 = vmul.f32 %v2830, %v702
        %v2835 = vadd.f32 %v2825, %v2831
        %v2836 = vadd.f32 %v2826, %v2832
        %v2837 = vadd.f32 %v2827, %v2833
        %v2838 = vadd.f32 %v2828, %v2834
        %s2839 = sld [smem:[#allocation8 + $0x4c]]
        %v2840 = vstv %s2839
        %v2841 = vmul.f32 %v2840, %v707
        %v2842 = vmul.f32 %v2840, %v698
        %v2843 = vmul.f32 %v2840, %v700
        %v2844 = vmul.f32 %v2840, %v702
        %v2849 = vrot.slane %v2841, 1
        %v2850 = vrot.slane %v2842, 1
        %v2851 = vsel %vm367, %v2849, %v2850
        %v2852 = vrot.slane %v2843, 1
        %v2853 = vsel %vm367, %v2850, %v2852
        %v2854 = vrot.slane %v2844, 1
        %v2855 = vsel %vm367, %v2852, %v2854
        %v2860 = vadd.f32 %v2835, %v2851
        %v2861 = vadd.f32 %v2836, %v2853
        %v2862 = vadd.f32 %v2837, %v2855
        %v2863 = vadd.f32 %v2838, %v2854
        %s2864 = sld [smem:[#allocation8 + $0x4d]]
        %v2865 = vstv %s2864
        %v2866 = vmul.f32 %v2865, %v707
        %v2867 = vmul.f32 %v2865, %v698
        %v2868 = vmul.f32 %v2865, %v700
        %v2869 = vmul.f32 %v2865, %v702
        %v2870 = vmul.f32 %v2865, 0.0
        %v2876 = vrot.slane %v2866, 2
        %v2877 = vrot.slane %v2867, 2
        %v2878 = vsel %vm421, %v2876, %v2877
        %v2879 = vrot.slane %v2868, 2
        %v2880 = vsel %vm421, %v2877, %v2879
        %v2881 = vrot.slane %v2869, 2
        %v2882 = vsel %vm421, %v2879, %v2881
        %v2883 = vrot.slane %v2870, 2
        %v2884 = vsel %vm421, %v2881, %v2883
        %v2889 = vadd.f32 %v2860, %v2878
        %v2890 = vadd.f32 %v2861, %v2880
        %v2891 = vadd.f32 %v2862, %v2882
        %v2892 = vadd.f32 %v2863, %v2884
        %s2893 = sld [smem:[#allocation8 + $0x4e]]
        %v2894 = vstv %s2893
        %v2895 = vmul.f32 %v2894, %v885
        %v2896 = vmul.f32 %v2894, %v876
        %v2897 = vmul.f32 %v2894, %v878
        %v2898 = vmul.f32 %v2894, %v880
        %v2899 = vadd.f32 %v2889, %v2895
        %v2900 = vadd.f32 %v2890, %v2896
        %v2901 = vadd.f32 %v2891, %v2897
        %v2902 = vadd.f32 %v2892, %v2898
        %s2903 = sld [smem:[#allocation8 + $0x4f]]
        %v2904 = vstv %s2903
        %v2905 = vmul.f32 %v2904, %v885
        %v2906 = vmul.f32 %v2904, %v876
        %v2907 = vmul.f32 %v2904, %v878
        %v2908 = vmul.f32 %v2904, %v880
        %v2913 = vrot.slane %v2905, 1
        %v2914 = vrot.slane %v2906, 1
        %v2915 = vsel %vm367, %v2913, %v2914
        %v2916 = vrot.slane %v2907, 1
        %v2917 = vsel %vm367, %v2914, %v2916
        %v2918 = vrot.slane %v2908, 1
        %v2919 = vsel %vm367, %v2916, %v2918
        %v2924 = vadd.f32 %v2899, %v2915
        %v2925 = vadd.f32 %v2900, %v2917
        %v2926 = vadd.f32 %v2901, %v2919
        %v2927 = vadd.f32 %v2902, %v2918
        %s2928 = sld [smem:[#allocation8 + $0x50]]
        %v2929 = vstv %s2928
        %v2930 = vmul.f32 %v2929, %v885
        %v2931 = vmul.f32 %v2929, %v876
        %v2932 = vmul.f32 %v2929, %v878
        %v2933 = vmul.f32 %v2929, %v880
        %v2934 = vmul.f32 %v2929, 0.0
        %v2940 = vrot.slane %v2930, 2
        %v2941 = vrot.slane %v2931, 2
        %v2942 = vsel %vm421, %v2940, %v2941
        %v2943 = vrot.slane %v2932, 2
        %v2944 = vsel %vm421, %v2941, %v2943
        %v2945 = vrot.slane %v2933, 2
        %v2946 = vsel %vm421, %v2943, %v2945
        %v2947 = vrot.slane %v2934, 2
        %v2948 = vsel %vm421, %v2945, %v2947
        %v2953 = vadd.f32 %v2924, %v2942
        %v2954 = vadd.f32 %v2925, %v2944
        %v2955 = vadd.f32 %v2926, %v2946
        %v2956 = vadd.f32 %v2927, %v2948
        %s2957 = sld [smem:[#allocation8 + $0x51]]
        %v2958 = vstv %s2957
        %v2959 = vmul.f32 %v2958, %v1063
        %v2960 = vmul.f32 %v2958, %v1054
        %v2961 = vmul.f32 %v2958, %v1056
        %v2962 = vmul.f32 %v2958, %v1058
        %v2963 = vadd.f32 %v2953, %v2959
        %v2964 = vadd.f32 %v2954, %v2960
        %v2965 = vadd.f32 %v2955, %v2961
        %v2966 = vadd.f32 %v2956, %v2962
        %s2967 = sld [smem:[#allocation8 + $0x52]]
        %v2968 = vstv %s2967
        %v2969 = vmul.f32 %v2968, %v1063
        %v2970 = vmul.f32 %v2968, %v1054
        %v2971 = vmul.f32 %v2968, %v1056
        %v2972 = vmul.f32 %v2968, %v1058
        %v2977 = vrot.slane %v2969, 1
        %v2978 = vrot.slane %v2970, 1
        %v2979 = vsel %vm367, %v2977, %v2978
        %v2980 = vrot.slane %v2971, 1
        %v2981 = vsel %vm367, %v2978, %v2980
        %v2982 = vrot.slane %v2972, 1
        %v2983 = vsel %vm367, %v2980, %v2982
        %v2988 = vadd.f32 %v2963, %v2979
        %v2989 = vadd.f32 %v2964, %v2981
        %v2990 = vadd.f32 %v2965, %v2983
        %v2991 = vadd.f32 %v2966, %v2982
        %s2992 = sld [smem:[#allocation8 + $0x53]]
        %v2993 = vstv %s2992
        %v2994 = vmul.f32 %v2993, %v1063
        %v2995 = vmul.f32 %v2993, %v1054
        %v2996 = vmul.f32 %v2993, %v1056
        %v2997 = vmul.f32 %v2993, %v1058
        %v2998 = vmul.f32 %v2993, 0.0
        %v3004 = vrot.slane %v2994, 2
        %v3005 = vrot.slane %v2995, 2
        %v3006 = vsel %vm421, %v3004, %v3005
        %v3007 = vrot.slane %v2996, 2
        %v3008 = vsel %vm421, %v3005, %v3007
        %v3009 = vrot.slane %v2997, 2
        %v3010 = vsel %vm421, %v3007, %v3009
        %v3011 = vrot.slane %v2998, 2
        %v3012 = vsel %vm421, %v3009, %v3011
        %v3017 = vadd.f32 %v2988, %v3006
        %v3018 = vadd.f32 %v2989, %v3008
        %v3019 = vadd.f32 %v2990, %v3010
        %v3020 = vadd.f32 %v2991, %v3012
        %s3021 = sld [smem:[#allocation9 + $0x6]]
        %v3022 = vstv %s3021
        %v3023 = vadd.f32 %v3017, %v3022
        %v3024 = vadd.f32 %v3018, %v3022
        %v3025 = vadd.f32 %v3019, %v3022
        %v3026 = vadd.f32 %v3020, %v3022
        %v3027 = vmax.f32 %v3023, 0.0
        %v3028 = vmax.f32 %v3024, 0.0
        %v3029 = vmax.f32 %v3025, 0.0
        %v3030 = vmax.f32 %v3026, 0.0
        %3031 = vst.msk [vmem:[#allocation2] sm:$0xff] %vm473, %v3027
        %3032 = vst.msk [vmem:[#allocation2 + $0x8] sm:$0xff] %vm473, %v3028
        %3033 = vst.msk [vmem:[#allocation2 + $0x10] sm:$0xff] %vm473, %v3029
        %3034 = vst.msk [vmem:[#allocation2 + $0x18] sm:$0x7f] %vm1329, %v3030
        %v3035 = vld [vmem:[#allocation2] ss:$2 sm:$0xff]
        %v3036 = vld [vmem:[%s483] ss:$2 sm:$0x7f]
        %v3037 = vld [vmem:[%s489] ss:$2 sm:$0xff]
        %v3038 = vld [vmem:[%s491] ss:$2 sm:$0x7f]
        %v3039 = vld [vmem:[%s497] ss:$2 sm:$0xff]
        %v3040 = vld [vmem:[%s499] ss:$2 sm:$0x7f]
        %v3041 = vmax.f32 %v3035, %v3037
        %v3042 = vmax.f32 %v3036, %v3038
        %v3043 = vmax.f32 %v3041, %v3039
        %v3044 = vmax.f32 %v3042, %v3040
        %v3047 = vrot.slane %v3043, 7
        %v3048 = vrot.slane %v3044, 7
        %v3049 = vsel %vm517, %v3047, %v3048
        %v3052 = vsel %vm517, 0.0, %v3047
        %s3053 = sld [smem:[#allocation8 + $0x54]]
        %v3054 = vstv %s3053
        %v3055 = vmul.f32 %v3054, %v529
        %v3056 = vmul.f32 %v3054, %v520
        %v3057 = vmul.f32 %v3054, %v522
        %v3058 = vmul.f32 %v3054, %v524
        %s3059 = sld [smem:[#allocation8 + $0x55]]
        %v3060 = vstv %s3059
        %v3061 = vmul.f32 %v3060, %v529
        %v3062 = vmul.f32 %v3060, %v520
        %v3063 = vmul.f32 %v3060, %v522
        %v3064 = vmul.f32 %v3060, %v524
        %v3069 = vrot.slane %v3061, 1
        %v3070 = vrot.slane %v3062, 1
        %v3071 = vsel %vm367, %v3069, %v3070
        %v3072 = vrot.slane %v3063, 1
        %v3073 = vsel %vm367, %v3070, %v3072
        %v3074 = vrot.slane %v3064, 1
        %v3075 = vsel %vm367, %v3072, %v3074
        %v3080 = vadd.f32 %v3055, %v3071
        %v3081 = vadd.f32 %v3056, %v3073
        %v3082 = vadd.f32 %v3057, %v3075
        %v3083 = vadd.f32 %v3058, %v3074
        %s3084 = sld [smem:[#allocation8 + $0x56]]
        %v3085 = vstv %s3084
        %v3086 = vmul.f32 %v3085, %v529
        %v3087 = vmul.f32 %v3085, %v520
        %v3088 = vmul.f32 %v3085, %v522
        %v3089 = vmul.f32 %v3085, %v524
        %v3090 = vmul.f32 %v3085, 0.0
        %v3096 = vrot.slane %v3086, 2
        %v3097 = vrot.slane %v3087, 2
        %v3098 = vsel %vm421, %v3096, %v3097
        %v3099 = vrot.slane %v3088, 2
        %v3100 = vsel %vm421, %v3097, %v3099
        %v3101 = vrot.slane %v3089, 2
        %v3102 = vsel %vm421, %v3099, %v3101
        %v3103 = vrot.slane %v3090, 2
        %v3104 = vsel %vm421, %v3101, %v3103
        %v3109 = vadd.f32 %v3080, %v3098
        %v3110 = vadd.f32 %v3081, %v3100
        %v3111 = vadd.f32 %v3082, %v3102
        %v3112 = vadd.f32 %v3083, %v3104
        %s3113 = sld [smem:[#allocation8 + $0x57]]
        %v3114 = vstv %s3113
        %v3115 = vmul.f32 %v3114, %v707
        %v3116 = vmul.f32 %v3114, %v698
        %v3117 = vmul.f32 %v3114, %v700
        %v3118 = vmul.f32 %v3114, %v702
        %v3119 = vadd.f32 %v3109, %v3115
        %v3120 = vadd.f32 %v3110, %v3116
        %v3121 = vadd.f32 %v3111, %v3117
        %v3122 = vadd.f32 %v3112, %v3118
        %s3123 = sld [smem:[#allocation8 + $0x58]]
        %v3124 = vstv %s3123
        %v3125 = vmul.f32 %v3124, %v707
        %v3126 = vmul.f32 %v3124, %v698
        %v3127 = vmul.f32 %v3124, %v700
        %v3128 = vmul.f32 %v3124, %v702
        %v3133 = vrot.slane %v3125, 1
        %v3134 = vrot.slane %v3126, 1
        %v3135 = vsel %vm367, %v3133, %v3134
        %v3136 = vrot.slane %v3127, 1
        %v3137 = vsel %vm367, %v3134, %v3136
        %v3138 = vrot.slane %v3128, 1
        %v3139 = vsel %vm367, %v3136, %v3138
        %v3144 = vadd.f32 %v3119, %v3135
        %v3145 = vadd.f32 %v3120, %v3137
        %v3146 = vadd.f32 %v3121, %v3139
        %v3147 = vadd.f32 %v3122, %v3138
        %s3148 = sld [smem:[#allocation8 + $0x59]]
        %v3149 = vstv %s3148
        %v3150 = vmul.f32 %v3149, %v707
        %v3151 = vmul.f32 %v3149, %v698
        %v3152 = vmul.f32 %v3149, %v700
        %v3153 = vmul.f32 %v3149, %v702
        %v3154 = vmul.f32 %v3149, 0.0
        %v3160 = vrot.slane %v3150, 2
        %v3161 = vrot.slane %v3151, 2
        %v3162 = vsel %vm421, %v3160, %v3161
        %v3163 = vrot.slane %v3152, 2
        %v3164 = vsel %vm421, %v3161, %v3163
        %v3165 = vrot.slane %v3153, 2
        %v3166 = vsel %vm421, %v3163, %v3165
        %v3167 = vrot.slane %v3154, 2
        %v3168 = vsel %vm421, %v3165, %v3167
        %v3173 = vadd.f32 %v3144, %v3162
        %v3174 = vadd.f32 %v3145, %v3164
        %v3175 = vadd.f32 %v3146, %v3166
        %v3176 = vadd.f32 %v3147, %v3168
        %s3177 = sld [smem:[#allocation8 + $0x5a]]
        %v3178 = vstv %s3177
        %v3179 = vmul.f32 %v3178, %v885
        %v3180 = vmul.f32 %v3178, %v876
        %v3181 = vmul.f32 %v3178, %v878
        %v3182 = vmul.f32 %v3178, %v880
        %v3183 = vadd.f32 %v3173, %v3179
        %v3184 = vadd.f32 %v3174, %v3180
        %v3185 = vadd.f32 %v3175, %v3181
        %v3186 = vadd.f32 %v3176, %v3182
        %s3187 = sld [smem:[#allocation8 + $0x5b]]
        %v3188 = vstv %s3187
        %v3189 = vmul.f32 %v3188, %v885
        %v3190 = vmul.f32 %v3188, %v876
        %v3191 = vmul.f32 %v3188, %v878
        %v3192 = vmul.f32 %v3188, %v880
        %v3197 = vrot.slane %v3189, 1
        %v3198 = vrot.slane %v3190, 1
        %v3199 = vsel %vm367, %v3197, %v3198
        %v3200 = vrot.slane %v3191, 1
        %v3201 = vsel %vm367, %v3198, %v3200
        %v3202 = vrot.slane %v3192, 1
        %v3203 = vsel %vm367, %v3200, %v3202
        %v3208 = vadd.f32 %v3183, %v3199
        %v3209 = vadd.f32 %v3184, %v3201
        %v3210 = vadd.f32 %v3185, %v3203
        %v3211 = vadd.f32 %v3186, %v3202
        %s3212 = sld [smem:[#allocation8 + $0x5c]]
        %v3213 = vstv %s3212
        %v3214 = vmul.f32 %v3213, %v885
        %v3215 = vmul.f32 %v3213, %v876
        %v3216 = vmul.f32 %v3213, %v878
        %v3217 = vmul.f32 %v3213, %v880
        %v3218 = vmul.f32 %v3213, 0.0
        %v3224 = vrot.slane %v3214, 2
        %v3225 = vrot.slane %v3215, 2
        %v3226 = vsel %vm421, %v3224, %v3225
        %v3227 = vrot.slane %v3216, 2
        %v3228 = vsel %vm421, %v3225, %v3227
        %v3229 = vrot.slane %v3217, 2
        %v3230 = vsel %vm421, %v3227, %v3229
        %v3231 = vrot.slane %v3218, 2
        %v3232 = vsel %vm421, %v3229, %v3231
        %v3237 = vadd.f32 %v3208, %v3226
        %v3238 = vadd.f32 %v3209, %v3228
        %v3239 = vadd.f32 %v3210, %v3230
        %v3240 = vadd.f32 %v3211, %v3232
        %s3241 = sld [smem:[#allocation8 + $0x5d]]
        %v3242 = vstv %s3241
        %v3243 = vmul.f32 %v3242, %v1063
        %v3244 = vmul.f32 %v3242, %v1054
        %v3245 = vmul.f32 %v3242, %v1056
        %v3246 = vmul.f32 %v3242, %v1058
        %v3247 = vadd.f32 %v3237, %v3243
        %v3248 = vadd.f32 %v3238, %v3244
        %v3249 = vadd.f32 %v3239, %v3245
        %v3250 = vadd.f32 %v3240, %v3246
        %s3251 = sld [smem:[#allocation8 + $0x5e]]
        %v3252 = vstv %s3251
        %v3253 = vmul.f32 %v3252, %v1063
        %v3254 = vmul.f32 %v3252, %v1054
        %v3255 = vmul.f32 %v3252, %v1056
        %v3256 = vmul.f32 %v3252, %v1058
        %v3261 = vrot.slane %v3253, 1
        %v3262 = vrot.slane %v3254, 1
        %v3263 = vsel %vm367, %v3261, %v3262
        %v3264 = vrot.slane %v3255, 1
        %v3265 = vsel %vm367, %v3262, %v3264
        %v3266 = vrot.slane %v3256, 1
        %v3267 = vsel %vm367, %v3264, %v3266
        %v3272 = vadd.f32 %v3247, %v3263
        %v3273 = vadd.f32 %v3248, %v3265
        %v3274 = vadd.f32 %v3249, %v3267
        %v3275 = vadd.f32 %v3250, %v3266
        %s3276 = sld [smem:[#allocation8 + $0x5f]]
        %v3277 = vstv %s3276
        %v3278 = vmul.f32 %v3277, %v1063
        %v3279 = vmul.f32 %v3277, %v1054
        %v3280 = vmul.f32 %v3277, %v1056
        %v3281 = vmul.f32 %v3277, %v1058
        %v3282 = vmul.f32 %v3277, 0.0
        %v3288 = vrot.slane %v3278, 2
        %v3289 = vrot.slane %v3279, 2
        %v3290 = vsel %vm421, %v3288, %v3289
        %v3291 = vrot.slane %v3280, 2
        %v3292 = vsel %vm421, %v3289, %v3291
        %v3293 = vrot.slane %v3281, 2
        %v3294 = vsel %vm421, %v3291, %v3293
        %v3295 = vrot.slane %v3282, 2
        %v3296 = vsel %vm421, %v3293, %v3295
        %v3301 = vadd.f32 %v3272, %v3290
        %v3302 = vadd.f32 %v3273, %v3292
        %v3303 = vadd.f32 %v3274, %v3294
        %v3304 = vadd.f32 %v3275, %v3296
        %s3305 = sld [smem:[#allocation9 + $0x7]]
        %v3306 = vstv %s3305
        %v3307 = vadd.f32 %v3301, %v3306
        %v3308 = vadd.f32 %v3302, %v3306
        %v3309 = vadd.f32 %v3303, %v3306
        %v3310 = vadd.f32 %v3304, %v3306
        %v3311 = vmax.f32 %v3307, 0.0
        %v3312 = vmax.f32 %v3308, 0.0
        %v3313 = vmax.f32 %v3309, 0.0
        %v3314 = vmax.f32 %v3310, 0.0
        %3315 = vst.msk [vmem:[#allocation2] sm:$0xff] %vm473, %v3311
        %3316 = vst.msk [vmem:[#allocation2 + $0x8] sm:$0xff] %vm473, %v3312
        %3317 = vst.msk [vmem:[#allocation2 + $0x10] sm:$0xff] %vm473, %v3313
        %3318 = vst.msk [vmem:[#allocation2 + $0x18] sm:$0x7f] %vm1329, %v3314
        %v3319 = vld [vmem:[#allocation2] ss:$2 sm:$0xff]
        %v3320 = vld [vmem:[%s483] ss:$2 sm:$0x7f]
        %v3321 = vld [vmem:[%s489] ss:$2 sm:$0xff]
        %v3322 = vld [vmem:[%s491] ss:$2 sm:$0x7f]
        %v3323 = vld [vmem:[%s497] ss:$2 sm:$0xff]
        %v3324 = vld [vmem:[%s499] ss:$2 sm:$0x7f]
        %v3325 = vmax.f32 %v3319, %v3321
        %v3326 = vmax.f32 %v3320, %v3322
        %v3327 = vmax.f32 %v3325, %v3323
        %v3328 = vmax.f32 %v3326, %v3324
        %v3331 = vrot.slane %v3327, 7
        %v3332 = vrot.slane %v3328, 7
        %v3333 = vsel %vm517, %v3331, %v3332
        %v3336 = vsel %vm517, 0.0, %v3331
        %v3337 = vld [vmem:[%s5] sm:$0xff]
        %v3338 = vld [vmem:[%s5 + $0x8] sm:$0xff]
        %v3339 = vld [vmem:[%s5 + $0x10] sm:$0x1]
        %v3340 = vmul.f32 %v1348, %v3337
        %v3341 = vmul.f32 %v1345, %v3338
        %v3342 = vmul.f32 %v3339, 0.0
        %v3343 = vsel %vm473, %v3340, 0.0
        %v3344 = vsel %vm473, %v3341, 0.0
        %v3345 = vadd.f32 %v3343, %v3344
        %vm3346 = vcmask 0
        %v3347 = vsel %vm3346, %v3342, 0.0
        %v3348 = vadd.f32 %v3345, %v3347
        %v3349 = vrot.slane %v3348, 4
        %v3350 = vadd.f32 %v3348, %v3349
        %v3351 = vrot.slane %v3350, 2
        %v3352 = vadd.f32 %v3350, %v3351
        %v3353 = vrot.slane %v3352, 1
        %v3354 = vadd.f32 %v3352, %v3353
        %v3355 = vadd.f32 %v3354, 0.0
        %s3356 = scalar_lea.vmem %s5, 24
        %v3357 = vld [vmem:[%s3356] sm:$0xff]
        %v3358 = vld [vmem:[%s3356 + $0x8] sm:$0xff]
        %v3359 = vld [vmem:[%s3356 + $0x10] sm:$0x1]
        %v3360 = vmul.f32 %v1632, %v3357
        %v3361 = vmul.f32 %v1629, %v3358
        %v3362 = vmul.f32 %v3359, 0.0
        %v3363 = vsel %vm473, %v3360, 0.0
        %v3364 = vsel %vm473, %v3361, 0.0
        %v3365 = vadd.f32 %v3363, %v3364
        %v3366 = vsel %vm3346, %v3362, 0.0
        %v3367 = vadd.f32 %v3365, %v3366
        %v3368 = vrot.slane %v3367, 4
        %v3369 = vadd.f32 %v3367, %v3368
        %v3370 = vrot.slane %v3369, 2
        %v3371 = vadd.f32 %v3369, %v3370
        %v3372 = vrot.slane %v3371, 1
        %v3373 = vadd.f32 %v3371, %v3372
        %v3374 = vadd.f32 %v3355, %v3373
        %s3375 = scalar_lea.vmem %s5, 48
        %v3376 = vld [vmem:[%s3375] sm:$0xff]
        %v3377 = vld [vmem:[%s3375 + $0x8] sm:$0xff]
        %v3378 = vld [vmem:[%s3375 + $0x10] sm:$0x1]
        %v3379 = vmul.f32 %v1916, %v3376
        %v3380 = vmul.f32 %v1913, %v3377
        %v3381 = vmul.f32 %v3378, 0.0
        %v3382 = vsel %vm473, %v3379, 0.0
        %v3383 = vsel %vm473, %v3380, 0.0
        %v3384 = vadd.f32 %v3382, %v3383
        %v3385 = vsel %vm3346, %v3381, 0.0
        %v3386 = vadd.f32 %v3384, %v3385
        %v3387 = vrot.slane %v3386, 4
        %v3388 = vadd.f32 %v3386, %v3387
        %v3389 = vrot.slane %v3388, 2
        %v3390 = vadd.f32 %v3388, %v3389
        %v3391 = vrot.slane %v3390, 1
        %v3392 = vadd.f32 %v3390, %v3391
        %v3393 = vadd.f32 %v3374, %v3392
        %s3394 = scalar_lea.vmem %s5, 72
        %v3395 = vld [vmem:[%s3394] sm:$0xff]
        %v3396 = vld [vmem:[%s3394 + $0x8] sm:$0xff]
        %v3397 = vld [vmem:[%s3394 + $0x10] sm:$0x1]
        %v3398 = vmul.f32 %v2200, %v3395
        %v3399 = vmul.f32 %v2197, %v3396
        %v3400 = vmul.f32 %v3397, 0.0
        %v3401 = vsel %vm473, %v3398, 0.0
        %v3402 = vsel %vm473, %v3399, 0.0
        %v3403 = vadd.f32 %v3401, %v3402
        %v3404 = vsel %vm3346, %v3400, 0.0
        %v3405 = vadd.f32 %v3403, %v3404
        %v3406 = vrot.slane %v3405, 4
        %v3407 = vadd.f32 %v3405, %v3406
        %v3408 = vrot.slane %v3407, 2
        %v3409 = vadd.f32 %v3407, %v3408
        %v3410 = vrot.slane %v3409, 1
        %v3411 = vadd.f32 %v3409, %v3410
        %v3412 = vadd.f32 %v3393, %v3411
        %s3413 = scalar_lea.vmem %s5, 96
        %v3414 = vld [vmem:[%s3413] sm:$0xff]
        %v3415 = vld [vmem:[%s3413 + $0x8] sm:$0xff]
        %v3416 = vld [vmem:[%s3413 + $0x10] sm:$0x1]
        %v3417 = vmul.f32 %v2484, %v3414
        %v3418 = vmul.f32 %v2481, %v3415
        %v3419 = vmul.f32 %v3416, 0.0
        %v3420 = vsel %vm473, %v3417, 0.0
        %v3421 = vsel %vm473, %v3418, 0.0
        %v3422 = vadd.f32 %v3420, %v3421
        %v3423 = vsel %vm3346, %v3419, 0.0
        %v3424 = vadd.f32 %v3422, %v3423
        %v3425 = vrot.slane %v3424, 4
        %v3426 = vadd.f32 %v3424, %v3425
        %v3427 = vrot.slane %v3426, 2
        %v3428 = vadd.f32 %v3426, %v3427
        %v3429 = vrot.slane %v3428, 1
        %v3430 = vadd.f32 %v3428, %v3429
        %v3431 = vadd.f32 %v3412, %v3430
        %s3432 = scalar_lea.vmem %s5, 120
        %v3433 = vld [vmem:[%s3432] sm:$0xff]
        %v3434 = vld [vmem:[%s3432 + $0x8] sm:$0xff]
        %v3435 = vld [vmem:[%s3432 + $0x10] sm:$0x1]
        %v3436 = vmul.f32 %v2768, %v3433
        %v3437 = vmul.f32 %v2765, %v3434
        %v3438 = vmul.f32 %v3435, 0.0
        %v3439 = vsel %vm473, %v3436, 0.0
        %v3440 = vsel %vm473, %v3437, 0.0
        %v3441 = vadd.f32 %v3439, %v3440
        %v3442 = vsel %vm3346, %v3438, 0.0
        %v3443 = vadd.f32 %v3441, %v3442
        %v3444 = vrot.slane %v3443, 4
        %v3445 = vadd.f32 %v3443, %v3444
        %v3446 = vrot.slane %v3445, 2
        %v3447 = vadd.f32 %v3445, %v3446
        %v3448 = vrot.slane %v3447, 1
        %v3449 = vadd.f32 %v3447, %v3448
        %v3450 = vadd.f32 %v3431, %v3449
        %s3451 = scalar_lea.vmem %s5, 144
        %v3452 = vld [vmem:[%s3451] sm:$0xff]
        %v3453 = vld [vmem:[%s3451 + $0x8] sm:$0xff]
        %v3454 = vld [vmem:[%s3451 + $0x10] sm:$0x1]
        %v3455 = vmul.f32 %v3052, %v3452
        %v3456 = vmul.f32 %v3049, %v3453
        %v3457 = vmul.f32 %v3454, 0.0
        %v3458 = vsel %vm473, %v3455, 0.0
        %v3459 = vsel %vm473, %v3456, 0.0
        %v3460 = vadd.f32 %v3458, %v3459
        %v3461 = vsel %vm3346, %v3457, 0.0
        %v3462 = vadd.f32 %v3460, %v3461
        %v3463 = vrot.slane %v3462, 4
        %v3464 = vadd.f32 %v3462, %v3463
        %v3465 = vrot.slane %v3464, 2
        %v3466 = vadd.f32 %v3464, %v3465
        %v3467 = vrot.slane %v3466, 1
        %v3468 = vadd.f32 %v3466, %v3467
        %v3469 = vadd.f32 %v3450, %v3468
        %s3470 = scalar_lea.vmem %s5, 168
        %v3471 = vld [vmem:[%s3470] sm:$0xff]
        %v3472 = vld [vmem:[%s3470 + $0x8] sm:$0xff]
        %v3473 = vld [vmem:[%s3470 + $0x10] sm:$0x1]
        %v3474 = vmul.f32 %v3336, %v3471
        %v3475 = vmul.f32 %v3333, %v3472
        %v3476 = vmul.f32 %v3473, 0.0
        %v3477 = vsel %vm473, %v3474, 0.0
        %v3478 = vsel %vm473, %v3475, 0.0
        %v3479 = vadd.f32 %v3477, %v3478
        %v3480 = vsel %vm3346, %v3476, 0.0
        %v3481 = vadd.f32 %v3479, %v3480
        %v3482 = vrot.slane %v3481, 4
        %v3483 = vadd.f32 %v3481, %v3482
        %v3484 = vrot.slane %v3483, 2
        %v3485 = vadd.f32 %v3483, %v3484
        %v3486 = vrot.slane %v3485, 1
        %v3487 = vadd.f32 %v3485, %v3486
        %v3488 = vadd.f32 %v3469, %v3487
        %s3489 = sld [smem:[#allocation3]]
        %v3490 = vstv %s3489
        %v3491 = vadd.f32 %v3488, %v3490
        %3492 = vst.msk [vmem:[%s327] sm:$0x1] %vm3346, %v3491
        %p3493 = scmp.lt.s32.totalorder %s22, 1
        %s3494 = scalar_select %p3493, %s22, 1
        %s3495 = scalar_lea.vmem %s7, %s3494
        // Predicated region
        $region65: #{distortion_detector_forward.1} parent=47 // pred_check
          %p3496 = pneg %p192
        $region66: #{distortion_detector_forward.1} parent=47 // pred_check_branch
          %3498 = sbr.rel (%p3496) target = $region68
        $region67: #{distortion_detector_forward.1} parent=47 // pred_region
          _
        $region68: #{distortion_detector_forward.1} parent=47 // pred_fallthru
          _
      $region48: #{distortion_detector_forward.1} parent=5 // pred_fallthru
        _
      %p3499 = scmp.le.s32.totalorder 2, %s17
      // Predicated region
      $region69: #{distortion_detector_forward.1} parent=5 // pred_check
        %p3500 = pneg %p3499
      $region70: #{distortion_detector_forward.1} parent=5 // pred_check_branch
        %3502 = sbr.rel (%p3500) target = $region72
      $region71: #{distortion_detector_forward.1} parent=5 // pred_region
        %s3503 = ssub.s32 %s17, 2
        // Predicated region
        $region73: #{distortion_detector_forward.1} parent=71 // pred_check
          %p3504 = pneg %p198
        $region74: #{distortion_detector_forward.1} parent=71 // pred_check_branch
          %3506 = sbr.rel (%p3504) target = $region76
        $region75: #{distortion_detector_forward.1} parent=71 // pred_region
          %p3507 = scmp.lt.s32.totalorder %s23, 1
          %s3508 = scalar_select %p3507, %s23, 1
          %s3509 = scalar_lea.vmem %s7, %s3508
        $region76: #{distortion_detector_forward.1} parent=71 // pred_fallthru
          _
      $region72: #{distortion_detector_forward.1} parent=5 // pred_fallthru
        _
    $region6: #{distortion_detector_forward.1} parent=1 // loop_footer
      %s21 = sadd.s32 1, %s17
    $region7: #{distortion_detector_forward.1} parent=1 // loop_footer_branch
      %16 = sbr.rel target = $region3
    $region8: #{distortion_detector_forward.1} parent=1 // loop_exit
      _
    %3510 = vsyncpa [#allocation5], 1
    %s3511 = scalar_lea.sflag [#allocation5], 1
    %3512 = vsyncpa %s3511, 1
    %3513 = vsyncpa [#allocation7], 1
    %3514 = vsyncpa [#allocation10], 1

</llo_original>
